<compile_context>
chip_gen: v7x
topology: tpu7x:2x2x1
jax: 0.10.0
libtpu: 0.0.40
codegen_flags: <defaults>
</compile_context>

<pallas_src>
import jax
import jax.numpy as jnp
from jax.experimental import pallas as pl
from jax.experimental.pallas import tpu as pltpu


def _make_kernel(H, W, Cin, Cout, KH, KW, dilations, pad_max, TH):
    """Builds the per-strip kernel with all shapes / tap offsets baked in."""
    L = Cout * W             # packed lane width: lane index = co * W + w
    halo = TH + 2 * pad_max  # padded rows needed to produce TH output rows

    def kernel(x_ref, w_ref, o_ref):
        # x_ref: (1, Cin, Hp, Wp) bf16  -- whole reflect-padded image (resident)
        # w_ref: (D*KH*KW*Cin, L) f32   -- lane-expanded weights (resident)
        # o_ref: (1, TH, L)             -- lane-dense output strip
        row0 = pl.multiple_of(pl.program_id(1) * TH, TH)

        acc = jnp.zeros((TH, L), jnp.float32)

        for di, d in enumerate(dilations):
            pad_d = d * (KH - 1) // 2
            # Static tap offsets into the max-padded image for this dilation.
            r_offs = [pad_max - pad_d + ih * d for ih in range(KH)]
            c_offs = [pad_max - pad_d + iw * d for iw in range(KW)]

            # Row-group accumulators: all taps sharing a row offset are summed
            # over the full halo height first; the sublane shift happens once
            # per (dilation, row offset) instead of once per tap.
            z = {r: jnp.zeros((halo, L), jnp.float32) for r in r_offs}

            for ci in range(Cin):
                # One dynamic-row VMEM load of this channel's halo rows (bf16),
                # upcast once (no whole-image f32 planes).
                xs = x_ref[0, ci, pl.ds(row0, halo), :].astype(jnp.float32)
                # Hoisted column shifts: one lane-shifted, Cout-tiled copy per
                # distinct column offset, reused for every row tap / co.
                xt = {}
                for c in c_offs:
                    win = xs[:, c:c + W]                              # (halo, W)
                    xt[c] = jnp.concatenate([win] * Cout, axis=-1)    # (halo, L)
                for ih in range(KH):
                    r = r_offs[ih]
                    for iw in range(KW):
                        c = c_offs[iw]
                        t = ((di * KH + ih) * KW + iw) * Cin + ci
                        w_row = w_ref[t:t + 1, :]                     # (1, L) f32
                        z[r] = z[r] + w_row * xt[c]                   # dense VPU FMA

            # Collapse the row groups into the strip rows, ReLU per dilation,
            # and accumulate over dilations (matches the module).
            y_d = jnp.zeros((TH, L), jnp.float32)
            for r in r_offs:
                y_d = y_d + z[r][r:r + TH, :]
            acc = acc + jnp.maximum(y_d, 0.0)

        o_ref[0] = acc.astype(o_ref.dtype)

    return kernel


def multi_dilated_conv_multi_weight(x_nchw, weights, dilation_values,
                                    out_dtype=jnp.float32):
    """weights: list of (C_out, C_in, kh, kw) arrays, one per dilation value."""
    N, Cin, H, W = x_nchw.shape
    Cout, Cin_w, KH, KW = weights[0].shape
    assert Cin_w == Cin
    assert KH == KW and KH % 2 == 1, "square, odd kernel sizes only"
    dils = tuple(int(d) for d in dilation_values)
    assert len(weights) == len(dils)
    pad_max = max(dils) * (KH - 1) // 2
    assert pad_max < H and pad_max < W, "reflect padding needs pad < spatial dim"

    # Reflect-pad ONCE with the largest pad (bf16 on the wire).  Each
    # per-dilation reflect-padded image is an interior window of this one, so
    # the kernel needs no per-dilation copies.
    xp = jnp.pad(
        x_nchw, ((0, 0), (0, 0), (pad_max, pad_max), (pad_max, pad_max)),
        mode="reflect").astype(jnp.bfloat16)
    Hp, Wp = H + 2 * pad_max, W + 2 * pad_max

    # Lane-expanded weights: row t = (d, ih, iw, ci); lane l = co*W + w holds
    # weights[d][co, ci, ih, iw].  Small (T, Cout*W) f32 tile, resident in VMEM.
    D = len(dils)
    L = Cout * W
    T = D * KH * KW * Cin
    w_stack = jnp.stack([jnp.asarray(wt) for wt in weights], axis=0)      # (D,Cout,Cin,KH,KW)
    w_rows = jnp.transpose(w_stack, (0, 3, 4, 2, 1)).reshape(T, Cout)      # (T, Cout)
    w_exp = jnp.repeat(w_rows.astype(jnp.float32), W, axis=1)             # (T, Cout*W)

    # H-strip size: largest candidate that divides H and still yields >= 2
    # strips (keeps both v7x TensorCores busy at small batch, bounds the live
    # accumulator planes); else fall back to the whole image.
    TH = H
    for cand in (32, 16, 8):
        if H % cand == 0 and H // cand >= 2:
            TH = cand
            break
    num_strips = H // TH

    kernel = _make_kernel(H, W, Cin, Cout, KH, KW, dils, pad_max, TH)

    # VMEM budget from the actual (double-buffered) block sizes, capped for
    # v7x's 64 MiB VMEM; floor of 16 MiB for compiler scratch headroom.
    out_isz = jnp.dtype(out_dtype).itemsize
    vmem_bytes = (2 * Cin * Hp * Wp * 2 + 2 * TH * L * out_isz + T * L * 4
                  + (8 << 20))
    vmem_bytes = int(min(max(vmem_bytes, 16 << 20), 48 << 20))

    y_packed = pl.pallas_call(
        kernel,
        out_shape=jax.ShapeDtypeStruct((N, H, L), out_dtype),
        grid=(N, num_strips),
        in_specs=[
            # Whole padded image per batch element; index constant along the
            # strip axis so it is fetched once per image and stays resident.
            # TODO(synk): for very large images, switch to a manual halo'd
            # strip DMA (memory_space=pl.ANY + make_async_copy) so input VMEM
            # stops scaling with the image, and tile W for very wide images.
            pl.BlockSpec((1, Cin, Hp, Wp), lambda n, s: (n, 0, 0, 0)),
            pl.BlockSpec((T, L), lambda n, s: (0, 0)),
        ],
        out_specs=pl.BlockSpec((1, TH, L), lambda n, s: (n, s, 0)),
        compiler_params=pltpu.CompilerParams(
            dimension_semantics=("parallel", "parallel"),
            vmem_limit_bytes=vmem_bytes,
        ),
    )(xp, w_exp)

    # Layout plumbing back to the module's NCHW output:
    # (N, H, Cout*W) -> (N, H, Cout, W) -> (N, Cout, H, W).
    return jnp.transpose(y_packed.reshape(N, H, Cout, W), (0, 2, 1, 3))


def _reference(x_nchw, weights, dilation_values):
    """Plain-JAX reference (XLA conv) used only to sanity-check the kernel."""
    N, Cin, H, W = x_nchw.shape
    Cout = weights[0].shape[0]
    kh = weights[0].shape[2]
    y_sum = jnp.zeros((N, Cout, H, W), jnp.float32)
    for d, wt in zip(dilation_values, weights):
        pad = d * (kh - 1) // 2
        xp = jnp.pad(x_nchw, ((0, 0), (0, 0), (pad, pad), (pad, pad)),
                     mode="reflect")
        y = jax.lax.conv_general_dilated(
            xp.astype(jnp.float32), wt.astype(jnp.float32),
            window_strides=(1, 1), padding="VALID",
            rhs_dilation=(d, d),
            dimension_numbers=("NCHW", "OIHW", "NCHW"),
            precision=jax.lax.Precision.HIGHEST)
        y_sum = y_sum + jnp.maximum(y, 0.0)
    return y_sum


if __name__ == "__main__":
    # Module config (mirrors __init__): in_channels=4, out_channels=8,
    # kernel_size=(3,3), padding_mode='reflect', dilation_values=[1,2,3].
    in_channels, out_channels = 4, 8
    kernel_size = (3, 3)
    dilation_values = [1, 2, 3]

    key = jax.random.PRNGKey(0)
    kx, kw1, kw2, kw3 = jax.random.split(key, 4)

    x = jax.random.normal(kx, (2, in_channels, 16, 16), dtype=jnp.float32)
    # Per-dilation weights: self.weights[str(d)] has shape (Cout, Cin, kh, kw).
    weights = [
        0.1 * jax.random.normal(k, (out_channels, in_channels) + kernel_size,
                                dtype=jnp.float32)
        for k in (kw1, kw2, kw3)
    ]

    y = jax.block_until_ready(
        multi_dilated_conv_multi_weight(x, weights, dilation_values))

    # Reference on the same bf16-rounded activations the kernel consumes, so
    # the comparison only measures kernel correctness (not the bf16 cast).
    x_bf = x.astype(jnp.bfloat16).astype(jnp.float32)
    y_ref = jax.block_until_ready(_reference(x_bf, weights, dilation_values))

    assert y.shape == (2, out_channels, 16, 16)
    assert jnp.allclose(y, y_ref, atol=1e-3, rtol=1e-3), "mismatch vs reference"

    print("KERNEL_OK")
</pallas_src>

<mosaic_0001>
module attributes {stable_mosaic.version = 11 : i64} {
  func.func @kernel(%arg0: i32, %arg1: i32, %arg2: memref<1x4x22x22xbf16, #tpu.memory_space<vmem>>, %arg3: memref<108x128xf32, #tpu.memory_space<vmem>>, %arg4: memref<1x8x128xf32, #tpu.memory_space<vmem>>) attributes {dimension_semantics = [#tpu.dimension_semantics<parallel>, #tpu.dimension_semantics<parallel>], iteration_bounds = array<i64: 2, 2>, scalar_prefetch = 0 : i64, scratch_operands = 0 : i64, tpu.core_type = #tpu.core_type<tc>, window_params = [{transform_indices = @transform_0, window_bounds = array<i64: 1, 4, 22, 22>}, {pipeline_mode = #tpu.pipeline_mode<synchronous>, transform_indices = @transform_1, window_bounds = array<i64: 108, 128>}, {transform_indices = @transform_2, window_bounds = array<i64: 1, 8, 128>}]} {
    %c8_i32 = arith.constant 8 : i32
    %0 = arith.muli %arg1, %c8_i32 : i32
    %1 = tpu.assume_multiple %0, 8 : i32
    %cst = arith.constant 0.000000e+00 : f32
    %2 = vector.broadcast %cst : f32 to vector<8x128xf32>
    %cst_0 = arith.constant 0.000000e+00 : f32
    %3 = vector.broadcast %cst_0 : f32 to vector<14x128xf32>
    %cst_1 = arith.constant 0.000000e+00 : f32
    %4 = vector.broadcast %cst_1 : f32 to vector<14x128xf32>
    %cst_2 = arith.constant 0.000000e+00 : f32
    %5 = vector.broadcast %cst_2 : f32 to vector<14x128xf32>
    %c0 = arith.constant 0 : index
    %c0_3 = arith.constant 0 : index
    %6 = arith.index_cast %1 : i32 to index
    %c0_4 = arith.constant 0 : index
    %7 = vector.load %arg2[%c0, %c0_3, %6, %c0_4] : memref<1x4x22x22xbf16, #tpu.memory_space<vmem>>, vector<1x1x14x22xbf16>
    %8 = vector.shape_cast %7 : vector<1x1x14x22xbf16> to vector<14x22xbf16>
    %9 = arith.extf %8 : vector<14x22xbf16> to vector<14x22xf32>
    %10 = vector.extract_strided_slice %9 {offsets = [0, 2], sizes = [14, 16], strides = [1, 1]} : vector<14x22xf32> to vector<14x16xf32>
    %11 = tpu.concatenate %10, %10, %10, %10, %10, %10, %10, %10 in 1 : vector<14x16xf32>, vector<14x16xf32>, vector<14x16xf32>, vector<14x16xf32>, vector<14x16xf32>, vector<14x16xf32>, vector<14x16xf32>, vector<14x16xf32> -> vector<14x128xf32>
    %12 = vector.extract_strided_slice %9 {offsets = [0, 3], sizes = [14, 16], strides = [1, 1]} : vector<14x22xf32> to vector<14x16xf32>
    %13 = tpu.concatenate %12, %12, %12, %12, %12, %12, %12, %12 in 1 : vector<14x16xf32>, vector<14x16xf32>, vector<14x16xf32>, vector<14x16xf32>, vector<14x16xf32>, vector<14x16xf32>, vector<14x16xf32>, vector<14x16xf32> -> vector<14x128xf32>
    %14 = vector.extract_strided_slice %9 {offsets = [0, 4], sizes = [14, 16], strides = [1, 1]} : vector<14x22xf32> to vector<14x16xf32>
    %15 = tpu.concatenate %14, %14, %14, %14, %14, %14, %14, %14 in 1 : vector<14x16xf32>, vector<14x16xf32>, vector<14x16xf32>, vector<14x16xf32>, vector<14x16xf32>, vector<14x16xf32>, vector<14x16xf32>, vector<14x16xf32> -> vector<14x128xf32>
    %c0_5 = arith.constant 0 : index
    %c0_6 = arith.constant 0 : index
    %16 = vector.load %arg3[%c0_5, %c0_6] : memref<108x128xf32, #tpu.memory_space<vmem>>, vector<1x128xf32>
    %17 = vector.broadcast %16 : vector<1x128xf32> to vector<14x128xf32>
    %18 = arith.mulf %17, %11 : vector<14x128xf32>
    %19 = arith.addf %3, %18 : vector<14x128xf32>
    %c4 = arith.constant 4 : index
    %c0_7 = arith.constant 0 : index
    %20 = vector.load %arg3[%c4, %c0_7] : memref<108x128xf32, #tpu.memory_space<vmem>>, vector<1x128xf32>
    %21 = vector.broadcast %20 : vector<1x128xf32> to vector<14x128xf32>
    %22 = arith.mulf %21, %13 : vector<14x128xf32>
    %23 = arith.addf %19, %22 : vector<14x128xf32>
    %c8 = arith.constant 8 : index
    %c0_8 = arith.constant 0 : index
    %24 = vector.load %arg3[%c8, %c0_8] : memref<108x128xf32, #tpu.memory_space<vmem>>, vector<1x128xf32>
    %25 = vector.broadcast %24 : vector<1x128xf32> to vector<14x128xf32>
    %26 = arith.mulf %25, %15 : vector<14x128xf32>
    %27 = arith.addf %23, %26 : vector<14x128xf32>
    %c12 = arith.constant 12 : index
    %c0_9 = arith.constant 0 : index
    %28 = vector.load %arg3[%c12, %c0_9] : memref<108x128xf32, #tpu.memory_space<vmem>>, vector<1x128xf32>
    %29 = vector.broadcast %28 : vector<1x128xf32> to vector<14x128xf32>
    %30 = arith.mulf %29, %11 : vector<14x128xf32>
    %31 = arith.addf %4, %30 : vector<14x128xf32>
    %c16 = arith.constant 16 : index
    %c0_10 = arith.constant 0 : index
    %32 = vector.load %arg3[%c16, %c0_10] : memref<108x128xf32, #tpu.memory_space<vmem>>, vector<1x128xf32>
    %33 = vector.broadcast %32 : vector<1x128xf32> to vector<14x128xf32>
    %34 = arith.mulf %33, %13 : vector<14x128xf32>
    %35 = arith.addf %31, %34 : vector<14x128xf32>
    %c20 = arith.constant 20 : index
    %c0_11 = arith.constant 0 : index
    %36 = vector.load %arg3[%c20, %c0_11] : memref<108x128xf32, #tpu.memory_space<vmem>>, vector<1x128xf32>
    %37 = vector.broadcast %36 : vector<1x128xf32> to vector<14x128xf32>
    %38 = arith.mulf %37, %15 : vector<14x128xf32>
    %39 = arith.addf %35, %38 : vector<14x128xf32>
    %c24 = arith.constant 24 : index
    %c0_12 = arith.constant 0 : index
    %40 = vector.load %arg3[%c24, %c0_12] : memref<108x128xf32, #tpu.memory_space<vmem>>, vector<1x128xf32>
    %41 = vector.broadcast %40 : vector<1x128xf32> to vector<14x128xf32>
    %42 = arith.mulf %41, %11 : vector<14x128xf32>
    %43 = arith.addf %5, %42 : vector<14x128xf32>
    %c28 = arith.constant 28 : index
    %c0_13 = arith.constant 0 : index
    %44 = vector.load %arg3[%c28, %c0_13] : memref<108x128xf32, #tpu.memory_space<vmem>>, vector<1x128xf32>
    %45 = vector.broadcast %44 : vector<1x128xf32> to vector<14x128xf32>
    %46 = arith.mulf %45, %13 : vector<14x128xf32>
    %47 = arith.addf %43, %46 : vector<14x128xf32>
    %c32 = arith.constant 32 : index
    %c0_14 = arith.constant 0 : index
    %48 = vector.load %arg3[%c32, %c0_14] : memref<108x128xf32, #tpu.memory_space<vmem>>, vector<1x128xf32>
    %49 = vector.broadcast %48 : vector<1x128xf32> to vector<14x128xf32>
    %50 = arith.mulf %49, %15 : vector<14x128xf32>
    %51 = arith.addf %47, %50 : vector<14x128xf32>
    %c0_15 = arith.constant 0 : index
    %c1 = arith.constant 1 : index
    %52 = arith.index_cast %1 : i32 to index
    %c0_16 = arith.constant 0 : index
    %53 = vector.load %arg2[%c0_15, %c1, %52, %c0_16] : memref<1x4x22x22xbf16, #tpu.memory_space<vmem>>, vector<1x1x14x22xbf16>
    %54 = vector.shape_cast %53 : vector<1x1x14x22xbf16> to vector<14x22xbf16>
    %55 = arith.extf %54 : vector<14x22xbf16> to vector<14x22xf32>
    %56 = vector.extract_strided_slice %55 {offsets = [0, 2], sizes = [14, 16], strides = [1, 1]} : vector<14x22xf32> to vector<14x16xf32>
    %57 = tpu.concatenate %56, %56, %56, %56, %56, %56, %56, %56 in 1 : vector<14x16xf32>, vector<14x16xf32>, vector<14x16xf32>, vector<14x16xf32>, vector<14x16xf32>, vector<14x16xf32>, vector<14x16xf32>, vector<14x16xf32> -> vector<14x128xf32>
    %58 = vector.extract_strided_slice %55 {offsets = [0, 3], sizes = [14, 16], strides = [1, 1]} : vector<14x22xf32> to vector<14x16xf32>
    %59 = tpu.concatenate %58, %58, %58, %58, %58, %58, %58, %58 in 1 : vector<14x16xf32>, vector<14x16xf32>, vector<14x16xf32>, vector<14x16xf32>, vector<14x16xf32>, vector<14x16xf32>, vector<14x16xf32>, vector<14x16xf32> -> vector<14x128xf32>
    %60 = vector.extract_strided_slice %55 {offsets = [0, 4], sizes = [14, 16], strides = [1, 1]} : vector<14x22xf32> to vector<14x16xf32>
    %61 = tpu.concatenate %60, %60, %60, %60, %60, %60, %60, %60 in 1 : vector<14x16xf32>, vector<14x16xf32>, vector<14x16xf32>, vector<14x16xf32>, vector<14x16xf32>, vector<14x16xf32>, vector<14x16xf32>, vector<14x16xf32> -> vector<14x128xf32>
    %c1_17 = arith.constant 1 : index
    %c0_18 = arith.constant 0 : index
    %62 = vector.load %arg3[%c1_17, %c0_18] : memref<108x128xf32, #tpu.memory_space<vmem>>, vector<1x128xf32>
    %63 = vector.broadcast %62 : vector<1x128xf32> to vector<14x128xf32>
    %64 = arith.mulf %63, %57 : vector<14x128xf32>
    %65 = arith.addf %27, %64 : vector<14x128xf32>
    %c5 = arith.constant 5 : index
    %c0_19 = arith.constant 0 : index
    %66 = vector.load %arg3[%c5, %c0_19] : memref<108x128xf32, #tpu.memory_space<vmem>>, vector<1x128xf32>
    %67 = vector.broadcast %66 : vector<1x128xf32> to vector<14x128xf32>
    %68 = arith.mulf %67, %59 : vector<14x128xf32>
    %69 = arith.addf %65, %68 : vector<14x128xf32>
    %c9 = arith.constant 9 : index
    %c0_20 = arith.constant 0 : index
    %70 = vector.load %arg3[%c9, %c0_20] : memref<108x128xf32, #tpu.memory_space<vmem>>, vector<1x128xf32>
    %71 = vector.broadcast %70 : vector<1x128xf32> to vector<14x128xf32>
    %72 = arith.mulf %71, %61 : vector<14x128xf32>
    %73 = arith.addf %69, %72 : vector<14x128xf32>
    %c13 = arith.constant 13 : index
    %c0_21 = arith.constant 0 : index
    %74 = vector.load %arg3[%c13, %c0_21] : memref<108x128xf32, #tpu.memory_space<vmem>>, vector<1x128xf32>
    %75 = vector.broadcast %74 : vector<1x128xf32> to vector<14x128xf32>
    %76 = arith.mulf %75, %57 : vector<14x128xf32>
    %77 = arith.addf %39, %76 : vector<14x128xf32>
    %c17 = arith.constant 17 : index
    %c0_22 = arith.constant 0 : index
    %78 = vector.load %arg3[%c17, %c0_22] : memref<108x128xf32, #tpu.memory_space<vmem>>, vector<1x128xf32>
    %79 = vector.broadcast %78 : vector<1x128xf32> to vector<14x128xf32>
    %80 = arith.mulf %79, %59 : vector<14x128xf32>
    %81 = arith.addf %77, %80 : vector<14x128xf32>
    %c21 = arith.constant 21 : index
    %c0_23 = arith.constant 0 : index
    %82 = vector.load %arg3[%c21, %c0_23] : memref<108x128xf32, #tpu.memory_space<vmem>>, vector<1x128xf32>
    %83 = vector.broadcast %82 : vector<1x128xf32> to vector<14x128xf32>
    %84 = arith.mulf %83, %61 : vector<14x128xf32>
    %85 = arith.addf %81, %84 : vector<14x128xf32>
    %c25 = arith.constant 25 : index
    %c0_24 = arith.constant 0 : index
    %86 = vector.load %arg3[%c25, %c0_24] : memref<108x128xf32, #tpu.memory_space<vmem>>, vector<1x128xf32>
    %87 = vector.broadcast %86 : vector<1x128xf32> to vector<14x128xf32>
    %88 = arith.mulf %87, %57 : vector<14x128xf32>
    %89 = arith.addf %51, %88 : vector<14x128xf32>
    %c29 = arith.constant 29 : index
    %c0_25 = arith.constant 0 : index
    %90 = vector.load %arg3[%c29, %c0_25] : memref<108x128xf32, #tpu.memory_space<vmem>>, vector<1x128xf32>
    %91 = vector.broadcast %90 : vector<1x128xf32> to vector<14x128xf32>
    %92 = arith.mulf %91, %59 : vector<14x128xf32>
    %93 = arith.addf %89, %92 : vector<14x128xf32>
    %c33 = arith.constant 33 : index
    %c0_26 = arith.constant 0 : index
    %94 = vector.load %arg3[%c33, %c0_26] : memref<108x128xf32, #tpu.memory_space<vmem>>, vector<1x128xf32>
    %95 = vector.broadcast %94 : vector<1x128xf32> to vector<14x128xf32>
    %96 = arith.mulf %95, %61 : vector<14x128xf32>
    %97 = arith.addf %93, %96 : vector<14x128xf32>
    %c0_27 = arith.constant 0 : index
    %c2 = arith.constant 2 : index
    %98 = arith.index_cast %1 : i32 to index
    %c0_28 = arith.constant 0 : index
    %99 = vector.load %arg2[%c0_27, %c2, %98, %c0_28] : memref<1x4x22x22xbf16, #tpu.memory_space<vmem>>, vector<1x1x14x22xbf16>
    %100 = vector.shape_cast %99 : vector<1x1x14x22xbf16> to vector<14x22xbf16>
    %101 = arith.extf %100 : vector<14x22xbf16> to vector<14x22xf32>
    %102 = vector.extract_strided_slice %101 {offsets = [0, 2], sizes = [14, 16], strides = [1, 1]} : vector<14x22xf32> to vector<14x16xf32>
    %103 = tpu.concatenate %102, %102, %102, %102, %102, %102, %102, %102 in 1 : vector<14x16xf32>, vector<14x16xf32>, vector<14x16xf32>, vector<14x16xf32>, vector<14x16xf32>, vector<14x16xf32>, vector<14x16xf32>, vector<14x16xf32> -> vector<14x128xf32>
    %104 = vector.extract_strided_slice %101 {offsets = [0, 3], sizes = [14, 16], strides = [1, 1]} : vector<14x22xf32> to vector<14x16xf32>
    %105 = tpu.concatenate %104, %104, %104, %104, %104, %104, %104, %104 in 1 : vector<14x16xf32>, vector<14x16xf32>, vector<14x16xf32>, vector<14x16xf32>, vector<14x16xf32>, vector<14x16xf32>, vector<14x16xf32>, vector<14x16xf32> -> vector<14x128xf32>
    %106 = vector.extract_strided_slice %101 {offsets = [0, 4], sizes = [14, 16], strides = [1, 1]} : vector<14x22xf32> to vector<14x16xf32>
    %107 = tpu.concatenate %106, %106, %106, %106, %106, %106, %106, %106 in 1 : vector<14x16xf32>, vector<14x16xf32>, vector<14x16xf32>, vector<14x16xf32>, vector<14x16xf32>, vector<14x16xf32>, vector<14x16xf32>, vector<14x16xf32> -> vector<14x128xf32>
    %c2_29 = arith.constant 2 : index
    %c0_30 = arith.constant 0 : index
    %108 = vector.load %arg3[%c2_29, %c0_30] : memref<108x128xf32, #tpu.memory_space<vmem>>, vector<1x128xf32>
    %109 = vector.broadcast %108 : vector<1x128xf32> to vector<14x128xf32>
    %110 = arith.mulf %109, %103 : vector<14x128xf32>
    %111 = arith.addf %73, %110 : vector<14x128xf32>
    %c6 = arith.constant 6 : index
    %c0_31 = arith.constant 0 : index
    %112 = vector.load %arg3[%c6, %c0_31] : memref<108x128xf32, #tpu.memory_space<vmem>>, vector<1x128xf32>
    %113 = vector.broadcast %112 : vector<1x128xf32> to vector<14x128xf32>
    %114 = arith.mulf %113, %105 : vector<14x128xf32>
    %115 = arith.addf %111, %114 : vector<14x128xf32>
    %c10 = arith.constant 10 : index
    %c0_32 = arith.constant 0 : index
    %116 = vector.load %arg3[%c10, %c0_32] : memref<108x128xf32, #tpu.memory_space<vmem>>, vector<1x128xf32>
    %117 = vector.broadcast %116 : vector<1x128xf32> to vector<14x128xf32>
    %118 = arith.mulf %117, %107 : vector<14x128xf32>
    %119 = arith.addf %115, %118 : vector<14x128xf32>
    %c14 = arith.constant 14 : index
    %c0_33 = arith.constant 0 : index
    %120 = vector.load %arg3[%c14, %c0_33] : memref<108x128xf32, #tpu.memory_space<vmem>>, vector<1x128xf32>
    %121 = vector.broadcast %120 : vector<1x128xf32> to vector<14x128xf32>
    %122 = arith.mulf %121, %103 : vector<14x128xf32>
    %123 = arith.addf %85, %122 : vector<14x128xf32>
    %c18 = arith.constant 18 : index
    %c0_34 = arith.constant 0 : index
    %124 = vector.load %arg3[%c18, %c0_34] : memref<108x128xf32, #tpu.memory_space<vmem>>, vector<1x128xf32>
    %125 = vector.broadcast %124 : vector<1x128xf32> to vector<14x128xf32>
    %126 = arith.mulf %125, %105 : vector<14x128xf32>
    %127 = arith.addf %123, %126 : vector<14x128xf32>
    %c22 = arith.constant 22 : index
    %c0_35 = arith.constant 0 : index
    %128 = vector.load %arg3[%c22, %c0_35] : memref<108x128xf32, #tpu.memory_space<vmem>>, vector<1x128xf32>
    %129 = vector.broadcast %128 : vector<1x128xf32> to vector<14x128xf32>
    %130 = arith.mulf %129, %107 : vector<14x128xf32>
    %131 = arith.addf %127, %130 : vector<14x128xf32>
    %c26 = arith.constant 26 : index
    %c0_36 = arith.constant 0 : index
    %132 = vector.load %arg3[%c26, %c0_36] : memref<108x128xf32, #tpu.memory_space<vmem>>, vector<1x128xf32>
    %133 = vector.broadcast %132 : vector<1x128xf32> to vector<14x128xf32>
    %134 = arith.mulf %133, %103 : vector<14x128xf32>
    %135 = arith.addf %97, %134 : vector<14x128xf32>
    %c30 = arith.constant 30 : index
    %c0_37 = arith.constant 0 : index
    %136 = vector.load %arg3[%c30, %c0_37] : memref<108x128xf32, #tpu.memory_space<vmem>>, vector<1x128xf32>
    %137 = vector.broadcast %136 : vector<1x128xf32> to vector<14x128xf32>
    %138 = arith.mulf %137, %105 : vector<14x128xf32>
    %139 = arith.addf %135, %138 : vector<14x128xf32>
    %c34 = arith.constant 34 : index
    %c0_38 = arith.constant 0 : index
    %140 = vector.load %arg3[%c34, %c0_38] : memref<108x128xf32, #tpu.memory_space<vmem>>, vector<1x128xf32>
    %141 = vector.broadcast %140 : vector<1x128xf32> to vector<14x128xf32>
    %142 = arith.mulf %141, %107 : vector<14x128xf32>
    %143 = arith.addf %139, %142 : vector<14x128xf32>
    %c0_39 = arith.constant 0 : index
    %c3 = arith.constant 3 : index
    %144 = arith.index_cast %1 : i32 to index
    %c0_40 = arith.constant 0 : index
    %145 = vector.load %arg2[%c0_39, %c3, %144, %c0_40] : memref<1x4x22x22xbf16, #tpu.memory_space<vmem>>, vector<1x1x14x22xbf16>
    %146 = vector.shape_cast %145 : vector<1x1x14x22xbf16> to vector<14x22xbf16>
    %147 = arith.extf %146 : vector<14x22xbf16> to vector<14x22xf32>
    %148 = vector.extract_strided_slice %147 {offsets = [0, 2], sizes = [14, 16], strides = [1, 1]} : vector<14x22xf32> to vector<14x16xf32>
    %149 = tpu.concatenate %148, %148, %148, %148, %148, %148, %148, %148 in 1 : vector<14x16xf32>, vector<14x16xf32>, vector<14x16xf32>, vector<14x16xf32>, vector<14x16xf32>, vector<14x16xf32>, vector<14x16xf32>, vector<14x16xf32> -> vector<14x128xf32>
    %150 = vector.extract_strided_slice %147 {offsets = [0, 3], sizes = [14, 16], strides = [1, 1]} : vector<14x22xf32> to vector<14x16xf32>
    %151 = tpu.concatenate %150, %150, %150, %150, %150, %150, %150, %150 in 1 : vector<14x16xf32>, vector<14x16xf32>, vector<14x16xf32>, vector<14x16xf32>, vector<14x16xf32>, vector<14x16xf32>, vector<14x16xf32>, vector<14x16xf32> -> vector<14x128xf32>
    %152 = vector.extract_strided_slice %147 {offsets = [0, 4], sizes = [14, 16], strides = [1, 1]} : vector<14x22xf32> to vector<14x16xf32>
    %153 = tpu.concatenate %152, %152, %152, %152, %152, %152, %152, %152 in 1 : vector<14x16xf32>, vector<14x16xf32>, vector<14x16xf32>, vector<14x16xf32>, vector<14x16xf32>, vector<14x16xf32>, vector<14x16xf32>, vector<14x16xf32> -> vector<14x128xf32>
    %c3_41 = arith.constant 3 : index
    %c0_42 = arith.constant 0 : index
    %154 = vector.load %arg3[%c3_41, %c0_42] : memref<108x128xf32, #tpu.memory_space<vmem>>, vector<1x128xf32>
    %155 = vector.broadcast %154 : vector<1x128xf32> to vector<14x128xf32>
    %156 = arith.mulf %155, %149 : vector<14x128xf32>
    %157 = arith.addf %119, %156 : vector<14x128xf32>
    %c7 = arith.constant 7 : index
    %c0_43 = arith.constant 0 : index
    %158 = vector.load %arg3[%c7, %c0_43] : memref<108x128xf32, #tpu.memory_space<vmem>>, vector<1x128xf32>
    %159 = vector.broadcast %158 : vector<1x128xf32> to vector<14x128xf32>
    %160 = arith.mulf %159, %151 : vector<14x128xf32>
    %161 = arith.addf %157, %160 : vector<14x128xf32>
    %c11 = arith.constant 11 : index
    %c0_44 = arith.constant 0 : index
    %162 = vector.load %arg3[%c11, %c0_44] : memref<108x128xf32, #tpu.memory_space<vmem>>, vector<1x128xf32>
    %163 = vector.broadcast %162 : vector<1x128xf32> to vector<14x128xf32>
    %164 = arith.mulf %163, %153 : vector<14x128xf32>
    %165 = arith.addf %161, %164 : vector<14x128xf32>
    %c15 = arith.constant 15 : index
    %c0_45 = arith.constant 0 : index
    %166 = vector.load %arg3[%c15, %c0_45] : memref<108x128xf32, #tpu.memory_space<vmem>>, vector<1x128xf32>
    %167 = vector.broadcast %166 : vector<1x128xf32> to vector<14x128xf32>
    %168 = arith.mulf %167, %149 : vector<14x128xf32>
    %169 = arith.addf %131, %168 : vector<14x128xf32>
    %c19 = arith.constant 19 : index
    %c0_46 = arith.constant 0 : index
    %170 = vector.load %arg3[%c19, %c0_46] : memref<108x128xf32, #tpu.memory_space<vmem>>, vector<1x128xf32>
    %171 = vector.broadcast %170 : vector<1x128xf32> to vector<14x128xf32>
    %172 = arith.mulf %171, %151 : vector<14x128xf32>
    %173 = arith.addf %169, %172 : vector<14x128xf32>
    %c23 = arith.constant 23 : index
    %c0_47 = arith.constant 0 : index
    %174 = vector.load %arg3[%c23, %c0_47] : memref<108x128xf32, #tpu.memory_space<vmem>>, vector<1x128xf32>
    %175 = vector.broadcast %174 : vector<1x128xf32> to vector<14x128xf32>
    %176 = arith.mulf %175, %153 : vector<14x128xf32>
    %177 = arith.addf %173, %176 : vector<14x128xf32>
    %c27 = arith.constant 27 : index
    %c0_48 = arith.constant 0 : index
    %178 = vector.load %arg3[%c27, %c0_48] : memref<108x128xf32, #tpu.memory_space<vmem>>, vector<1x128xf32>
    %179 = vector.broadcast %178 : vector<1x128xf32> to vector<14x128xf32>
    %180 = arith.mulf %179, %149 : vector<14x128xf32>
    %181 = arith.addf %143, %180 : vector<14x128xf32>
    %c31 = arith.constant 31 : index
    %c0_49 = arith.constant 0 : index
    %182 = vector.load %arg3[%c31, %c0_49] : memref<108x128xf32, #tpu.memory_space<vmem>>, vector<1x128xf32>
    %183 = vector.broadcast %182 : vector<1x128xf32> to vector<14x128xf32>
    %184 = arith.mulf %183, %151 : vector<14x128xf32>
    %185 = arith.addf %181, %184 : vector<14x128xf32>
    %c35 = arith.constant 35 : index
    %c0_50 = arith.constant 0 : index
    %186 = vector.load %arg3[%c35, %c0_50] : memref<108x128xf32, #tpu.memory_space<vmem>>, vector<1x128xf32>
    %187 = vector.broadcast %186 : vector<1x128xf32> to vector<14x128xf32>
    %188 = arith.mulf %187, %153 : vector<14x128xf32>
    %189 = arith.addf %185, %188 : vector<14x128xf32>
    %cst_51 = arith.constant 0.000000e+00 : f32
    %190 = vector.broadcast %cst_51 : f32 to vector<8x128xf32>
    %191 = vector.extract_strided_slice %165 {offsets = [2, 0], sizes = [8, 128], strides = [1, 1]} : vector<14x128xf32> to vector<8x128xf32>
    %192 = arith.addf %190, %191 : vector<8x128xf32>
    %193 = vector.extract_strided_slice %177 {offsets = [3, 0], sizes = [8, 128], strides = [1, 1]} : vector<14x128xf32> to vector<8x128xf32>
    %194 = arith.addf %192, %193 : vector<8x128xf32>
    %195 = vector.extract_strided_slice %189 {offsets = [4, 0], sizes = [8, 128], strides = [1, 1]} : vector<14x128xf32> to vector<8x128xf32>
    %196 = arith.addf %194, %195 : vector<8x128xf32>
    %cst_52 = arith.constant 0.000000e+00 : f32
    %197 = vector.broadcast %cst_52 : f32 to vector<8x128xf32>
    %198 = arith.maximumf %196, %197 : vector<8x128xf32>
    %199 = arith.addf %2, %198 : vector<8x128xf32>
    %cst_53 = arith.constant 0.000000e+00 : f32
    %200 = vector.broadcast %cst_53 : f32 to vector<14x128xf32>
    %cst_54 = arith.constant 0.000000e+00 : f32
    %201 = vector.broadcast %cst_54 : f32 to vector<14x128xf32>
    %cst_55 = arith.constant 0.000000e+00 : f32
    %202 = vector.broadcast %cst_55 : f32 to vector<14x128xf32>
    %c0_56 = arith.constant 0 : index
    %c0_57 = arith.constant 0 : index
    %203 = arith.index_cast %1 : i32 to index
    %c0_58 = arith.constant 0 : index
    %204 = vector.load %arg2[%c0_56, %c0_57, %203, %c0_58] : memref<1x4x22x22xbf16, #tpu.memory_space<vmem>>, vector<1x1x14x22xbf16>
    %205 = vector.shape_cast %204 : vector<1x1x14x22xbf16> to vector<14x22xbf16>
    %206 = arith.extf %205 : vector<14x22xbf16> to vector<14x22xf32>
    %207 = vector.extract_strided_slice %206 {offsets = [0, 1], sizes = [14, 16], strides = [1, 1]} : vector<14x22xf32> to vector<14x16xf32>
    %208 = tpu.concatenate %207, %207, %207, %207, %207, %207, %207, %207 in 1 : vector<14x16xf32>, vector<14x16xf32>, vector<14x16xf32>, vector<14x16xf32>, vector<14x16xf32>, vector<14x16xf32>, vector<14x16xf32>, vector<14x16xf32> -> vector<14x128xf32>
    %209 = vector.extract_strided_slice %206 {offsets = [0, 3], sizes = [14, 16], strides = [1, 1]} : vector<14x22xf32> to vector<14x16xf32>
    %210 = tpu.concatenate %209, %209, %209, %209, %209, %209, %209, %209 in 1 : vector<14x16xf32>, vector<14x16xf32>, vector<14x16xf32>, vector<14x16xf32>, vector<14x16xf32>, vector<14x16xf32>, vector<14x16xf32>, vector<14x16xf32> -> vector<14x128xf32>
    %211 = vector.extract_strided_slice %206 {offsets = [0, 5], sizes = [14, 16], strides = [1, 1]} : vector<14x22xf32> to vector<14x16xf32>
    %212 = tpu.concatenate %211, %211, %211, %211, %211, %211, %211, %211 in 1 : vector<14x16xf32>, vector<14x16xf32>, vector<14x16xf32>, vector<14x16xf32>, vector<14x16xf32>, vector<14x16xf32>, vector<14x16xf32>, vector<14x16xf32> -> vector<14x128xf32>
    %c36 = arith.constant 36 : index
    %c0_59 = arith.constant 0 : index
    %213 = vector.load %arg3[%c36, %c0_59] : memref<108x128xf32, #tpu.memory_space<vmem>>, vector<1x128xf32>
    %214 = vector.broadcast %213 : vector<1x128xf32> to vector<14x128xf32>
    %215 = arith.mulf %214, %208 : vector<14x128xf32>
    %216 = arith.addf %200, %215 : vector<14x128xf32>
    %c40 = arith.constant 40 : index
    %c0_60 = arith.constant 0 : index
    %217 = vector.load %arg3[%c40, %c0_60] : memref<108x128xf32, #tpu.memory_space<vmem>>, vector<1x128xf32>
    %218 = vector.broadcast %217 : vector<1x128xf32> to vector<14x128xf32>
    %219 = arith.mulf %218, %210 : vector<14x128xf32>
    %220 = arith.addf %216, %219 : vector<14x128xf32>
    %c44 = arith.constant 44 : index
    %c0_61 = arith.constant 0 : index
    %221 = vector.load %arg3[%c44, %c0_61] : memref<108x128xf32, #tpu.memory_space<vmem>>, vector<1x128xf32>
    %222 = vector.broadcast %221 : vector<1x128xf32> to vector<14x128xf32>
    %223 = arith.mulf %222, %212 : vector<14x128xf32>
    %224 = arith.addf %220, %223 : vector<14x128xf32>
    %c48 = arith.constant 48 : index
    %c0_62 = arith.constant 0 : index
    %225 = vector.load %arg3[%c48, %c0_62] : memref<108x128xf32, #tpu.memory_space<vmem>>, vector<1x128xf32>
    %226 = vector.broadcast %225 : vector<1x128xf32> to vector<14x128xf32>
    %227 = arith.mulf %226, %208 : vector<14x128xf32>
    %228 = arith.addf %201, %227 : vector<14x128xf32>
    %c52 = arith.constant 52 : index
    %c0_63 = arith.constant 0 : index
    %229 = vector.load %arg3[%c52, %c0_63] : memref<108x128xf32, #tpu.memory_space<vmem>>, vector<1x128xf32>
    %230 = vector.broadcast %229 : vector<1x128xf32> to vector<14x128xf32>
    %231 = arith.mulf %230, %210 : vector<14x128xf32>
    %232 = arith.addf %228, %231 : vector<14x128xf32>
    %c56 = arith.constant 56 : index
    %c0_64 = arith.constant 0 : index
    %233 = vector.load %arg3[%c56, %c0_64] : memref<108x128xf32, #tpu.memory_space<vmem>>, vector<1x128xf32>
    %234 = vector.broadcast %233 : vector<1x128xf32> to vector<14x128xf32>
    %235 = arith.mulf %234, %212 : vector<14x128xf32>
    %236 = arith.addf %232, %235 : vector<14x128xf32>
    %c60 = arith.constant 60 : index
    %c0_65 = arith.constant 0 : index
    %237 = vector.load %arg3[%c60, %c0_65] : memref<108x128xf32, #tpu.memory_space<vmem>>, vector<1x128xf32>
    %238 = vector.broadcast %237 : vector<1x128xf32> to vector<14x128xf32>
    %239 = arith.mulf %238, %208 : vector<14x128xf32>
    %240 = arith.addf %202, %239 : vector<14x128xf32>
    %c64 = arith.constant 64 : index
    %c0_66 = arith.constant 0 : index
    %241 = vector.load %arg3[%c64, %c0_66] : memref<108x128xf32, #tpu.memory_space<vmem>>, vector<1x128xf32>
    %242 = vector.broadcast %241 : vector<1x128xf32> to vector<14x128xf32>
    %243 = arith.mulf %242, %210 : vector<14x128xf32>
    %244 = arith.addf %240, %243 : vector<14x128xf32>
    %c68 = arith.constant 68 : index
    %c0_67 = arith.constant 0 : index
    %245 = vector.load %arg3[%c68, %c0_67] : memref<108x128xf32, #tpu.memory_space<vmem>>, vector<1x128xf32>
    %246 = vector.broadcast %245 : vector<1x128xf32> to vector<14x128xf32>
    %247 = arith.mulf %246, %212 : vector<14x128xf32>
    %248 = arith.addf %244, %247 : vector<14x128xf32>
    %c0_68 = arith.constant 0 : index
    %c1_69 = arith.constant 1 : index
    %249 = arith.index_cast %1 : i32 to index
    %c0_70 = arith.constant 0 : index
    %250 = vector.load %arg2[%c0_68, %c1_69, %249, %c0_70] : memref<1x4x22x22xbf16, #tpu.memory_space<vmem>>, vector<1x1x14x22xbf16>
    %251 = vector.shape_cast %250 : vector<1x1x14x22xbf16> to vector<14x22xbf16>
    %252 = arith.extf %251 : vector<14x22xbf16> to vector<14x22xf32>
    %253 = vector.extract_strided_slice %252 {offsets = [0, 1], sizes = [14, 16], strides = [1, 1]} : vector<14x22xf32> to vector<14x16xf32>
    %254 = tpu.concatenate %253, %253, %253, %253, %253, %253, %253, %253 in 1 : vector<14x16xf32>, vector<14x16xf32>, vector<14x16xf32>, vector<14x16xf32>, vector<14x16xf32>, vector<14x16xf32>, vector<14x16xf32>, vector<14x16xf32> -> vector<14x128xf32>
    %255 = vector.extract_strided_slice %252 {offsets = [0, 3], sizes = [14, 16], strides = [1, 1]} : vector<14x22xf32> to vector<14x16xf32>
    %256 = tpu.concatenate %255, %255, %255, %255, %255, %255, %255, %255 in 1 : vector<14x16xf32>, vector<14x16xf32>, vector<14x16xf32>, vector<14x16xf32>, vector<14x16xf32>, vector<14x16xf32>, vector<14x16xf32>, vector<14x16xf32> -> vector<14x128xf32>
    %257 = vector.extract_strided_slice %252 {offsets = [0, 5], sizes = [14, 16], strides = [1, 1]} : vector<14x22xf32> to vector<14x16xf32>
    %258 = tpu.concatenate %257, %257, %257, %257, %257, %257, %257, %257 in 1 : vector<14x16xf32>, vector<14x16xf32>, vector<14x16xf32>, vector<14x16xf32>, vector<14x16xf32>, vector<14x16xf32>, vector<14x16xf32>, vector<14x16xf32> -> vector<14x128xf32>
    %c37 = arith.constant 37 : index
    %c0_71 = arith.constant 0 : index
    %259 = vector.load %arg3[%c37, %c0_71] : memref<108x128xf32, #tpu.memory_space<vmem>>, vector<1x128xf32>
    %260 = vector.broadcast %259 : vector<1x128xf32> to vector<14x128xf32>
    %261 = arith.mulf %260, %254 : vector<14x128xf32>
    %262 = arith.addf %224, %261 : vector<14x128xf32>
    %c41 = arith.constant 41 : index
    %c0_72 = arith.constant 0 : index
    %263 = vector.load %arg3[%c41, %c0_72] : memref<108x128xf32, #tpu.memory_space<vmem>>, vector<1x128xf32>
    %264 = vector.broadcast %263 : vector<1x128xf32> to vector<14x128xf32>
    %265 = arith.mulf %264, %256 : vector<14x128xf32>
    %266 = arith.addf %262, %265 : vector<14x128xf32>
    %c45 = arith.constant 45 : index
    %c0_73 = arith.constant 0 : index
    %267 = vector.load %arg3[%c45, %c0_73] : memref<108x128xf32, #tpu.memory_space<vmem>>, vector<1x128xf32>
    %268 = vector.broadcast %267 : vector<1x128xf32> to vector<14x128xf32>
    %269 = arith.mulf %268, %258 : vector<14x128xf32>
    %270 = arith.addf %266, %269 : vector<14x128xf32>
    %c49 = arith.constant 49 : index
    %c0_74 = arith.constant 0 : index
    %271 = vector.load %arg3[%c49, %c0_74] : memref<108x128xf32, #tpu.memory_space<vmem>>, vector<1x128xf32>
    %272 = vector.broadcast %271 : vector<1x128xf32> to vector<14x128xf32>
    %273 = arith.mulf %272, %254 : vector<14x128xf32>
    %274 = arith.addf %236, %273 : vector<14x128xf32>
    %c53 = arith.constant 53 : index
    %c0_75 = arith.constant 0 : index
    %275 = vector.load %arg3[%c53, %c0_75] : memref<108x128xf32, #tpu.memory_space<vmem>>, vector<1x128xf32>
    %276 = vector.broadcast %275 : vector<1x128xf32> to vector<14x128xf32>
    %277 = arith.mulf %276, %256 : vector<14x128xf32>
    %278 = arith.addf %274, %277 : vector<14x128xf32>
    %c57 = arith.constant 57 : index
    %c0_76 = arith.constant 0 : index
    %279 = vector.load %arg3[%c57, %c0_76] : memref<108x128xf32, #tpu.memory_space<vmem>>, vector<1x128xf32>
    %280 = vector.broadcast %279 : vector<1x128xf32> to vector<14x128xf32>
    %281 = arith.mulf %280, %258 : vector<14x128xf32>
    %282 = arith.addf %278, %281 : vector<14x128xf32>
    %c61 = arith.constant 61 : index
    %c0_77 = arith.constant 0 : index
    %283 = vector.load %arg3[%c61, %c0_77] : memref<108x128xf32, #tpu.memory_space<vmem>>, vector<1x128xf32>
    %284 = vector.broadcast %283 : vector<1x128xf32> to vector<14x128xf32>
    %285 = arith.mulf %284, %254 : vector<14x128xf32>
    %286 = arith.addf %248, %285 : vector<14x128xf32>
    %c65 = arith.constant 65 : index
    %c0_78 = arith.constant 0 : index
    %287 = vector.load %arg3[%c65, %c0_78] : memref<108x128xf32, #tpu.memory_space<vmem>>, vector<1x128xf32>
    %288 = vector.broadcast %287 : vector<1x128xf32> to vector<14x128xf32>
    %289 = arith.mulf %288, %256 : vector<14x128xf32>
    %290 = arith.addf %286, %289 : vector<14x128xf32>
    %c69 = arith.constant 69 : index
    %c0_79 = arith.constant 0 : index
    %291 = vector.load %arg3[%c69, %c0_79] : memref<108x128xf32, #tpu.memory_space<vmem>>, vector<1x128xf32>
    %292 = vector.broadcast %291 : vector<1x128xf32> to vector<14x128xf32>
    %293 = arith.mulf %292, %258 : vector<14x128xf32>
    %294 = arith.addf %290, %293 : vector<14x128xf32>
    %c0_80 = arith.constant 0 : index
    %c2_81 = arith.constant 2 : index
    %295 = arith.index_cast %1 : i32 to index
    %c0_82 = arith.constant 0 : index
    %296 = vector.load %arg2[%c0_80, %c2_81, %295, %c0_82] : memref<1x4x22x22xbf16, #tpu.memory_space<vmem>>, vector<1x1x14x22xbf16>
    %297 = vector.shape_cast %296 : vector<1x1x14x22xbf16> to vector<14x22xbf16>
    %298 = arith.extf %297 : vector<14x22xbf16> to vector<14x22xf32>
    %299 = vector.extract_strided_slice %298 {offsets = [0, 1], sizes = [14, 16], strides = [1, 1]} : vector<14x22xf32> to vector<14x16xf32>
    %300 = tpu.concatenate %299, %299, %299, %299, %299, %299, %299, %299 in 1 : vector<14x16xf32>, vector<14x16xf32>, vector<14x16xf32>, vector<14x16xf32>, vector<14x16xf32>, vector<14x16xf32>, vector<14x16xf32>, vector<14x16xf32> -> vector<14x128xf32>
    %301 = vector.extract_strided_slice %298 {offsets = [0, 3], sizes = [14, 16], strides = [1, 1]} : vector<14x22xf32> to vector<14x16xf32>
    %302 = tpu.concatenate %301, %301, %301, %301, %301, %301, %301, %301 in 1 : vector<14x16xf32>, vector<14x16xf32>, vector<14x16xf32>, vector<14x16xf32>, vector<14x16xf32>, vector<14x16xf32>, vector<14x16xf32>, vector<14x16xf32> -> vector<14x128xf32>
    %303 = vector.extract_strided_slice %298 {offsets = [0, 5], sizes = [14, 16], strides = [1, 1]} : vector<14x22xf32> to vector<14x16xf32>
    %304 = tpu.concatenate %303, %303, %303, %303, %303, %303, %303, %303 in 1 : vector<14x16xf32>, vector<14x16xf32>, vector<14x16xf32>, vector<14x16xf32>, vector<14x16xf32>, vector<14x16xf32>, vector<14x16xf32>, vector<14x16xf32> -> vector<14x128xf32>
    %c38 = arith.constant 38 : index
    %c0_83 = arith.constant 0 : index
    %305 = vector.load %arg3[%c38, %c0_83] : memref<108x128xf32, #tpu.memory_space<vmem>>, vector<1x128xf32>
    %306 = vector.broadcast %305 : vector<1x128xf32> to vector<14x128xf32>
    %307 = arith.mulf %306, %300 : vector<14x128xf32>
    %308 = arith.addf %270, %307 : vector<14x128xf32>
    %c42 = arith.constant 42 : index
    %c0_84 = arith.constant 0 : index
    %309 = vector.load %arg3[%c42, %c0_84] : memref<108x128xf32, #tpu.memory_space<vmem>>, vector<1x128xf32>
    %310 = vector.broadcast %309 : vector<1x128xf32> to vector<14x128xf32>
    %311 = arith.mulf %310, %302 : vector<14x128xf32>
    %312 = arith.addf %308, %311 : vector<14x128xf32>
    %c46 = arith.constant 46 : index
    %c0_85 = arith.constant 0 : index
    %313 = vector.load %arg3[%c46, %c0_85] : memref<108x128xf32, #tpu.memory_space<vmem>>, vector<1x128xf32>
    %314 = vector.broadcast %313 : vector<1x128xf32> to vector<14x128xf32>
    %315 = arith.mulf %314, %304 : vector<14x128xf32>
    %316 = arith.addf %312, %315 : vector<14x128xf32>
    %c50 = arith.constant 50 : index
    %c0_86 = arith.constant 0 : index
    %317 = vector.load %arg3[%c50, %c0_86] : memref<108x128xf32, #tpu.memory_space<vmem>>, vector<1x128xf32>
    %318 = vector.broadcast %317 : vector<1x128xf32> to vector<14x128xf32>
    %319 = arith.mulf %318, %300 : vector<14x128xf32>
    %320 = arith.addf %282, %319 : vector<14x128xf32>
    %c54 = arith.constant 54 : index
    %c0_87 = arith.constant 0 : index
    %321 = vector.load %arg3[%c54, %c0_87] : memref<108x128xf32, #tpu.memory_space<vmem>>, vector<1x128xf32>
    %322 = vector.broadcast %321 : vector<1x128xf32> to vector<14x128xf32>
    %323 = arith.mulf %322, %302 : vector<14x128xf32>
    %324 = arith.addf %320, %323 : vector<14x128xf32>
    %c58 = arith.constant 58 : index
    %c0_88 = arith.constant 0 : index
    %325 = vector.load %arg3[%c58, %c0_88] : memref<108x128xf32, #tpu.memory_space<vmem>>, vector<1x128xf32>
    %326 = vector.broadcast %325 : vector<1x128xf32> to vector<14x128xf32>
    %327 = arith.mulf %326, %304 : vector<14x128xf32>
    %328 = arith.addf %324, %327 : vector<14x128xf32>
    %c62 = arith.constant 62 : index
    %c0_89 = arith.constant 0 : index
    %329 = vector.load %arg3[%c62, %c0_89] : memref<108x128xf32, #tpu.memory_space<vmem>>, vector<1x128xf32>
    %330 = vector.broadcast %329 : vector<1x128xf32> to vector<14x128xf32>
    %331 = arith.mulf %330, %300 : vector<14x128xf32>
    %332 = arith.addf %294, %331 : vector<14x128xf32>
    %c66 = arith.constant 66 : index
    %c0_90 = arith.constant 0 : index
    %333 = vector.load %arg3[%c66, %c0_90] : memref<108x128xf32, #tpu.memory_space<vmem>>, vector<1x128xf32>
    %334 = vector.broadcast %333 : vector<1x128xf32> to vector<14x128xf32>
    %335 = arith.mulf %334, %302 : vector<14x128xf32>
    %336 = arith.addf %332, %335 : vector<14x128xf32>
    %c70 = arith.constant 70 : index
    %c0_91 = arith.constant 0 : index
    %337 = vector.load %arg3[%c70, %c0_91] : memref<108x128xf32, #tpu.memory_space<vmem>>, vector<1x128xf32>
    %338 = vector.broadcast %337 : vector<1x128xf32> to vector<14x128xf32>
    %339 = arith.mulf %338, %304 : vector<14x128xf32>
    %340 = arith.addf %336, %339 : vector<14x128xf32>
    %c0_92 = arith.constant 0 : index
    %c3_93 = arith.constant 3 : index
    %341 = arith.index_cast %1 : i32 to index
    %c0_94 = arith.constant 0 : index
    %342 = vector.load %arg2[%c0_92, %c3_93, %341, %c0_94] : memref<1x4x22x22xbf16, #tpu.memory_space<vmem>>, vector<1x1x14x22xbf16>
    %343 = vector.shape_cast %342 : vector<1x1x14x22xbf16> to vector<14x22xbf16>
    %344 = arith.extf %343 : vector<14x22xbf16> to vector<14x22xf32>
    %345 = vector.extract_strided_slice %344 {offsets = [0, 1], sizes = [14, 16], strides = [1, 1]} : vector<14x22xf32> to vector<14x16xf32>
    %346 = tpu.concatenate %345, %345, %345, %345, %345, %345, %345, %345 in 1 : vector<14x16xf32>, vector<14x16xf32>, vector<14x16xf32>, vector<14x16xf32>, vector<14x16xf32>, vector<14x16xf32>, vector<14x16xf32>, vector<14x16xf32> -> vector<14x128xf32>
    %347 = vector.extract_strided_slice %344 {offsets = [0, 3], sizes = [14, 16], strides = [1, 1]} : vector<14x22xf32> to vector<14x16xf32>
    %348 = tpu.concatenate %347, %347, %347, %347, %347, %347, %347, %347 in 1 : vector<14x16xf32>, vector<14x16xf32>, vector<14x16xf32>, vector<14x16xf32>, vector<14x16xf32>, vector<14x16xf32>, vector<14x16xf32>, vector<14x16xf32> -> vector<14x128xf32>
    %349 = vector.extract_strided_slice %344 {offsets = [0, 5], sizes = [14, 16], strides = [1, 1]} : vector<14x22xf32> to vector<14x16xf32>
    %350 = tpu.concatenate %349, %349, %349, %349, %349, %349, %349, %349 in 1 : vector<14x16xf32>, vector<14x16xf32>, vector<14x16xf32>, vector<14x16xf32>, vector<14x16xf32>, vector<14x16xf32>, vector<14x16xf32>, vector<14x16xf32> -> vector<14x128xf32>
    %c39 = arith.constant 39 : index
    %c0_95 = arith.constant 0 : index
    %351 = vector.load %arg3[%c39, %c0_95] : memref<108x128xf32, #tpu.memory_space<vmem>>, vector<1x128xf32>
    %352 = vector.broadcast %351 : vector<1x128xf32> to vector<14x128xf32>
    %353 = arith.mulf %352, %346 : vector<14x128xf32>
    %354 = arith.addf %316, %353 : vector<14x128xf32>
    %c43 = arith.constant 43 : index
    %c0_96 = arith.constant 0 : index
    %355 = vector.load %arg3[%c43, %c0_96] : memref<108x128xf32, #tpu.memory_space<vmem>>, vector<1x128xf32>
    %356 = vector.broadcast %355 : vector<1x128xf32> to vector<14x128xf32>
    %357 = arith.mulf %356, %348 : vector<14x128xf32>
    %358 = arith.addf %354, %357 : vector<14x128xf32>
    %c47 = arith.constant 47 : index
    %c0_97 = arith.constant 0 : index
    %359 = vector.load %arg3[%c47, %c0_97] : memref<108x128xf32, #tpu.memory_space<vmem>>, vector<1x128xf32>
    %360 = vector.broadcast %359 : vector<1x128xf32> to vector<14x128xf32>
    %361 = arith.mulf %360, %350 : vector<14x128xf32>
    %362 = arith.addf %358, %361 : vector<14x128xf32>
    %c51 = arith.constant 51 : index
    %c0_98 = arith.constant 0 : index
    %363 = vector.load %arg3[%c51, %c0_98] : memref<108x128xf32, #tpu.memory_space<vmem>>, vector<1x128xf32>
    %364 = vector.broadcast %363 : vector<1x128xf32> to vector<14x128xf32>
    %365 = arith.mulf %364, %346 : vector<14x128xf32>
    %366 = arith.addf %328, %365 : vector<14x128xf32>
    %c55 = arith.constant 55 : index
    %c0_99 = arith.constant 0 : index
    %367 = vector.load %arg3[%c55, %c0_99] : memref<108x128xf32, #tpu.memory_space<vmem>>, vector<1x128xf32>
    %368 = vector.broadcast %367 : vector<1x128xf32> to vector<14x128xf32>
    %369 = arith.mulf %368, %348 : vector<14x128xf32>
    %370 = arith.addf %366, %369 : vector<14x128xf32>
    %c59 = arith.constant 59 : index
    %c0_100 = arith.constant 0 : index
    %371 = vector.load %arg3[%c59, %c0_100] : memref<108x128xf32, #tpu.memory_space<vmem>>, vector<1x128xf32>
    %372 = vector.broadcast %371 : vector<1x128xf32> to vector<14x128xf32>
    %373 = arith.mulf %372, %350 : vector<14x128xf32>
    %374 = arith.addf %370, %373 : vector<14x128xf32>
    %c63 = arith.constant 63 : index
    %c0_101 = arith.constant 0 : index
    %375 = vector.load %arg3[%c63, %c0_101] : memref<108x128xf32, #tpu.memory_space<vmem>>, vector<1x128xf32>
    %376 = vector.broadcast %375 : vector<1x128xf32> to vector<14x128xf32>
    %377 = arith.mulf %376, %346 : vector<14x128xf32>
    %378 = arith.addf %340, %377 : vector<14x128xf32>
    %c67 = arith.constant 67 : index
    %c0_102 = arith.constant 0 : index
    %379 = vector.load %arg3[%c67, %c0_102] : memref<108x128xf32, #tpu.memory_space<vmem>>, vector<1x128xf32>
    %380 = vector.broadcast %379 : vector<1x128xf32> to vector<14x128xf32>
    %381 = arith.mulf %380, %348 : vector<14x128xf32>
    %382 = arith.addf %378, %381 : vector<14x128xf32>
    %c71 = arith.constant 71 : index
    %c0_103 = arith.constant 0 : index
    %383 = vector.load %arg3[%c71, %c0_103] : memref<108x128xf32, #tpu.memory_space<vmem>>, vector<1x128xf32>
    %384 = vector.broadcast %383 : vector<1x128xf32> to vector<14x128xf32>
    %385 = arith.mulf %384, %350 : vector<14x128xf32>
    %386 = arith.addf %382, %385 : vector<14x128xf32>
    %cst_104 = arith.constant 0.000000e+00 : f32
    %387 = vector.broadcast %cst_104 : f32 to vector<8x128xf32>
    %388 = vector.extract_strided_slice %362 {offsets = [1, 0], sizes = [8, 128], strides = [1, 1]} : vector<14x128xf32> to vector<8x128xf32>
    %389 = arith.addf %387, %388 : vector<8x128xf32>
    %390 = vector.extract_strided_slice %374 {offsets = [3, 0], sizes = [8, 128], strides = [1, 1]} : vector<14x128xf32> to vector<8x128xf32>
    %391 = arith.addf %389, %390 : vector<8x128xf32>
    %392 = vector.extract_strided_slice %386 {offsets = [5, 0], sizes = [8, 128], strides = [1, 1]} : vector<14x128xf32> to vector<8x128xf32>
    %393 = arith.addf %391, %392 : vector<8x128xf32>
    %cst_105 = arith.constant 0.000000e+00 : f32
    %394 = vector.broadcast %cst_105 : f32 to vector<8x128xf32>
    %395 = arith.maximumf %393, %394 : vector<8x128xf32>
    %396 = arith.addf %199, %395 : vector<8x128xf32>
    %cst_106 = arith.constant 0.000000e+00 : f32
    %397 = vector.broadcast %cst_106 : f32 to vector<14x128xf32>
    %cst_107 = arith.constant 0.000000e+00 : f32
    %398 = vector.broadcast %cst_107 : f32 to vector<14x128xf32>
    %cst_108 = arith.constant 0.000000e+00 : f32
    %399 = vector.broadcast %cst_108 : f32 to vector<14x128xf32>
    %c0_109 = arith.constant 0 : index
    %c0_110 = arith.constant 0 : index
    %400 = arith.index_cast %1 : i32 to index
    %c0_111 = arith.constant 0 : index
    %401 = vector.load %arg2[%c0_109, %c0_110, %400, %c0_111] : memref<1x4x22x22xbf16, #tpu.memory_space<vmem>>, vector<1x1x14x22xbf16>
    %402 = vector.shape_cast %401 : vector<1x1x14x22xbf16> to vector<14x22xbf16>
    %403 = arith.extf %402 : vector<14x22xbf16> to vector<14x22xf32>
    %404 = vector.extract_strided_slice %403 {offsets = [0, 0], sizes = [14, 16], strides = [1, 1]} : vector<14x22xf32> to vector<14x16xf32>
    %405 = tpu.concatenate %404, %404, %404, %404, %404, %404, %404, %404 in 1 : vector<14x16xf32>, vector<14x16xf32>, vector<14x16xf32>, vector<14x16xf32>, vector<14x16xf32>, vector<14x16xf32>, vector<14x16xf32>, vector<14x16xf32> -> vector<14x128xf32>
    %406 = vector.extract_strided_slice %403 {offsets = [0, 3], sizes = [14, 16], strides = [1, 1]} : vector<14x22xf32> to vector<14x16xf32>
    %407 = tpu.concatenate %406, %406, %406, %406, %406, %406, %406, %406 in 1 : vector<14x16xf32>, vector<14x16xf32>, vector<14x16xf32>, vector<14x16xf32>, vector<14x16xf32>, vector<14x16xf32>, vector<14x16xf32>, vector<14x16xf32> -> vector<14x128xf32>
    %408 = vector.extract_strided_slice %403 {offsets = [0, 6], sizes = [14, 16], strides = [1, 1]} : vector<14x22xf32> to vector<14x16xf32>
    %409 = tpu.concatenate %408, %408, %408, %408, %408, %408, %408, %408 in 1 : vector<14x16xf32>, vector<14x16xf32>, vector<14x16xf32>, vector<14x16xf32>, vector<14x16xf32>, vector<14x16xf32>, vector<14x16xf32>, vector<14x16xf32> -> vector<14x128xf32>
    %c72 = arith.constant 72 : index
    %c0_112 = arith.constant 0 : index
    %410 = vector.load %arg3[%c72, %c0_112] : memref<108x128xf32, #tpu.memory_space<vmem>>, vector<1x128xf32>
    %411 = vector.broadcast %410 : vector<1x128xf32> to vector<14x128xf32>
    %412 = arith.mulf %411, %405 : vector<14x128xf32>
    %413 = arith.addf %397, %412 : vector<14x128xf32>
    %c76 = arith.constant 76 : index
    %c0_113 = arith.constant 0 : index
    %414 = vector.load %arg3[%c76, %c0_113] : memref<108x128xf32, #tpu.memory_space<vmem>>, vector<1x128xf32>
    %415 = vector.broadcast %414 : vector<1x128xf32> to vector<14x128xf32>
    %416 = arith.mulf %415, %407 : vector<14x128xf32>
    %417 = arith.addf %413, %416 : vector<14x128xf32>
    %c80 = arith.constant 80 : index
    %c0_114 = arith.constant 0 : index
    %418 = vector.load %arg3[%c80, %c0_114] : memref<108x128xf32, #tpu.memory_space<vmem>>, vector<1x128xf32>
    %419 = vector.broadcast %418 : vector<1x128xf32> to vector<14x128xf32>
    %420 = arith.mulf %419, %409 : vector<14x128xf32>
    %421 = arith.addf %417, %420 : vector<14x128xf32>
    %c84 = arith.constant 84 : index
    %c0_115 = arith.constant 0 : index
    %422 = vector.load %arg3[%c84, %c0_115] : memref<108x128xf32, #tpu.memory_space<vmem>>, vector<1x128xf32>
    %423 = vector.broadcast %422 : vector<1x128xf32> to vector<14x128xf32>
    %424 = arith.mulf %423, %405 : vector<14x128xf32>
    %425 = arith.addf %398, %424 : vector<14x128xf32>
    %c88 = arith.constant 88 : index
    %c0_116 = arith.constant 0 : index
    %426 = vector.load %arg3[%c88, %c0_116] : memref<108x128xf32, #tpu.memory_space<vmem>>, vector<1x128xf32>
    %427 = vector.broadcast %426 : vector<1x128xf32> to vector<14x128xf32>
    %428 = arith.mulf %427, %407 : vector<14x128xf32>
    %429 = arith.addf %425, %428 : vector<14x128xf32>
    %c92 = arith.constant 92 : index
    %c0_117 = arith.constant 0 : index
    %430 = vector.load %arg3[%c92, %c0_117] : memref<108x128xf32, #tpu.memory_space<vmem>>, vector<1x128xf32>
    %431 = vector.broadcast %430 : vector<1x128xf32> to vector<14x128xf32>
    %432 = arith.mulf %431, %409 : vector<14x128xf32>
    %433 = arith.addf %429, %432 : vector<14x128xf32>
    %c96 = arith.constant 96 : index
    %c0_118 = arith.constant 0 : index
    %434 = vector.load %arg3[%c96, %c0_118] : memref<108x128xf32, #tpu.memory_space<vmem>>, vector<1x128xf32>
    %435 = vector.broadcast %434 : vector<1x128xf32> to vector<14x128xf32>
    %436 = arith.mulf %435, %405 : vector<14x128xf32>
    %437 = arith.addf %399, %436 : vector<14x128xf32>
    %c100 = arith.constant 100 : index
    %c0_119 = arith.constant 0 : index
    %438 = vector.load %arg3[%c100, %c0_119] : memref<108x128xf32, #tpu.memory_space<vmem>>, vector<1x128xf32>
    %439 = vector.broadcast %438 : vector<1x128xf32> to vector<14x128xf32>
    %440 = arith.mulf %439, %407 : vector<14x128xf32>
    %441 = arith.addf %437, %440 : vector<14x128xf32>
    %c104 = arith.constant 104 : index
    %c0_120 = arith.constant 0 : index
    %442 = vector.load %arg3[%c104, %c0_120] : memref<108x128xf32, #tpu.memory_space<vmem>>, vector<1x128xf32>
    %443 = vector.broadcast %442 : vector<1x128xf32> to vector<14x128xf32>
    %444 = arith.mulf %443, %409 : vector<14x128xf32>
    %445 = arith.addf %441, %444 : vector<14x128xf32>
    %c0_121 = arith.constant 0 : index
    %c1_122 = arith.constant 1 : index
    %446 = arith.index_cast %1 : i32 to index
    %c0_123 = arith.constant 0 : index
    %447 = vector.load %arg2[%c0_121, %c1_122, %446, %c0_123] : memref<1x4x22x22xbf16, #tpu.memory_space<vmem>>, vector<1x1x14x22xbf16>
    %448 = vector.shape_cast %447 : vector<1x1x14x22xbf16> to vector<14x22xbf16>
    %449 = arith.extf %448 : vector<14x22xbf16> to vector<14x22xf32>
    %450 = vector.extract_strided_slice %449 {offsets = [0, 0], sizes = [14, 16], strides = [1, 1]} : vector<14x22xf32> to vector<14x16xf32>
    %451 = tpu.concatenate %450, %450, %450, %450, %450, %450, %450, %450 in 1 : vector<14x16xf32>, vector<14x16xf32>, vector<14x16xf32>, vector<14x16xf32>, vector<14x16xf32>, vector<14x16xf32>, vector<14x16xf32>, vector<14x16xf32> -> vector<14x128xf32>
    %452 = vector.extract_strided_slice %449 {offsets = [0, 3], sizes = [14, 16], strides = [1, 1]} : vector<14x22xf32> to vector<14x16xf32>
    %453 = tpu.concatenate %452, %452, %452, %452, %452, %452, %452, %452 in 1 : vector<14x16xf32>, vector<14x16xf32>, vector<14x16xf32>, vector<14x16xf32>, vector<14x16xf32>, vector<14x16xf32>, vector<14x16xf32>, vector<14x16xf32> -> vector<14x128xf32>
    %454 = vector.extract_strided_slice %449 {offsets = [0, 6], sizes = [14, 16], strides = [1, 1]} : vector<14x22xf32> to vector<14x16xf32>
    %455 = tpu.concatenate %454, %454, %454, %454, %454, %454, %454, %454 in 1 : vector<14x16xf32>, vector<14x16xf32>, vector<14x16xf32>, vector<14x16xf32>, vector<14x16xf32>, vector<14x16xf32>, vector<14x16xf32>, vector<14x16xf32> -> vector<14x128xf32>
    %c73 = arith.constant 73 : index
    %c0_124 = arith.constant 0 : index
    %456 = vector.load %arg3[%c73, %c0_124] : memref<108x128xf32, #tpu.memory_space<vmem>>, vector<1x128xf32>
    %457 = vector.broadcast %456 : vector<1x128xf32> to vector<14x128xf32>
    %458 = arith.mulf %457, %451 : vector<14x128xf32>
    %459 = arith.addf %421, %458 : vector<14x128xf32>
    %c77 = arith.constant 77 : index
    %c0_125 = arith.constant 0 : index
    %460 = vector.load %arg3[%c77, %c0_125] : memref<108x128xf32, #tpu.memory_space<vmem>>, vector<1x128xf32>
    %461 = vector.broadcast %460 : vector<1x128xf32> to vector<14x128xf32>
    %462 = arith.mulf %461, %453 : vector<14x128xf32>
    %463 = arith.addf %459, %462 : vector<14x128xf32>
    %c81 = arith.constant 81 : index
    %c0_126 = arith.constant 0 : index
    %464 = vector.load %arg3[%c81, %c0_126] : memref<108x128xf32, #tpu.memory_space<vmem>>, vector<1x128xf32>
    %465 = vector.broadcast %464 : vector<1x128xf32> to vector<14x128xf32>
    %466 = arith.mulf %465, %455 : vector<14x128xf32>
    %467 = arith.addf %463, %466 : vector<14x128xf32>
    %c85 = arith.constant 85 : index
    %c0_127 = arith.constant 0 : index
    %468 = vector.load %arg3[%c85, %c0_127] : memref<108x128xf32, #tpu.memory_space<vmem>>, vector<1x128xf32>
    %469 = vector.broadcast %468 : vector<1x128xf32> to vector<14x128xf32>
    %470 = arith.mulf %469, %451 : vector<14x128xf32>
    %471 = arith.addf %433, %470 : vector<14x128xf32>
    %c89 = arith.constant 89 : index
    %c0_128 = arith.constant 0 : index
    %472 = vector.load %arg3[%c89, %c0_128] : memref<108x128xf32, #tpu.memory_space<vmem>>, vector<1x128xf32>
    %473 = vector.broadcast %472 : vector<1x128xf32> to vector<14x128xf32>
    %474 = arith.mulf %473, %453 : vector<14x128xf32>
    %475 = arith.addf %471, %474 : vector<14x128xf32>
    %c93 = arith.constant 93 : index
    %c0_129 = arith.constant 0 : index
    %476 = vector.load %arg3[%c93, %c0_129] : memref<108x128xf32, #tpu.memory_space<vmem>>, vector<1x128xf32>
    %477 = vector.broadcast %476 : vector<1x128xf32> to vector<14x128xf32>
    %478 = arith.mulf %477, %455 : vector<14x128xf32>
    %479 = arith.addf %475, %478 : vector<14x128xf32>
    %c97 = arith.constant 97 : index
    %c0_130 = arith.constant 0 : index
    %480 = vector.load %arg3[%c97, %c0_130] : memref<108x128xf32, #tpu.memory_space<vmem>>, vector<1x128xf32>
    %481 = vector.broadcast %480 : vector<1x128xf32> to vector<14x128xf32>
    %482 = arith.mulf %481, %451 : vector<14x128xf32>
    %483 = arith.addf %445, %482 : vector<14x128xf32>
    %c101 = arith.constant 101 : index
    %c0_131 = arith.constant 0 : index
    %484 = vector.load %arg3[%c101, %c0_131] : memref<108x128xf32, #tpu.memory_space<vmem>>, vector<1x128xf32>
    %485 = vector.broadcast %484 : vector<1x128xf32> to vector<14x128xf32>
    %486 = arith.mulf %485, %453 : vector<14x128xf32>
    %487 = arith.addf %483, %486 : vector<14x128xf32>
    %c105 = arith.constant 105 : index
    %c0_132 = arith.constant 0 : index
    %488 = vector.load %arg3[%c105, %c0_132] : memref<108x128xf32, #tpu.memory_space<vmem>>, vector<1x128xf32>
    %489 = vector.broadcast %488 : vector<1x128xf32> to vector<14x128xf32>
    %490 = arith.mulf %489, %455 : vector<14x128xf32>
    %491 = arith.addf %487, %490 : vector<14x128xf32>
    %c0_133 = arith.constant 0 : index
    %c2_134 = arith.constant 2 : index
    %492 = arith.index_cast %1 : i32 to index
    %c0_135 = arith.constant 0 : index
    %493 = vector.load %arg2[%c0_133, %c2_134, %492, %c0_135] : memref<1x4x22x22xbf16, #tpu.memory_space<vmem>>, vector<1x1x14x22xbf16>
    %494 = vector.shape_cast %493 : vector<1x1x14x22xbf16> to vector<14x22xbf16>
    %495 = arith.extf %494 : vector<14x22xbf16> to vector<14x22xf32>
    %496 = vector.extract_strided_slice %495 {offsets = [0, 0], sizes = [14, 16], strides = [1, 1]} : vector<14x22xf32> to vector<14x16xf32>
    %497 = tpu.concatenate %496, %496, %496, %496, %496, %496, %496, %496 in 1 : vector<14x16xf32>, vector<14x16xf32>, vector<14x16xf32>, vector<14x16xf32>, vector<14x16xf32>, vector<14x16xf32>, vector<14x16xf32>, vector<14x16xf32> -> vector<14x128xf32>
    %498 = vector.extract_strided_slice %495 {offsets = [0, 3], sizes = [14, 16], strides = [1, 1]} : vector<14x22xf32> to vector<14x16xf32>
    %499 = tpu.concatenate %498, %498, %498, %498, %498, %498, %498, %498 in 1 : vector<14x16xf32>, vector<14x16xf32>, vector<14x16xf32>, vector<14x16xf32>, vector<14x16xf32>, vector<14x16xf32>, vector<14x16xf32>, vector<14x16xf32> -> vector<14x128xf32>
    %500 = vector.extract_strided_slice %495 {offsets = [0, 6], sizes = [14, 16], strides = [1, 1]} : vector<14x22xf32> to vector<14x16xf32>
    %501 = tpu.concatenate %500, %500, %500, %500, %500, %500, %500, %500 in 1 : vector<14x16xf32>, vector<14x16xf32>, vector<14x16xf32>, vector<14x16xf32>, vector<14x16xf32>, vector<14x16xf32>, vector<14x16xf32>, vector<14x16xf32> -> vector<14x128xf32>
    %c74 = arith.constant 74 : index
    %c0_136 = arith.constant 0 : index
    %502 = vector.load %arg3[%c74, %c0_136] : memref<108x128xf32, #tpu.memory_space<vmem>>, vector<1x128xf32>
    %503 = vector.broadcast %502 : vector<1x128xf32> to vector<14x128xf32>
    %504 = arith.mulf %503, %497 : vector<14x128xf32>
    %505 = arith.addf %467, %504 : vector<14x128xf32>
    %c78 = arith.constant 78 : index
    %c0_137 = arith.constant 0 : index
    %506 = vector.load %arg3[%c78, %c0_137] : memref<108x128xf32, #tpu.memory_space<vmem>>, vector<1x128xf32>
    %507 = vector.broadcast %506 : vector<1x128xf32> to vector<14x128xf32>
    %508 = arith.mulf %507, %499 : vector<14x128xf32>
    %509 = arith.addf %505, %508 : vector<14x128xf32>
    %c82 = arith.constant 82 : index
    %c0_138 = arith.constant 0 : index
    %510 = vector.load %arg3[%c82, %c0_138] : memref<108x128xf32, #tpu.memory_space<vmem>>, vector<1x128xf32>
    %511 = vector.broadcast %510 : vector<1x128xf32> to vector<14x128xf32>
    %512 = arith.mulf %511, %501 : vector<14x128xf32>
    %513 = arith.addf %509, %512 : vector<14x128xf32>
    %c86 = arith.constant 86 : index
    %c0_139 = arith.constant 0 : index
    %514 = vector.load %arg3[%c86, %c0_139] : memref<108x128xf32, #tpu.memory_space<vmem>>, vector<1x128xf32>
    %515 = vector.broadcast %514 : vector<1x128xf32> to vector<14x128xf32>
    %516 = arith.mulf %515, %497 : vector<14x128xf32>
    %517 = arith.addf %479, %516 : vector<14x128xf32>
    %c90 = arith.constant 90 : index
    %c0_140 = arith.constant 0 : index
    %518 = vector.load %arg3[%c90, %c0_140] : memref<108x128xf32, #tpu.memory_space<vmem>>, vector<1x128xf32>
    %519 = vector.broadcast %518 : vector<1x128xf32> to vector<14x128xf32>
    %520 = arith.mulf %519, %499 : vector<14x128xf32>
    %521 = arith.addf %517, %520 : vector<14x128xf32>
    %c94 = arith.constant 94 : index
    %c0_141 = arith.constant 0 : index
    %522 = vector.load %arg3[%c94, %c0_141] : memref<108x128xf32, #tpu.memory_space<vmem>>, vector<1x128xf32>
    %523 = vector.broadcast %522 : vector<1x128xf32> to vector<14x128xf32>
    %524 = arith.mulf %523, %501 : vector<14x128xf32>
    %525 = arith.addf %521, %524 : vector<14x128xf32>
    %c98 = arith.constant 98 : index
    %c0_142 = arith.constant 0 : index
    %526 = vector.load %arg3[%c98, %c0_142] : memref<108x128xf32, #tpu.memory_space<vmem>>, vector<1x128xf32>
    %527 = vector.broadcast %526 : vector<1x128xf32> to vector<14x128xf32>
    %528 = arith.mulf %527, %497 : vector<14x128xf32>
    %529 = arith.addf %491, %528 : vector<14x128xf32>
    %c102 = arith.constant 102 : index
    %c0_143 = arith.constant 0 : index
    %530 = vector.load %arg3[%c102, %c0_143] : memref<108x128xf32, #tpu.memory_space<vmem>>, vector<1x128xf32>
    %531 = vector.broadcast %530 : vector<1x128xf32> to vector<14x128xf32>
    %532 = arith.mulf %531, %499 : vector<14x128xf32>
    %533 = arith.addf %529, %532 : vector<14x128xf32>
    %c106 = arith.constant 106 : index
    %c0_144 = arith.constant 0 : index
    %534 = vector.load %arg3[%c106, %c0_144] : memref<108x128xf32, #tpu.memory_space<vmem>>, vector<1x128xf32>
    %535 = vector.broadcast %534 : vector<1x128xf32> to vector<14x128xf32>
    %536 = arith.mulf %535, %501 : vector<14x128xf32>
    %537 = arith.addf %533, %536 : vector<14x128xf32>
    %c0_145 = arith.constant 0 : index
    %c3_146 = arith.constant 3 : index
    %538 = arith.index_cast %1 : i32 to index
    %c0_147 = arith.constant 0 : index
    %539 = vector.load %arg2[%c0_145, %c3_146, %538, %c0_147] : memref<1x4x22x22xbf16, #tpu.memory_space<vmem>>, vector<1x1x14x22xbf16>
    %540 = vector.shape_cast %539 : vector<1x1x14x22xbf16> to vector<14x22xbf16>
    %541 = arith.extf %540 : vector<14x22xbf16> to vector<14x22xf32>
    %542 = vector.extract_strided_slice %541 {offsets = [0, 0], sizes = [14, 16], strides = [1, 1]} : vector<14x22xf32> to vector<14x16xf32>
    %543 = tpu.concatenate %542, %542, %542, %542, %542, %542, %542, %542 in 1 : vector<14x16xf32>, vector<14x16xf32>, vector<14x16xf32>, vector<14x16xf32>, vector<14x16xf32>, vector<14x16xf32>, vector<14x16xf32>, vector<14x16xf32> -> vector<14x128xf32>
    %544 = vector.extract_strided_slice %541 {offsets = [0, 3], sizes = [14, 16], strides = [1, 1]} : vector<14x22xf32> to vector<14x16xf32>
    %545 = tpu.concatenate %544, %544, %544, %544, %544, %544, %544, %544 in 1 : vector<14x16xf32>, vector<14x16xf32>, vector<14x16xf32>, vector<14x16xf32>, vector<14x16xf32>, vector<14x16xf32>, vector<14x16xf32>, vector<14x16xf32> -> vector<14x128xf32>
    %546 = vector.extract_strided_slice %541 {offsets = [0, 6], sizes = [14, 16], strides = [1, 1]} : vector<14x22xf32> to vector<14x16xf32>
    %547 = tpu.concatenate %546, %546, %546, %546, %546, %546, %546, %546 in 1 : vector<14x16xf32>, vector<14x16xf32>, vector<14x16xf32>, vector<14x16xf32>, vector<14x16xf32>, vector<14x16xf32>, vector<14x16xf32>, vector<14x16xf32> -> vector<14x128xf32>
    %c75 = arith.constant 75 : index
    %c0_148 = arith.constant 0 : index
    %548 = vector.load %arg3[%c75, %c0_148] : memref<108x128xf32, #tpu.memory_space<vmem>>, vector<1x128xf32>
    %549 = vector.broadcast %548 : vector<1x128xf32> to vector<14x128xf32>
    %550 = arith.mulf %549, %543 : vector<14x128xf32>
    %551 = arith.addf %513, %550 : vector<14x128xf32>
    %c79 = arith.constant 79 : index
    %c0_149 = arith.constant 0 : index
    %552 = vector.load %arg3[%c79, %c0_149] : memref<108x128xf32, #tpu.memory_space<vmem>>, vector<1x128xf32>
    %553 = vector.broadcast %552 : vector<1x128xf32> to vector<14x128xf32>
    %554 = arith.mulf %553, %545 : vector<14x128xf32>
    %555 = arith.addf %551, %554 : vector<14x128xf32>
    %c83 = arith.constant 83 : index
    %c0_150 = arith.constant 0 : index
    %556 = vector.load %arg3[%c83, %c0_150] : memref<108x128xf32, #tpu.memory_space<vmem>>, vector<1x128xf32>
    %557 = vector.broadcast %556 : vector<1x128xf32> to vector<14x128xf32>
    %558 = arith.mulf %557, %547 : vector<14x128xf32>
    %559 = arith.addf %555, %558 : vector<14x128xf32>
    %c87 = arith.constant 87 : index
    %c0_151 = arith.constant 0 : index
    %560 = vector.load %arg3[%c87, %c0_151] : memref<108x128xf32, #tpu.memory_space<vmem>>, vector<1x128xf32>
    %561 = vector.broadcast %560 : vector<1x128xf32> to vector<14x128xf32>
    %562 = arith.mulf %561, %543 : vector<14x128xf32>
    %563 = arith.addf %525, %562 : vector<14x128xf32>
    %c91 = arith.constant 91 : index
    %c0_152 = arith.constant 0 : index
    %564 = vector.load %arg3[%c91, %c0_152] : memref<108x128xf32, #tpu.memory_space<vmem>>, vector<1x128xf32>
    %565 = vector.broadcast %564 : vector<1x128xf32> to vector<14x128xf32>
    %566 = arith.mulf %565, %545 : vector<14x128xf32>
    %567 = arith.addf %563, %566 : vector<14x128xf32>
    %c95 = arith.constant 95 : index
    %c0_153 = arith.constant 0 : index
    %568 = vector.load %arg3[%c95, %c0_153] : memref<108x128xf32, #tpu.memory_space<vmem>>, vector<1x128xf32>
    %569 = vector.broadcast %568 : vector<1x128xf32> to vector<14x128xf32>
    %570 = arith.mulf %569, %547 : vector<14x128xf32>
    %571 = arith.addf %567, %570 : vector<14x128xf32>
    %c99 = arith.constant 99 : index
    %c0_154 = arith.constant 0 : index
    %572 = vector.load %arg3[%c99, %c0_154] : memref<108x128xf32, #tpu.memory_space<vmem>>, vector<1x128xf32>
    %573 = vector.broadcast %572 : vector<1x128xf32> to vector<14x128xf32>
    %574 = arith.mulf %573, %543 : vector<14x128xf32>
    %575 = arith.addf %537, %574 : vector<14x128xf32>
    %c103 = arith.constant 103 : index
    %c0_155 = arith.constant 0 : index
    %576 = vector.load %arg3[%c103, %c0_155] : memref<108x128xf32, #tpu.memory_space<vmem>>, vector<1x128xf32>
    %577 = vector.broadcast %576 : vector<1x128xf32> to vector<14x128xf32>
    %578 = arith.mulf %577, %545 : vector<14x128xf32>
    %579 = arith.addf %575, %578 : vector<14x128xf32>
    %c107 = arith.constant 107 : index
    %c0_156 = arith.constant 0 : index
    %580 = vector.load %arg3[%c107, %c0_156] : memref<108x128xf32, #tpu.memory_space<vmem>>, vector<1x128xf32>
    %581 = vector.broadcast %580 : vector<1x128xf32> to vector<14x128xf32>
    %582 = arith.mulf %581, %547 : vector<14x128xf32>
    %583 = arith.addf %579, %582 : vector<14x128xf32>
    %cst_157 = arith.constant 0.000000e+00 : f32
    %584 = vector.broadcast %cst_157 : f32 to vector<8x128xf32>
    %585 = vector.extract_strided_slice %559 {offsets = [0, 0], sizes = [8, 128], strides = [1, 1]} : vector<14x128xf32> to vector<8x128xf32>
    %586 = arith.addf %584, %585 : vector<8x128xf32>
    %587 = vector.extract_strided_slice %571 {offsets = [3, 0], sizes = [8, 128], strides = [1, 1]} : vector<14x128xf32> to vector<8x128xf32>
    %588 = arith.addf %586, %587 : vector<8x128xf32>
    %589 = vector.extract_strided_slice %583 {offsets = [6, 0], sizes = [8, 128], strides = [1, 1]} : vector<14x128xf32> to vector<8x128xf32>
    %590 = arith.addf %588, %589 : vector<8x128xf32>
    %cst_158 = arith.constant 0.000000e+00 : f32
    %591 = vector.broadcast %cst_158 : f32 to vector<8x128xf32>
    %592 = arith.maximumf %590, %591 : vector<8x128xf32>
    %593 = arith.addf %396, %592 : vector<8x128xf32>
    %c0_159 = arith.constant 0 : index
    %c0_160 = arith.constant 0 : index
    %c0_161 = arith.constant 0 : index
    %594 = vector.load %arg4[%c0_159, %c0_160, %c0_161] : memref<1x8x128xf32, #tpu.memory_space<vmem>>, vector<1x8x128xf32>
    %595 = vector.shape_cast %594 : vector<1x8x128xf32> to vector<8x128xf32>
    %596 = vector.shape_cast %593 : vector<8x128xf32> to vector<1x8x128xf32>
    tpu.vector_store %arg4[%c0_159, %c0_160, %c0_161], %596 {strides = array<i32>} : memref<1x8x128xf32, #tpu.memory_space<vmem>>, vector<1x8x128xf32>,
    return
  }
  func.func @transform_0(%arg0: i32, %arg1: i32) -> (i32, i32, i32, i32) {
    %c0_i32 = arith.constant 0 : i32
    %c0_i32_0 = arith.constant 0 : i32
    %c0_i32_1 = arith.constant 0 : i32
    %c0_i32_2 = arith.constant 0 : i32
    return %arg0, %c0_i32, %c0_i32_0, %c0_i32_1 : i32, i32, i32, i32
  }
  func.func @transform_1(%arg0: i32, %arg1: i32) -> (i32, i32) {
    %c0_i32 = arith.constant 0 : i32
    %c0_i32_0 = arith.constant 0 : i32
    %c0_i32_1 = arith.constant 0 : i32
    return %c0_i32, %c0_i32_0 : i32, i32
  }
  func.func @transform_2(%arg0: i32, %arg1: i32) -> (i32, i32, i32) {
    %c0_i32 = arith.constant 0 : i32
    %c0_i32_0 = arith.constant 0 : i32
    return %arg0, %arg1, %c0_i32 : i32, i32, i32
  }
}

</mosaic_0001>

<llo_original>
// kernel: tpu_custom_call.1
$region0: #{tpu_custom_call.1}
  #allocation0 [shape = 'u32[]', space=smem, size = 0x4, offset = 0x4, fixed_abs, tag = 'smem constant byte address 0x4 - core index']
  #allocation1 [shape = 'u32[144,128]{1,0:T(1,128)}', space=vmem, size = 0x12000, scoped, tag = 'internal scratch']
  %s0 = inlined_call_operand.vmem [shape: bf16[2,4,22,22], index: 0, kind: input, shape index: {}]
  %s1 = inlined_call_operand.vmem [shape: f32[108,128], index: 1, kind: input, shape index: {}]
  %s2 = inlined_call_operand.hbm [shape: f32[2,16,128], index: 2, kind: output, shape index: {}]
  %s3 = sld [smem:[#allocation0]]
  $region41: #{tpu_custom_call.1} parent=0
    _
  %s5 = ssub.s32 1, %s3
  %s6 = scalar_select 0, %s5, %s3
  $region1: #{tpu_custom_call.1} parent=0
    #allocation2 [shape = 'u8[8192]{0}', space=vmem, size = 0x2000, scoped, tag = 'output window, operand 0']
    #allocation3 [shape = 's32[2]{0}', space=sflag, size = 0x8, scoped, tag = 'scoped memory for tpu_custom_call.1']
    %7 = vsyncpa [#allocation3], 0
    %s8 = scalar_lea.sflag [#allocation3], 1
    %9 = vsyncpa %s8, 0
    loop: start=0, step=1, limit=6
    $region2: #{tpu_custom_call.1} parent=1 // loop_pre_header
      _
    $region3: #{tpu_custom_call.1} parent=1 // loop_header
      %s11 = sphi 0, %s15
      %p12 = scmp.ge.s32.totalorder %s11, 6
      %s18 = sphi 0, %s30
      %s19 = sphi 0, %s26
      %s20 = sphi 0, %s18
      %s21 = sphi 0, %s19
      %s22 = sphi 0, %s20
      %s23 = sphi 0, %s21
      %s33 = sphi 0, %s35
      %s36 = sphi 0, %s33
      %s37 = sphi 0, %s36
      %s53 = sphi 0, %s37
      %s57 = sphi 0, %s57
      %s59 = sphi 0, %s57
      %s60 = sphi 0, %s59
      %s74 = sphi 0, %s60
      %s82 = sphi 0, %s84
      %s85 = sphi 0, %s82
      %s86 = sphi 0, %s85
      %s102 = sphi 0, %s86
    $region4: #{tpu_custom_call.1} parent=1 // loop_header_branch
      %14 = sbr.rel (%p12) target = $region8
    $region5: #{tpu_custom_call.1} parent=1 // loop_body
      %s16 = ssub.s32 %s11, 1
      %s17 = ssub.s32 %s11, 2
      %s24 = sadd.s32 1, %s19
      %p25 = scmp.ge.s32.totalorder %s24, 2
      %s26 = scalar_select %p25, 0, %s24
      %s27 = sadd.s32 1, %s18
      %s28 = scalar_select %p25, %s27, %s18
      %p29 = scmp.ge.s32.totalorder %s28, 2
      %s30 = scalar_select %p29, 0, %s28
      %s31 = ssub.s32 %s18, %s30
      %p32 = scmp.eq.s32.totalorder %s31, 0
      %s34 = sadd.s32 %s33, 1
      %s35 = scalar_select %p32, %s33, %s34
      %p38 = pneg %p32
      %p39 = scmp.eq.s32.totalorder %s11, 3
      %p40 = por %p38, %p39
      %p41 = scmp.ne.s32.totalorder %s33, %s36
      %p42 = scmp.eq.s32.totalorder %s11, 0
      %p43 = por %p41, %p42
      %p44 = scmp.ne.s32.totalorder %s33, %s36
      %p45 = scmp.eq.s32.totalorder %s16, 3
      %p46 = por %p44, %p45
      %p47 = scmp.ne.s32.totalorder %s36, %s37
      %p48 = scmp.eq.s32.totalorder %s16, 0
      %p49 = por %p47, %p48
      %p50 = scmp.ne.s32.totalorder %s36, %s37
      %p51 = scmp.eq.s32.totalorder %s17, 3
      %p52 = por %p50, %p51
      %p54 = scmp.ne.s32.totalorder %s37, %s53
      %p55 = scmp.eq.s32.totalorder %s17, 0
      %p56 = por %p54, %p55
      %s58 = sadd.s32 %s57, 1
      %p61 = scmp.eq.s32.totalorder %s11, 3
      %p62 = scmp.ne.s32.totalorder %s57, %s59
      %p63 = scmp.eq.s32.totalorder %s11, 0
      %p64 = por %p62, %p63
      %p65 = scmp.ne.s32.totalorder %s57, %s59
      %p66 = scmp.eq.s32.totalorder %s16, 3
      %p67 = por %p65, %p66
      %p68 = scmp.ne.s32.totalorder %s59, %s60
      %p69 = scmp.eq.s32.totalorder %s16, 0
      %p70 = por %p68, %p69
      %p71 = scmp.ne.s32.totalorder %s59, %s60
      %p72 = scmp.eq.s32.totalorder %s17, 3
      %p73 = por %p71, %p72
      %p75 = scmp.ne.s32.totalorder %s60, %s74
      %p76 = scmp.eq.s32.totalorder %s17, 0
      %p77 = por %p75, %p76
      %s78 = ssub.s32 %s18, %s30
      %s79 = ssub.s32 %s19, %s26
      %s80 = sor.u32 %s78, %s79
      %p81 = scmp.eq.s32.totalorder %s80, 0
      %s83 = sadd.s32 %s82, 1
      %s84 = scalar_select %p81, %s82, %s83
      %p87 = pneg %p81
      %p88 = scmp.eq.s32.totalorder %s11, 3
      %p89 = por %p87, %p88
      %p90 = scmp.ne.s32.totalorder %s82, %s85
      %p91 = scmp.eq.s32.totalorder %s11, 0
      %p92 = por %p90, %p91
      %p93 = scmp.ne.s32.totalorder %s82, %s85
      %p94 = scmp.eq.s32.totalorder %s16, 3
      %p95 = por %p93, %p94
      %p96 = scmp.ne.s32.totalorder %s85, %s86
      %p97 = scmp.eq.s32.totalorder %s16, 0
      %p98 = por %p96, %p97
      %p99 = scmp.ne.s32.totalorder %s85, %s86
      %p100 = scmp.eq.s32.totalorder %s17, 3
      %p101 = por %p99, %p100
      %p103 = scmp.ne.s32.totalorder %s86, %s102
      %p104 = scmp.eq.s32.totalorder %s17, 0
      %p105 = por %p103, %p104
      %p106 = scmp.le.s32.totalorder 1, %s11
      %p107 = scmp.lt.s32.totalorder %s11, 5
      %p108 = pnand %p106, %p107
      %p109 = pneg %p108
      // Predicated region
      $region9: #{tpu_custom_call.1} parent=5 // pred_check
        _
      $region10: #{tpu_custom_call.1} parent=5 // pred_check_branch
        %111 = sbr.rel (%p108) target = $region12
      $region11: #{tpu_custom_call.1} parent=5 // pred_region
        %s112 = ssub.s32 %s11, 1
        // Predicated region
        $region13: #{tpu_custom_call.1} parent=11 // pred_check
          %p113 = pneg %p70
        $region14: #{tpu_custom_call.1} parent=11 // pred_check_branch
          %115 = sbr.rel (%p113) target = $region16
        $region15: #{tpu_custom_call.1} parent=11 // pred_region
          _
        $region16: #{tpu_custom_call.1} parent=11 // pred_fallthru
          _
      $region12: #{tpu_custom_call.1} parent=5 // pred_fallthru
        _
      %p116 = scmp.lt.s32.totalorder %s11, 4
      // Predicated region
      $region17: #{tpu_custom_call.1} parent=5 // pred_check
        %p117 = pneg %p116
      $region18: #{tpu_custom_call.1} parent=5 // pred_check_branch
        %119 = sbr.rel (%p117) target = $region20
      $region19: #{tpu_custom_call.1} parent=5 // pred_region
        // Predicated region
        $region21: #{tpu_custom_call.1} parent=19 // pred_check
          %p120 = pneg %p43
        $region22: #{tpu_custom_call.1} parent=19 // pred_check_branch
          %122 = sbr.rel (%p120) target = $region24
        $region23: #{tpu_custom_call.1} parent=19 // pred_region
          %p123 = scmp.lt.s32.totalorder %s18, 1
          %s124 = scalar_select %p123, %s18, 1
          %s125 = smul.addr %s124, 12
          %s126 = smul.addr %s125, 4
          %s127 = scalar_lea.vmem %s0, %s126
        $region24: #{tpu_custom_call.1} parent=19 // pred_fallthru
          _
      $region20: #{tpu_custom_call.1} parent=5 // pred_fallthru
        _
      %p128 = scmp.le.s32.totalorder 1, %s11
      %p129 = scmp.lt.s32.totalorder %s11, 5
      %p130 = pnand %p128, %p129
      %p131 = pneg %p130
      // Predicated region
      $region25: #{tpu_custom_call.1} parent=5 // pred_check
        _
      $region26: #{tpu_custom_call.1} parent=5 // pred_check_branch
        %133 = sbr.rel (%p130) target = $region28
      $region27: #{tpu_custom_call.1} parent=5 // pred_region
        %s134 = ssub.s32 %s11, 1
        %p135 = scmp.lt.s32.totalorder %s20, 1
        %s136 = scalar_select %p135, %s20, 1
        %s137 = smul.addr %s136, 12
        %s138 = smul.addr %s137, 4
        %s139 = scalar_lea.vmem %s0, %s138
        %p140 = pneg %p49
        %p141 = pneg %p46
        %p142 = pneg %p70
        %p143 = pneg %p67
        %p144 = pneg %p98
        %p145 = pneg %p95
        %s146 = sand.u32 %s85, 1
        %s147 = scalar_lea.sflag [#allocation3], %s146
        %s148 = sand.u32 %s85, 1
        %s149 = smul.addr %s148, 8
        %s150 = scalar_lea.vmem [#allocation2], %s149
        %p151 = scmp.lt.s32.totalorder %s20, 1
        %s152 = scalar_select %p151, %s20, 1
        %s153 = smul.addr %s152, 12
        %s154 = smul.addr %s153, 4
        %s155 = scalar_lea.vmem %s0, %s154
        %s156 = smul.u32 %s21, 8
        %s157 = sshra.s32 %s156, 3
        %s158 = sand.u32 %s156, 7
        %s159 = smul.addr %s157, 4
        %s160 = scalar_lea.vmem %s155, %s159
        %v161 = vld [vmem:[%s160] sm:$0xf]
        %v162 = vld [vmem:[%s160 + $0x4] sm:$0x7]
        %v163 = vunpack.c.l.bf16 %v161
        %v164 = vunpack.c.l.bf16 %v162
        %167 = vrot.lane.b32.xlu0 %v163, 126
        %v168 = vpop.permute.xlu0 %167
        %169 = vrot.lane.b32.xlu0 %v164, 126
        %v170 = vpop.permute.xlu0 %169
        %173 = vrot.lane.b32.xlu0 %v163, 14
        %v174 = vpop.permute.xlu0 %173
        %175 = vrot.lane.b32.xlu0 %v164, 14
        %v176 = vpop.permute.xlu0 %175
        %179 = vrot.lane.b32.xlu0 %v163, 30
        %v180 = vpop.permute.xlu0 %179
        %181 = vrot.lane.b32.xlu0 %v164, 30
        %v182 = vpop.permute.xlu0 %181
        %185 = vrot.lane.b32.xlu0 %v163, 46
        %v186 = vpop.permute.xlu0 %185
        %187 = vrot.lane.b32.xlu0 %v164, 46
        %v188 = vpop.permute.xlu0 %187
        %191 = vrot.lane.b32.xlu0 %v163, 62
        %v192 = vpop.permute.xlu0 %191
        %193 = vrot.lane.b32.xlu0 %v164, 62
        %v194 = vpop.permute.xlu0 %193
        %197 = vrot.lane.b32.xlu0 %v163, 78
        %v198 = vpop.permute.xlu0 %197
        %199 = vrot.lane.b32.xlu0 %v164, 78
        %v200 = vpop.permute.xlu0 %199
        %203 = vrot.lane.b32.xlu0 %v163, 94
        %v204 = vpop.permute.xlu0 %203
        %205 = vrot.lane.b32.xlu0 %v164, 94
        %v206 = vpop.permute.xlu0 %205
        %209 = vrot.lane.b32.xlu0 %v163, 110
        %v210 = vpop.permute.xlu0 %209
        %211 = vrot.lane.b32.xlu0 %v164, 110
        %v212 = vpop.permute.xlu0 %211
        %vm215 = vcmask 130048
        %v216 = vsel %vm215, %v168, %v174
        %v217 = vsel %vm215, %v170, %v176
        %vm218 = vcmask 261120
        %v219 = vsel %vm218, %v216, %v180
        %v220 = vsel %vm218, %v217, %v182
        %vm221 = vcmask 392192
        %v222 = vsel %vm221, %v219, %v186
        %v223 = vsel %vm221, %v220, %v188
        %vm224 = vcmask 523264
        %v225 = vsel %vm224, %v222, %v192
        %v226 = vsel %vm224, %v223, %v194
        %vm227 = vcmask 654336
        %v228 = vsel %vm227, %v225, %v198
        %v229 = vsel %vm227, %v226, %v200
        %vm230 = vcmask 785408
        %v231 = vsel %vm230, %v228, %v204
        %v232 = vsel %vm230, %v229, %v206
        %vm233 = vcmask 916480
        %v234 = vsel %vm233, %v231, %v210
        %v235 = vsel %vm233, %v232, %v212
        %236 = vrot.lane.b32.xlu0 %v163, 125
        %v237 = vpop.permute.xlu0 %236
        %238 = vrot.lane.b32.xlu0 %v164, 125
        %v239 = vpop.permute.xlu0 %238
        %242 = vrot.lane.b32.xlu0 %v163, 13
        %v243 = vpop.permute.xlu0 %242
        %244 = vrot.lane.b32.xlu0 %v164, 13
        %v245 = vpop.permute.xlu0 %244
        %248 = vrot.lane.b32.xlu0 %v163, 29
        %v249 = vpop.permute.xlu0 %248
        %250 = vrot.lane.b32.xlu0 %v164, 29
        %v251 = vpop.permute.xlu0 %250
        %254 = vrot.lane.b32.xlu0 %v163, 45
        %v255 = vpop.permute.xlu0 %254
        %256 = vrot.lane.b32.xlu0 %v164, 45
        %v257 = vpop.permute.xlu0 %256
        %260 = vrot.lane.b32.xlu0 %v163, 61
        %v261 = vpop.permute.xlu0 %260
        %262 = vrot.lane.b32.xlu0 %v164, 61
        %v263 = vpop.permute.xlu0 %262
        %266 = vrot.lane.b32.xlu0 %v163, 77
        %v267 = vpop.permute.xlu0 %266
        %268 = vrot.lane.b32.xlu0 %v164, 77
        %v269 = vpop.permute.xlu0 %268
        %272 = vrot.lane.b32.xlu0 %v163, 93
        %v273 = vpop.permute.xlu0 %272
        %274 = vrot.lane.b32.xlu0 %v164, 93
        %v275 = vpop.permute.xlu0 %274
        %278 = vrot.lane.b32.xlu0 %v163, 109
        %v279 = vpop.permute.xlu0 %278
        %280 = vrot.lane.b32.xlu0 %v164, 109
        %v281 = vpop.permute.xlu0 %280
        %v284 = vsel %vm215, %v237, %v243
        %v285 = vsel %vm215, %v239, %v245
        %v286 = vsel %vm218, %v284, %v249
        %v287 = vsel %vm218, %v285, %v251
        %v288 = vsel %vm221, %v286, %v255
        %v289 = vsel %vm221, %v287, %v257
        %v290 = vsel %vm224, %v288, %v261
        %v291 = vsel %vm224, %v289, %v263
        %v292 = vsel %vm227, %v290, %v267
        %v293 = vsel %vm227, %v291, %v269
        %v294 = vsel %vm230, %v292, %v273
        %v295 = vsel %vm230, %v293, %v275
        %v296 = vsel %vm233, %v294, %v279
        %v297 = vsel %vm233, %v295, %v281
        %298 = vrot.lane.b32.xlu0 %v163, 124
        %v299 = vpop.permute.xlu0 %298
        %300 = vrot.lane.b32.xlu0 %v164, 124
        %v301 = vpop.permute.xlu0 %300
        %304 = vrot.lane.b32.xlu0 %v163, 12
        %v305 = vpop.permute.xlu0 %304
        %306 = vrot.lane.b32.xlu0 %v164, 12
        %v307 = vpop.permute.xlu0 %306
        %310 = vrot.lane.b32.xlu0 %v163, 28
        %v311 = vpop.permute.xlu0 %310
        %312 = vrot.lane.b32.xlu0 %v164, 28
        %v313 = vpop.permute.xlu0 %312
        %316 = vrot.lane.b32.xlu0 %v163, 44
        %v317 = vpop.permute.xlu0 %316
        %318 = vrot.lane.b32.xlu0 %v164, 44
        %v319 = vpop.permute.xlu0 %318
        %322 = vrot.lane.b32.xlu0 %v163, 60
        %v323 = vpop.permute.xlu0 %322
        %324 = vrot.lane.b32.xlu0 %v164, 60
        %v325 = vpop.permute.xlu0 %324
        %328 = vrot.lane.b32.xlu0 %v163, 76
        %v329 = vpop.permute.xlu0 %328
        %330 = vrot.lane.b32.xlu0 %v164, 76
        %v331 = vpop.permute.xlu0 %330
        %334 = vrot.lane.b32.xlu0 %v163, 92
        %v335 = vpop.permute.xlu0 %334
        %336 = vrot.lane.b32.xlu0 %v164, 92
        %v337 = vpop.permute.xlu0 %336
        %340 = vrot.lane.b32.xlu0 %v163, 108
        %v341 = vpop.permute.xlu0 %340
        %342 = vrot.lane.b32.xlu0 %v164, 108
        %v343 = vpop.permute.xlu0 %342
        %v346 = vsel %vm215, %v299, %v305
        %v347 = vsel %vm215, %v301, %v307
        %v348 = vsel %vm218, %v346, %v311
        %v349 = vsel %vm218, %v347, %v313
        %v350 = vsel %vm221, %v348, %v317
        %v351 = vsel %vm221, %v349, %v319
        %v352 = vsel %vm224, %v350, %v323
        %v353 = vsel %vm224, %v351, %v325
        %v354 = vsel %vm227, %v352, %v329
        %v355 = vsel %vm227, %v353, %v331
        %v356 = vsel %vm230, %v354, %v335
        %v357 = vsel %vm230, %v355, %v337
        %v358 = vsel %vm233, %v356, %v341
        %v359 = vsel %vm233, %v357, %v343
        %v360 = vld [vmem:[%s1] sm:$0x1]
        %v361 = vlaneseq
        %v362 = vshrl.u32 %v361, 7
        %v363 = vsub.s32 0, %v362
        %v364 = vrot.slane %v360, %v363
        %v365 = vmul.f32 %v364, %v234
        %v366 = vmul.f32 %v364, %v235
        %v367 = vadd.f32 %v365, 0.0
        %v368 = vadd.f32 %v366, 0.0
        %v369 = vld [vmem:[%s1 + $0x4] sm:$0x1]
        %v370 = vlaneseq
        %v371 = vshrl.u32 %v370, 7
        %v372 = vsub.s32 0, %v371
        %v373 = vrot.slane %v369, %v372
        %v374 = vmul.f32 %v373, %v296
        %v375 = vmul.f32 %v373, %v297
        %v376 = vadd.f32 %v367, %v374
        %v377 = vadd.f32 %v368, %v375
        %v378 = vld [vmem:[%s1 + $0x8] sm:$0x1]
        %v379 = vlaneseq
        %v380 = vshrl.u32 %v379, 7
        %v381 = vsub.s32 0, %v380
        %v382 = vrot.slane %v378, %v381
        %v383 = vmul.f32 %v382, %v358
        %v384 = vmul.f32 %v382, %v359
        %v385 = vadd.f32 %v376, %v383
        %v386 = vadd.f32 %v377, %v384
        %v387 = vld [vmem:[%s1 + $0xc] sm:$0x1]
        %v388 = vlaneseq
        %v389 = vshrl.u32 %v388, 7
        %v390 = vsub.s32 0, %v389
        %v391 = vrot.slane %v387, %v390
        %v392 = vmul.f32 %v391, %v234
        %v393 = vmul.f32 %v391, %v235
        %v394 = vadd.f32 %v392, 0.0
        %v395 = vadd.f32 %v393, 0.0
        %v396 = vld [vmem:[%s1 + $0x10] sm:$0x1]
        %v397 = vlaneseq
        %v398 = vshrl.u32 %v397, 7
        %v399 = vsub.s32 0, %v398
        %v400 = vrot.slane %v396, %v399
        %v401 = vmul.f32 %v400, %v296
        %v402 = vmul.f32 %v400, %v297
        %v403 = vadd.f32 %v394, %v401
        %v404 = vadd.f32 %v395, %v402
        %v405 = vld [vmem:[%s1 + $0x14] sm:$0x1]
        %v406 = vlaneseq
        %v407 = vshrl.u32 %v406, 7
        %v408 = vsub.s32 0, %v407
        %v409 = vrot.slane %v405, %v408
        %v410 = vmul.f32 %v409, %v358
        %v411 = vmul.f32 %v409, %v359
        %v412 = vadd.f32 %v403, %v410
        %v413 = vadd.f32 %v404, %v411
        %v414 = vld [vmem:[%s1 + $0x18] sm:$0x1]
        %v415 = vlaneseq
        %v416 = vshrl.u32 %v415, 7
        %v417 = vsub.s32 0, %v416
        %v418 = vrot.slane %v414, %v417
        %v419 = vmul.f32 %v418, %v234
        %v420 = vmul.f32 %v418, %v235
        %v421 = vadd.f32 %v419, 0.0
        %v422 = vadd.f32 %v420, 0.0
        %v423 = vld [vmem:[%s1 + $0x1c] sm:$0x1]
        %v424 = vlaneseq
        %v425 = vshrl.u32 %v424, 7
        %v426 = vsub.s32 0, %v425
        %v427 = vrot.slane %v423, %v426
        %v428 = vmul.f32 %v427, %v296
        %v429 = vmul.f32 %v427, %v297
        %v430 = vadd.f32 %v421, %v428
        %v431 = vadd.f32 %v422, %v429
        %v432 = vld [vmem:[%s1 + $0x20] sm:$0x1]
        %v433 = vlaneseq
        %v434 = vshrl.u32 %v433, 7
        %v435 = vsub.s32 0, %v434
        %v436 = vrot.slane %v432, %v435
        %v437 = vmul.f32 %v436, %v358
        %v438 = vmul.f32 %v436, %v359
        %v439 = vadd.f32 %v430, %v437
        %v440 = vadd.f32 %v431, %v438
        %s441 = sadd.s32 %s157, 3
        %s442 = smul.addr %s441, 4
        %s443 = scalar_lea.vmem %s155, %s442
        %v444 = vld [vmem:[%s443] sm:$0xf]
        %v445 = vld [vmem:[%s443 + $0x4] sm:$0x7]
        %v446 = vunpack.c.l.bf16 %v444
        %v447 = vunpack.c.l.bf16 %v445
        %450 = vrot.lane.b32.xlu0 %v446, 126
        %v451 = vpop.permute.xlu0 %450
        %452 = vrot.lane.b32.xlu0 %v447, 126
        %v453 = vpop.permute.xlu0 %452
        %456 = vrot.lane.b32.xlu0 %v446, 14
        %v457 = vpop.permute.xlu0 %456
        %458 = vrot.lane.b32.xlu0 %v447, 14
        %v459 = vpop.permute.xlu0 %458
        %462 = vrot.lane.b32.xlu0 %v446, 30
        %v463 = vpop.permute.xlu0 %462
        %464 = vrot.lane.b32.xlu0 %v447, 30
        %v465 = vpop.permute.xlu0 %464
        %468 = vrot.lane.b32.xlu0 %v446, 46
        %v469 = vpop.permute.xlu0 %468
        %470 = vrot.lane.b32.xlu0 %v447, 46
        %v471 = vpop.permute.xlu0 %470
        %474 = vrot.lane.b32.xlu0 %v446, 62
        %v475 = vpop.permute.xlu0 %474
        %476 = vrot.lane.b32.xlu0 %v447, 62
        %v477 = vpop.permute.xlu0 %476
        %480 = vrot.lane.b32.xlu0 %v446, 78
        %v481 = vpop.permute.xlu0 %480
        %482 = vrot.lane.b32.xlu0 %v447, 78
        %v483 = vpop.permute.xlu0 %482
        %486 = vrot.lane.b32.xlu0 %v446, 94
        %v487 = vpop.permute.xlu0 %486
        %488 = vrot.lane.b32.xlu0 %v447, 94
        %v489 = vpop.permute.xlu0 %488
        %492 = vrot.lane.b32.xlu0 %v446, 110
        %v493 = vpop.permute.xlu0 %492
        %494 = vrot.lane.b32.xlu0 %v447, 110
        %v495 = vpop.permute.xlu0 %494
        %v498 = vsel %vm215, %v451, %v457
        %v499 = vsel %vm215, %v453, %v459
        %v500 = vsel %vm218, %v498, %v463
        %v501 = vsel %vm218, %v499, %v465
        %v502 = vsel %vm221, %v500, %v469
        %v503 = vsel %vm221, %v501, %v471
        %v504 = vsel %vm224, %v502, %v475
        %v505 = vsel %vm224, %v503, %v477
        %v506 = vsel %vm227, %v504, %v481
        %v507 = vsel %vm227, %v505, %v483
        %v508 = vsel %vm230, %v506, %v487
        %v509 = vsel %vm230, %v507, %v489
        %v510 = vsel %vm233, %v508, %v493
        %v511 = vsel %vm233, %v509, %v495
        %512 = vrot.lane.b32.xlu0 %v446, 125
        %v513 = vpop.permute.xlu0 %512
        %514 = vrot.lane.b32.xlu0 %v447, 125
        %v515 = vpop.permute.xlu0 %514
        %518 = vrot.lane.b32.xlu0 %v446, 13
        %v519 = vpop.permute.xlu0 %518
        %520 = vrot.lane.b32.xlu0 %v447, 13
        %v521 = vpop.permute.xlu0 %520
        %524 = vrot.lane.b32.xlu0 %v446, 29
        %v525 = vpop.permute.xlu0 %524
        %526 = vrot.lane.b32.xlu0 %v447, 29
        %v527 = vpop.permute.xlu0 %526
        %530 = vrot.lane.b32.xlu0 %v446, 45
        %v531 = vpop.permute.xlu0 %530
        %532 = vrot.lane.b32.xlu0 %v447, 45
        %v533 = vpop.permute.xlu0 %532
        %536 = vrot.lane.b32.xlu0 %v446, 61
        %v537 = vpop.permute.xlu0 %536
        %538 = vrot.lane.b32.xlu0 %v447, 61
        %v539 = vpop.permute.xlu0 %538
        %542 = vrot.lane.b32.xlu0 %v446, 77
        %v543 = vpop.permute.xlu0 %542
        %544 = vrot.lane.b32.xlu0 %v447, 77
        %v545 = vpop.permute.xlu0 %544
        %548 = vrot.lane.b32.xlu0 %v446, 93
        %v549 = vpop.permute.xlu0 %548
        %550 = vrot.lane.b32.xlu0 %v447, 93
        %v551 = vpop.permute.xlu0 %550
        %554 = vrot.lane.b32.xlu0 %v446, 109
        %v555 = vpop.permute.xlu0 %554
        %556 = vrot.lane.b32.xlu0 %v447, 109
        %v557 = vpop.permute.xlu0 %556
        %v560 = vsel %vm215, %v513, %v519
        %v561 = vsel %vm215, %v515, %v521
        %v562 = vsel %vm218, %v560, %v525
        %v563 = vsel %vm218, %v561, %v527
        %v564 = vsel %vm221, %v562, %v531
        %v565 = vsel %vm221, %v563, %v533
        %v566 = vsel %vm224, %v564, %v537
        %v567 = vsel %vm224, %v565, %v539
        %v568 = vsel %vm227, %v566, %v543
        %v569 = vsel %vm227, %v567, %v545
        %v570 = vsel %vm230, %v568, %v549
        %v571 = vsel %vm230, %v569, %v551
        %v572 = vsel %vm233, %v570, %v555
        %v573 = vsel %vm233, %v571, %v557
        %574 = vrot.lane.b32.xlu0 %v446, 124
        %v575 = vpop.permute.xlu0 %574
        %576 = vrot.lane.b32.xlu0 %v447, 124
        %v577 = vpop.permute.xlu0 %576
        %580 = vrot.lane.b32.xlu0 %v446, 12
        %v581 = vpop.permute.xlu0 %580
        %582 = vrot.lane.b32.xlu0 %v447, 12
        %v583 = vpop.permute.xlu0 %582
        %586 = vrot.lane.b32.xlu0 %v446, 28
        %v587 = vpop.permute.xlu0 %586
        %588 = vrot.lane.b32.xlu0 %v447, 28
        %v589 = vpop.permute.xlu0 %588
        %592 = vrot.lane.b32.xlu0 %v446, 44
        %v593 = vpop.permute.xlu0 %592
        %594 = vrot.lane.b32.xlu0 %v447, 44
        %v595 = vpop.permute.xlu0 %594
        %598 = vrot.lane.b32.xlu0 %v446, 60
        %v599 = vpop.permute.xlu0 %598
        %600 = vrot.lane.b32.xlu0 %v447, 60
        %v601 = vpop.permute.xlu0 %600
        %604 = vrot.lane.b32.xlu0 %v446, 76
        %v605 = vpop.permute.xlu0 %604
        %606 = vrot.lane.b32.xlu0 %v447, 76
        %v607 = vpop.permute.xlu0 %606
        %610 = vrot.lane.b32.xlu0 %v446, 92
        %v611 = vpop.permute.xlu0 %610
        %612 = vrot.lane.b32.xlu0 %v447, 92
        %v613 = vpop.permute.xlu0 %612
        %616 = vrot.lane.b32.xlu0 %v446, 108
        %v617 = vpop.permute.xlu0 %616
        %618 = vrot.lane.b32.xlu0 %v447, 108
        %v619 = vpop.permute.xlu0 %618
        %v622 = vsel %vm215, %v575, %v581
        %v623 = vsel %vm215, %v577, %v583
        %v624 = vsel %vm218, %v622, %v587
        %v625 = vsel %vm218, %v623, %v589
        %v626 = vsel %vm221, %v624, %v593
        %v627 = vsel %vm221, %v625, %v595
        %v628 = vsel %vm224, %v626, %v599
        %v629 = vsel %vm224, %v627, %v601
        %v630 = vsel %vm227, %v628, %v605
        %v631 = vsel %vm227, %v629, %v607
        %v632 = vsel %vm230, %v630, %v611
        %v633 = vsel %vm230, %v631, %v613
        %v634 = vsel %vm233, %v632, %v617
        %v635 = vsel %vm233, %v633, %v619
        %v636 = vld [vmem:[%s1 + $0x1] sm:$0x1]
        %v637 = vlaneseq
        %v638 = vshrl.u32 %v637, 7
        %v639 = vsub.s32 0, %v638
        %v640 = vrot.slane %v636, %v639
        %v641 = vmul.f32 %v640, %v510
        %v642 = vmul.f32 %v640, %v511
        %v643 = vadd.f32 %v385, %v641
        %v644 = vadd.f32 %v386, %v642
        %v645 = vld [vmem:[%s1 + $0x5] sm:$0x1]
        %v646 = vlaneseq
        %v647 = vshrl.u32 %v646, 7
        %v648 = vsub.s32 0, %v647
        %v649 = vrot.slane %v645, %v648
        %v650 = vmul.f32 %v649, %v572
        %v651 = vmul.f32 %v649, %v573
        %v652 = vadd.f32 %v643, %v650
        %v653 = vadd.f32 %v644, %v651
        %v654 = vld [vmem:[%s1 + $0x9] sm:$0x1]
        %v655 = vlaneseq
        %v656 = vshrl.u32 %v655, 7
        %v657 = vsub.s32 0, %v656
        %v658 = vrot.slane %v654, %v657
        %v659 = vmul.f32 %v658, %v634
        %v660 = vmul.f32 %v658, %v635
        %v661 = vadd.f32 %v652, %v659
        %v662 = vadd.f32 %v653, %v660
        %v663 = vld [vmem:[%s1 + $0xd] sm:$0x1]
        %v664 = vlaneseq
        %v665 = vshrl.u32 %v664, 7
        %v666 = vsub.s32 0, %v665
        %v667 = vrot.slane %v663, %v666
        %v668 = vmul.f32 %v667, %v510
        %v669 = vmul.f32 %v667, %v511
        %v670 = vadd.f32 %v412, %v668
        %v671 = vadd.f32 %v413, %v669
        %v672 = vld [vmem:[%s1 + $0x11] sm:$0x1]
        %v673 = vlaneseq
        %v674 = vshrl.u32 %v673, 7
        %v675 = vsub.s32 0, %v674
        %v676 = vrot.slane %v672, %v675
        %v677 = vmul.f32 %v676, %v572
        %v678 = vmul.f32 %v676, %v573
        %v679 = vadd.f32 %v670, %v677
        %v680 = vadd.f32 %v671, %v678
        %v681 = vld [vmem:[%s1 + $0x15] sm:$0x1]
        %v682 = vlaneseq
        %v683 = vshrl.u32 %v682, 7
        %v684 = vsub.s32 0, %v683
        %v685 = vrot.slane %v681, %v684
        %v686 = vmul.f32 %v685, %v634
        %v687 = vmul.f32 %v685, %v635
        %v688 = vadd.f32 %v679, %v686
        %v689 = vadd.f32 %v680, %v687
        %v690 = vld [vmem:[%s1 + $0x19] sm:$0x1]
        %v691 = vlaneseq
        %v692 = vshrl.u32 %v691, 7
        %v693 = vsub.s32 0, %v692
        %v694 = vrot.slane %v690, %v693
        %v695 = vmul.f32 %v694, %v510
        %v696 = vmul.f32 %v694, %v511
        %v697 = vadd.f32 %v439, %v695
        %v698 = vadd.f32 %v440, %v696
        %v699 = vld [vmem:[%s1 + $0x1d] sm:$0x1]
        %v700 = vlaneseq
        %v701 = vshrl.u32 %v700, 7
        %v702 = vsub.s32 0, %v701
        %v703 = vrot.slane %v699, %v702
        %v704 = vmul.f32 %v703, %v572
        %v705 = vmul.f32 %v703, %v573
        %v706 = vadd.f32 %v697, %v704
        %v707 = vadd.f32 %v698, %v705
        %v708 = vld [vmem:[%s1 + $0x21] sm:$0x1]
        %v709 = vlaneseq
        %v710 = vshrl.u32 %v709, 7
        %v711 = vsub.s32 0, %v710
        %v712 = vrot.slane %v708, %v711
        %v713 = vmul.f32 %v712, %v634
        %v714 = vmul.f32 %v712, %v635
        %v715 = vadd.f32 %v706, %v713
        %v716 = vadd.f32 %v707, %v714
        %s717 = sadd.s32 %s157, 6
        %s718 = smul.addr %s717, 4
        %s719 = scalar_lea.vmem %s155, %s718
        %v720 = vld [vmem:[%s719] sm:$0xf]
        %v721 = vld [vmem:[%s719 + $0x4] sm:$0x7]
        %v722 = vunpack.c.l.bf16 %v720
        %v723 = vunpack.c.l.bf16 %v721
        %726 = vrot.lane.b32.xlu0 %v722, 126
        %v727 = vpop.permute.xlu0 %726
        %728 = vrot.lane.b32.xlu0 %v723, 126
        %v729 = vpop.permute.xlu0 %728
        %732 = vrot.lane.b32.xlu0 %v722, 14
        %v733 = vpop.permute.xlu0 %732
        %734 = vrot.lane.b32.xlu0 %v723, 14
        %v735 = vpop.permute.xlu0 %734
        %738 = vrot.lane.b32.xlu0 %v722, 30
        %v739 = vpop.permute.xlu0 %738
        %740 = vrot.lane.b32.xlu0 %v723, 30
        %v741 = vpop.permute.xlu0 %740
        %744 = vrot.lane.b32.xlu0 %v722, 46
        %v745 = vpop.permute.xlu0 %744
        %746 = vrot.lane.b32.xlu0 %v723, 46
        %v747 = vpop.permute.xlu0 %746
        %750 = vrot.lane.b32.xlu0 %v722, 62
        %v751 = vpop.permute.xlu0 %750
        %752 = vrot.lane.b32.xlu0 %v723, 62
        %v753 = vpop.permute.xlu0 %752
        %756 = vrot.lane.b32.xlu0 %v722, 78
        %v757 = vpop.permute.xlu0 %756
        %758 = vrot.lane.b32.xlu0 %v723, 78
        %v759 = vpop.permute.xlu0 %758
        %762 = vrot.lane.b32.xlu0 %v722, 94
        %v763 = vpop.permute.xlu0 %762
        %764 = vrot.lane.b32.xlu0 %v723, 94
        %v765 = vpop.permute.xlu0 %764
        %768 = vrot.lane.b32.xlu0 %v722, 110
        %v769 = vpop.permute.xlu0 %768
        %770 = vrot.lane.b32.xlu0 %v723, 110
        %v771 = vpop.permute.xlu0 %770
        %v774 = vsel %vm215, %v727, %v733
        %v775 = vsel %vm215, %v729, %v735
        %v776 = vsel %vm218, %v774, %v739
        %v777 = vsel %vm218, %v775, %v741
        %v778 = vsel %vm221, %v776, %v745
        %v779 = vsel %vm221, %v777, %v747
        %v780 = vsel %vm224, %v778, %v751
        %v781 = vsel %vm224, %v779, %v753
        %v782 = vsel %vm227, %v780, %v757
        %v783 = vsel %vm227, %v781, %v759
        %v784 = vsel %vm230, %v782, %v763
        %v785 = vsel %vm230, %v783, %v765
        %v786 = vsel %vm233, %v784, %v769
        %v787 = vsel %vm233, %v785, %v771
        %788 = vrot.lane.b32.xlu0 %v722, 125
        %v789 = vpop.permute.xlu0 %788
        %790 = vrot.lane.b32.xlu0 %v723, 125
        %v791 = vpop.permute.xlu0 %790
        %794 = vrot.lane.b32.xlu0 %v722, 13
        %v795 = vpop.permute.xlu0 %794
        %796 = vrot.lane.b32.xlu0 %v723, 13
        %v797 = vpop.permute.xlu0 %796
        %800 = vrot.lane.b32.xlu0 %v722, 29
        %v801 = vpop.permute.xlu0 %800
        %802 = vrot.lane.b32.xlu0 %v723, 29
        %v803 = vpop.permute.xlu0 %802
        %806 = vrot.lane.b32.xlu0 %v722, 45
        %v807 = vpop.permute.xlu0 %806
        %808 = vrot.lane.b32.xlu0 %v723, 45
        %v809 = vpop.permute.xlu0 %808
        %812 = vrot.lane.b32.xlu0 %v722, 61
        %v813 = vpop.permute.xlu0 %812
        %814 = vrot.lane.b32.xlu0 %v723, 61
        %v815 = vpop.permute.xlu0 %814
        %818 = vrot.lane.b32.xlu0 %v722, 77
        %v819 = vpop.permute.xlu0 %818
        %820 = vrot.lane.b32.xlu0 %v723, 77
        %v821 = vpop.permute.xlu0 %820
        %824 = vrot.lane.b32.xlu0 %v722, 93
        %v825 = vpop.permute.xlu0 %824
        %826 = vrot.lane.b32.xlu0 %v723, 93
        %v827 = vpop.permute.xlu0 %826
        %830 = vrot.lane.b32.xlu0 %v722, 109
        %v831 = vpop.permute.xlu0 %830
        %832 = vrot.lane.b32.xlu0 %v723, 109
        %v833 = vpop.permute.xlu0 %832
        %v836 = vsel %vm215, %v789, %v795
        %v837 = vsel %vm215, %v791, %v797
        %v838 = vsel %vm218, %v836, %v801
        %v839 = vsel %vm218, %v837, %v803
        %v840 = vsel %vm221, %v838, %v807
        %v841 = vsel %vm221, %v839, %v809
        %v842 = vsel %vm224, %v840, %v813
        %v843 = vsel %vm224, %v841, %v815
        %v844 = vsel %vm227, %v842, %v819
        %v845 = vsel %vm227, %v843, %v821
        %v846 = vsel %vm230, %v844, %v825
        %v847 = vsel %vm230, %v845, %v827
        %v848 = vsel %vm233, %v846, %v831
        %v849 = vsel %vm233, %v847, %v833
        %850 = vrot.lane.b32.xlu0 %v722, 124
        %v851 = vpop.permute.xlu0 %850
        %852 = vrot.lane.b32.xlu0 %v723, 124
        %v853 = vpop.permute.xlu0 %852
        %856 = vrot.lane.b32.xlu0 %v722, 12
        %v857 = vpop.permute.xlu0 %856
        %858 = vrot.lane.b32.xlu0 %v723, 12
        %v859 = vpop.permute.xlu0 %858
        %862 = vrot.lane.b32.xlu0 %v722, 28
        %v863 = vpop.permute.xlu0 %862
        %864 = vrot.lane.b32.xlu0 %v723, 28
        %v865 = vpop.permute.xlu0 %864
        %868 = vrot.lane.b32.xlu0 %v722, 44
        %v869 = vpop.permute.xlu0 %868
        %870 = vrot.lane.b32.xlu0 %v723, 44
        %v871 = vpop.permute.xlu0 %870
        %874 = vrot.lane.b32.xlu0 %v722, 60
        %v875 = vpop.permute.xlu0 %874
        %876 = vrot.lane.b32.xlu0 %v723, 60
        %v877 = vpop.permute.xlu0 %876
        %880 = vrot.lane.b32.xlu0 %v722, 76
        %v881 = vpop.permute.xlu0 %880
        %882 = vrot.lane.b32.xlu0 %v723, 76
        %v883 = vpop.permute.xlu0 %882
        %886 = vrot.lane.b32.xlu0 %v722, 92
        %v887 = vpop.permute.xlu0 %886
        %888 = vrot.lane.b32.xlu0 %v723, 92
        %v889 = vpop.permute.xlu0 %888
        %892 = vrot.lane.b32.xlu0 %v722, 108
        %v893 = vpop.permute.xlu0 %892
        %894 = vrot.lane.b32.xlu0 %v723, 108
        %v895 = vpop.permute.xlu0 %894
        %v898 = vsel %vm215, %v851, %v857
        %v899 = vsel %vm215, %v853, %v859
        %v900 = vsel %vm218, %v898, %v863
        %v901 = vsel %vm218, %v899, %v865
        %v902 = vsel %vm221, %v900, %v869
        %v903 = vsel %vm221, %v901, %v871
        %v904 = vsel %vm224, %v902, %v875
        %v905 = vsel %vm224, %v903, %v877
        %v906 = vsel %vm227, %v904, %v881
        %v907 = vsel %vm227, %v905, %v883
        %v908 = vsel %vm230, %v906, %v887
        %v909 = vsel %vm230, %v907, %v889
        %v910 = vsel %vm233, %v908, %v893
        %v911 = vsel %vm233, %v909, %v895
        %v912 = vld [vmem:[%s1 + $0x2] sm:$0x1]
        %v913 = vlaneseq
        %v914 = vshrl.u32 %v913, 7
        %v915 = vsub.s32 0, %v914
        %v916 = vrot.slane %v912, %v915
        %v917 = vmul.f32 %v916, %v786
        %v918 = vmul.f32 %v916, %v787
        %v919 = vadd.f32 %v661, %v917
        %v920 = vadd.f32 %v662, %v918
        %v921 = vld [vmem:[%s1 + $0x6] sm:$0x1]
        %v922 = vlaneseq
        %v923 = vshrl.u32 %v922, 7
        %v924 = vsub.s32 0, %v923
        %v925 = vrot.slane %v921, %v924
        %v926 = vmul.f32 %v925, %v848
        %v927 = vmul.f32 %v925, %v849
        %v928 = vadd.f32 %v919, %v926
        %v929 = vadd.f32 %v920, %v927
        %v930 = vld [vmem:[%s1 + $0xa] sm:$0x1]
        %v931 = vlaneseq
        %v932 = vshrl.u32 %v931, 7
        %v933 = vsub.s32 0, %v932
        %v934 = vrot.slane %v930, %v933
        %v935 = vmul.f32 %v934, %v910
        %v936 = vmul.f32 %v934, %v911
        %v937 = vadd.f32 %v928, %v935
        %v938 = vadd.f32 %v929, %v936
        %v939 = vld [vmem:[%s1 + $0xe] sm:$0x1]
        %v940 = vlaneseq
        %v941 = vshrl.u32 %v940, 7
        %v942 = vsub.s32 0, %v941
        %v943 = vrot.slane %v939, %v942
        %v944 = vmul.f32 %v943, %v786
        %v945 = vmul.f32 %v943, %v787
        %v946 = vadd.f32 %v688, %v944
        %v947 = vadd.f32 %v689, %v945
        %v948 = vld [vmem:[%s1 + $0x12] sm:$0x1]
        %v949 = vlaneseq
        %v950 = vshrl.u32 %v949, 7
        %v951 = vsub.s32 0, %v950
        %v952 = vrot.slane %v948, %v951
        %v953 = vmul.f32 %v952, %v848
        %v954 = vmul.f32 %v952, %v849
        %v955 = vadd.f32 %v946, %v953
        %v956 = vadd.f32 %v947, %v954
        %v957 = vld [vmem:[%s1 + $0x16] sm:$0x1]
        %v958 = vlaneseq
        %v959 = vshrl.u32 %v958, 7
        %v960 = vsub.s32 0, %v959
        %v961 = vrot.slane %v957, %v960
        %v962 = vmul.f32 %v961, %v910
        %v963 = vmul.f32 %v961, %v911
        %v964 = vadd.f32 %v955, %v962
        %v965 = vadd.f32 %v956, %v963
        %v966 = vld [vmem:[%s1 + $0x1a] sm:$0x1]
        %v967 = vlaneseq
        %v968 = vshrl.u32 %v967, 7
        %v969 = vsub.s32 0, %v968
        %v970 = vrot.slane %v966, %v969
        %v971 = vmul.f32 %v970, %v786
        %v972 = vmul.f32 %v970, %v787
        %v973 = vadd.f32 %v715, %v971
        %v974 = vadd.f32 %v716, %v972
        %v975 = vld [vmem:[%s1 + $0x1e] sm:$0x1]
        %v976 = vlaneseq
        %v977 = vshrl.u32 %v976, 7
        %v978 = vsub.s32 0, %v977
        %v979 = vrot.slane %v975, %v978
        %v980 = vmul.f32 %v979, %v848
        %v981 = vmul.f32 %v979, %v849
        %v982 = vadd.f32 %v973, %v980
        %v983 = vadd.f32 %v974, %v981
        %v984 = vld [vmem:[%s1 + $0x22] sm:$0x1]
        %v985 = vlaneseq
        %v986 = vshrl.u32 %v985, 7
        %v987 = vsub.s32 0, %v986
        %v988 = vrot.slane %v984, %v987
        %v989 = vmul.f32 %v988, %v910
        %v990 = vmul.f32 %v988, %v911
        %v991 = vadd.f32 %v982, %v989
        %v992 = vadd.f32 %v983, %v990
        %s993 = sadd.s32 %s157, 9
        %s994 = smul.addr %s993, 4
        %s995 = scalar_lea.vmem %s155, %s994
        %v996 = vld [vmem:[%s995] sm:$0xf]
        %v997 = vld [vmem:[%s995 + $0x4] sm:$0x7]
        %v998 = vunpack.c.l.bf16 %v996
        %v999 = vunpack.c.l.bf16 %v997
        %1002 = vrot.lane.b32.xlu0 %v998, 126
        %v1003 = vpop.permute.xlu0 %1002
        %1004 = vrot.lane.b32.xlu0 %v999, 126
        %v1005 = vpop.permute.xlu0 %1004
        %1008 = vrot.lane.b32.xlu0 %v998, 14
        %v1009 = vpop.permute.xlu0 %1008
        %1010 = vrot.lane.b32.xlu0 %v999, 14
        %v1011 = vpop.permute.xlu0 %1010
        %1014 = vrot.lane.b32.xlu0 %v998, 30
        %v1015 = vpop.permute.xlu0 %1014
        %1016 = vrot.lane.b32.xlu0 %v999, 30
        %v1017 = vpop.permute.xlu0 %1016
        %1020 = vrot.lane.b32.xlu0 %v998, 46
        %v1021 = vpop.permute.xlu0 %1020
        %1022 = vrot.lane.b32.xlu0 %v999, 46
        %v1023 = vpop.permute.xlu0 %1022
        %1026 = vrot.lane.b32.xlu0 %v998, 62
        %v1027 = vpop.permute.xlu0 %1026
        %1028 = vrot.lane.b32.xlu0 %v999, 62
        %v1029 = vpop.permute.xlu0 %1028
        %1032 = vrot.lane.b32.xlu0 %v998, 78
        %v1033 = vpop.permute.xlu0 %1032
        %1034 = vrot.lane.b32.xlu0 %v999, 78
        %v1035 = vpop.permute.xlu0 %1034
        %1038 = vrot.lane.b32.xlu0 %v998, 94
        %v1039 = vpop.permute.xlu0 %1038
        %1040 = vrot.lane.b32.xlu0 %v999, 94
        %v1041 = vpop.permute.xlu0 %1040
        %1044 = vrot.lane.b32.xlu0 %v998, 110
        %v1045 = vpop.permute.xlu0 %1044
        %1046 = vrot.lane.b32.xlu0 %v999, 110
        %v1047 = vpop.permute.xlu0 %1046
        %v1050 = vsel %vm215, %v1003, %v1009
        %v1051 = vsel %vm215, %v1005, %v1011
        %v1052 = vsel %vm218, %v1050, %v1015
        %v1053 = vsel %vm218, %v1051, %v1017
        %v1054 = vsel %vm221, %v1052, %v1021
        %v1055 = vsel %vm221, %v1053, %v1023
        %v1056 = vsel %vm224, %v1054, %v1027
        %v1057 = vsel %vm224, %v1055, %v1029
        %v1058 = vsel %vm227, %v1056, %v1033
        %v1059 = vsel %vm227, %v1057, %v1035
        %v1060 = vsel %vm230, %v1058, %v1039
        %v1061 = vsel %vm230, %v1059, %v1041
        %v1062 = vsel %vm233, %v1060, %v1045
        %v1063 = vsel %vm233, %v1061, %v1047
        %1064 = vrot.lane.b32.xlu0 %v998, 125
        %v1065 = vpop.permute.xlu0 %1064
        %1066 = vrot.lane.b32.xlu0 %v999, 125
        %v1067 = vpop.permute.xlu0 %1066
        %1070 = vrot.lane.b32.xlu0 %v998, 13
        %v1071 = vpop.permute.xlu0 %1070
        %1072 = vrot.lane.b32.xlu0 %v999, 13
        %v1073 = vpop.permute.xlu0 %1072
        %1076 = vrot.lane.b32.xlu0 %v998, 29
        %v1077 = vpop.permute.xlu0 %1076
        %1078 = vrot.lane.b32.xlu0 %v999, 29
        %v1079 = vpop.permute.xlu0 %1078
        %1082 = vrot.lane.b32.xlu0 %v998, 45
        %v1083 = vpop.permute.xlu0 %1082
        %1084 = vrot.lane.b32.xlu0 %v999, 45
        %v1085 = vpop.permute.xlu0 %1084
        %1088 = vrot.lane.b32.xlu0 %v998, 61
        %v1089 = vpop.permute.xlu0 %1088
        %1090 = vrot.lane.b32.xlu0 %v999, 61
        %v1091 = vpop.permute.xlu0 %1090
        %1094 = vrot.lane.b32.xlu0 %v998, 77
        %v1095 = vpop.permute.xlu0 %1094
        %1096 = vrot.lane.b32.xlu0 %v999, 77
        %v1097 = vpop.permute.xlu0 %1096
        %1100 = vrot.lane.b32.xlu0 %v998, 93
        %v1101 = vpop.permute.xlu0 %1100
        %1102 = vrot.lane.b32.xlu0 %v999, 93
        %v1103 = vpop.permute.xlu0 %1102
        %1106 = vrot.lane.b32.xlu0 %v998, 109
        %v1107 = vpop.permute.xlu0 %1106
        %1108 = vrot.lane.b32.xlu0 %v999, 109
        %v1109 = vpop.permute.xlu0 %1108
        %v1112 = vsel %vm215, %v1065, %v1071
        %v1113 = vsel %vm215, %v1067, %v1073
        %v1114 = vsel %vm218, %v1112, %v1077
        %v1115 = vsel %vm218, %v1113, %v1079
        %v1116 = vsel %vm221, %v1114, %v1083
        %v1117 = vsel %vm221, %v1115, %v1085
        %v1118 = vsel %vm224, %v1116, %v1089
        %v1119 = vsel %vm224, %v1117, %v1091
        %v1120 = vsel %vm227, %v1118, %v1095
        %v1121 = vsel %vm227, %v1119, %v1097
        %v1122 = vsel %vm230, %v1120, %v1101
        %v1123 = vsel %vm230, %v1121, %v1103
        %v1124 = vsel %vm233, %v1122, %v1107
        %v1125 = vsel %vm233, %v1123, %v1109
        %1126 = vrot.lane.b32.xlu0 %v998, 124
        %v1127 = vpop.permute.xlu0 %1126
        %1128 = vrot.lane.b32.xlu0 %v999, 124
        %v1129 = vpop.permute.xlu0 %1128
        %1132 = vrot.lane.b32.xlu0 %v998, 12
        %v1133 = vpop.permute.xlu0 %1132
        %1134 = vrot.lane.b32.xlu0 %v999, 12
        %v1135 = vpop.permute.xlu0 %1134
        %1138 = vrot.lane.b32.xlu0 %v998, 28
        %v1139 = vpop.permute.xlu0 %1138
        %1140 = vrot.lane.b32.xlu0 %v999, 28
        %v1141 = vpop.permute.xlu0 %1140
        %1144 = vrot.lane.b32.xlu0 %v998, 44
        %v1145 = vpop.permute.xlu0 %1144
        %1146 = vrot.lane.b32.xlu0 %v999, 44
        %v1147 = vpop.permute.xlu0 %1146
        %1150 = vrot.lane.b32.xlu0 %v998, 60
        %v1151 = vpop.permute.xlu0 %1150
        %1152 = vrot.lane.b32.xlu0 %v999, 60
        %v1153 = vpop.permute.xlu0 %1152
        %1156 = vrot.lane.b32.xlu0 %v998, 76
        %v1157 = vpop.permute.xlu0 %1156
        %1158 = vrot.lane.b32.xlu0 %v999, 76
        %v1159 = vpop.permute.xlu0 %1158
        %1162 = vrot.lane.b32.xlu0 %v998, 92
        %v1163 = vpop.permute.xlu0 %1162
        %1164 = vrot.lane.b32.xlu0 %v999, 92
        %v1165 = vpop.permute.xlu0 %1164
        %1168 = vrot.lane.b32.xlu0 %v998, 108
        %v1169 = vpop.permute.xlu0 %1168
        %1170 = vrot.lane.b32.xlu0 %v999, 108
        %v1171 = vpop.permute.xlu0 %1170
        %v1174 = vsel %vm215, %v1127, %v1133
        %v1175 = vsel %vm215, %v1129, %v1135
        %v1176 = vsel %vm218, %v1174, %v1139
        %v1177 = vsel %vm218, %v1175, %v1141
        %v1178 = vsel %vm221, %v1176, %v1145
        %v1179 = vsel %vm221, %v1177, %v1147
        %v1180 = vsel %vm224, %v1178, %v1151
        %v1181 = vsel %vm224, %v1179, %v1153
        %v1182 = vsel %vm227, %v1180, %v1157
        %v1183 = vsel %vm227, %v1181, %v1159
        %v1184 = vsel %vm230, %v1182, %v1163
        %v1185 = vsel %vm230, %v1183, %v1165
        %v1186 = vsel %vm233, %v1184, %v1169
        %v1187 = vsel %vm233, %v1185, %v1171
        %v1188 = vld [vmem:[%s1 + $0x3] sm:$0x1]
        %v1189 = vlaneseq
        %v1190 = vshrl.u32 %v1189, 7
        %v1191 = vsub.s32 0, %v1190
        %v1192 = vrot.slane %v1188, %v1191
        %v1193 = vmul.f32 %v1192, %v1062
        %v1194 = vmul.f32 %v1192, %v1063
        %v1195 = vadd.f32 %v937, %v1193
        %v1196 = vadd.f32 %v938, %v1194
        %v1197 = vld [vmem:[%s1 + $0x7] sm:$0x1]
        %v1198 = vlaneseq
        %v1199 = vshrl.u32 %v1198, 7
        %v1200 = vsub.s32 0, %v1199
        %v1201 = vrot.slane %v1197, %v1200
        %v1202 = vmul.f32 %v1201, %v1124
        %v1203 = vmul.f32 %v1201, %v1125
        %v1204 = vadd.f32 %v1195, %v1202
        %v1205 = vadd.f32 %v1196, %v1203
        %v1206 = vld [vmem:[%s1 + $0xb] sm:$0x1]
        %v1207 = vlaneseq
        %v1208 = vshrl.u32 %v1207, 7
        %v1209 = vsub.s32 0, %v1208
        %v1210 = vrot.slane %v1206, %v1209
        %v1211 = vmul.f32 %v1210, %v1186
        %v1212 = vmul.f32 %v1210, %v1187
        %v1213 = vadd.f32 %v1204, %v1211
        %v1214 = vadd.f32 %v1205, %v1212
        %v1215 = vld [vmem:[%s1 + $0xf] sm:$0x1]
        %v1216 = vlaneseq
        %v1217 = vshrl.u32 %v1216, 7
        %v1218 = vsub.s32 0, %v1217
        %v1219 = vrot.slane %v1215, %v1218
        %v1220 = vmul.f32 %v1219, %v1062
        %v1221 = vmul.f32 %v1219, %v1063
        %v1222 = vadd.f32 %v964, %v1220
        %v1223 = vadd.f32 %v965, %v1221
        %v1224 = vld [vmem:[%s1 + $0x13] sm:$0x1]
        %v1225 = vlaneseq
        %v1226 = vshrl.u32 %v1225, 7
        %v1227 = vsub.s32 0, %v1226
        %v1228 = vrot.slane %v1224, %v1227
        %v1229 = vmul.f32 %v1228, %v1124
        %v1230 = vmul.f32 %v1228, %v1125
        %v1231 = vadd.f32 %v1222, %v1229
        %v1232 = vadd.f32 %v1223, %v1230
        %v1233 = vld [vmem:[%s1 + $0x17] sm:$0x1]
        %v1234 = vlaneseq
        %v1235 = vshrl.u32 %v1234, 7
        %v1236 = vsub.s32 0, %v1235
        %v1237 = vrot.slane %v1233, %v1236
        %v1238 = vmul.f32 %v1237, %v1186
        %v1239 = vmul.f32 %v1237, %v1187
        %v1240 = vadd.f32 %v1231, %v1238
        %v1241 = vadd.f32 %v1232, %v1239
        %v1242 = vld [vmem:[%s1 + $0x1b] sm:$0x1]
        %v1243 = vlaneseq
        %v1244 = vshrl.u32 %v1243, 7
        %v1245 = vsub.s32 0, %v1244
        %v1246 = vrot.slane %v1242, %v1245
        %v1247 = vmul.f32 %v1246, %v1062
        %v1248 = vmul.f32 %v1246, %v1063
        %v1249 = vadd.f32 %v991, %v1247
        %v1250 = vadd.f32 %v992, %v1248
        %v1251 = vld [vmem:[%s1 + $0x1f] sm:$0x1]
        %v1252 = vlaneseq
        %v1253 = vshrl.u32 %v1252, 7
        %v1254 = vsub.s32 0, %v1253
        %v1255 = vrot.slane %v1251, %v1254
        %v1256 = vmul.f32 %v1255, %v1124
        %v1257 = vmul.f32 %v1255, %v1125
        %v1258 = vadd.f32 %v1249, %v1256
        %v1259 = vadd.f32 %v1250, %v1257
        %v1260 = vld [vmem:[%s1 + $0x23] sm:$0x1]
        %v1261 = vlaneseq
        %v1262 = vshrl.u32 %v1261, 7
        %v1263 = vsub.s32 0, %v1262
        %v1264 = vrot.slane %v1260, %v1263
        %v1265 = vmul.f32 %v1264, %v1186
        %v1266 = vmul.f32 %v1264, %v1187
        %v1267 = vadd.f32 %v1258, %v1265
        %v1268 = vadd.f32 %v1259, %v1266
        %v1269 = vadd.f32 %v1213, 0.0
        %v1270 = vadd.f32 %v1214, 0.0
        %vm1273 = vcmask 1046528
        %v1274 = vrot.slane %v1240, 1
        %v1275 = vrot.slane %v1241, 1
        %v1276 = vsel %vm1273, %v1274, %v1275
        %v1279 = vadd.f32 %v1269, %v1276
        %v1280 = vadd.f32 %v1270, %v1275
        %vm1283 = vcmask 1045504
        %v1284 = vrot.slane %v1267, 2
        %v1285 = vrot.slane %v1268, 2
        %v1286 = vsel %vm1283, %v1284, %v1285
        %v1289 = vadd.f32 %v1279, %v1286
        %v1290 = vadd.f32 %v1280, %v1285
        %v1291 = vmax.f32 %v1289, 0.0
        %v1292 = vmax.f32 %v1290, 0.0
        %v1293 = vadd.f32 %v1291, 0.0
        %v1294 = vadd.f32 %v1292, 0.0
        %1295 = vrot.lane.b32.xlu0 %v163, 127
        %v1296 = vpop.permute.xlu0 %1295
        %1297 = vrot.lane.b32.xlu0 %v164, 127
        %v1298 = vpop.permute.xlu0 %1297
        %1301 = vrot.lane.b32.xlu0 %v163, 15
        %v1302 = vpop.permute.xlu0 %1301
        %1303 = vrot.lane.b32.xlu0 %v164, 15
        %v1304 = vpop.permute.xlu0 %1303
        %1307 = vrot.lane.b32.xlu0 %v163, 31
        %v1308 = vpop.permute.xlu0 %1307
        %1309 = vrot.lane.b32.xlu0 %v164, 31
        %v1310 = vpop.permute.xlu0 %1309
        %1313 = vrot.lane.b32.xlu0 %v163, 47
        %v1314 = vpop.permute.xlu0 %1313
        %1315 = vrot.lane.b32.xlu0 %v164, 47
        %v1316 = vpop.permute.xlu0 %1315
        %1319 = vrot.lane.b32.xlu0 %v163, 63
        %v1320 = vpop.permute.xlu0 %1319
        %1321 = vrot.lane.b32.xlu0 %v164, 63
        %v1322 = vpop.permute.xlu0 %1321
        %1325 = vrot.lane.b32.xlu0 %v163, 79
        %v1326 = vpop.permute.xlu0 %1325
        %1327 = vrot.lane.b32.xlu0 %v164, 79
        %v1328 = vpop.permute.xlu0 %1327
        %1331 = vrot.lane.b32.xlu0 %v163, 95
        %v1332 = vpop.permute.xlu0 %1331
        %1333 = vrot.lane.b32.xlu0 %v164, 95
        %v1334 = vpop.permute.xlu0 %1333
        %1337 = vrot.lane.b32.xlu0 %v163, 111
        %v1338 = vpop.permute.xlu0 %1337
        %1339 = vrot.lane.b32.xlu0 %v164, 111
        %v1340 = vpop.permute.xlu0 %1339
        %v1343 = vsel %vm215, %v1296, %v1302
        %v1344 = vsel %vm215, %v1298, %v1304
        %v1345 = vsel %vm218, %v1343, %v1308
        %v1346 = vsel %vm218, %v1344, %v1310
        %v1347 = vsel %vm221, %v1345, %v1314
        %v1348 = vsel %vm221, %v1346, %v1316
        %v1349 = vsel %vm224, %v1347, %v1320
        %v1350 = vsel %vm224, %v1348, %v1322
        %v1351 = vsel %vm227, %v1349, %v1326
        %v1352 = vsel %vm227, %v1350, %v1328
        %v1353 = vsel %vm230, %v1351, %v1332
        %v1354 = vsel %vm230, %v1352, %v1334
        %v1355 = vsel %vm233, %v1353, %v1338
        %v1356 = vsel %vm233, %v1354, %v1340
        %1357 = vrot.lane.b32.xlu0 %v163, 123
        %v1358 = vpop.permute.xlu0 %1357
        %1359 = vrot.lane.b32.xlu0 %v164, 123
        %v1360 = vpop.permute.xlu0 %1359
        %1363 = vrot.lane.b32.xlu0 %v163, 11
        %v1364 = vpop.permute.xlu0 %1363
        %1365 = vrot.lane.b32.xlu0 %v164, 11
        %v1366 = vpop.permute.xlu0 %1365
        %1369 = vrot.lane.b32.xlu0 %v163, 27
        %v1370 = vpop.permute.xlu0 %1369
        %1371 = vrot.lane.b32.xlu0 %v164, 27
        %v1372 = vpop.permute.xlu0 %1371
        %1375 = vrot.lane.b32.xlu0 %v163, 43
        %v1376 = vpop.permute.xlu0 %1375
        %1377 = vrot.lane.b32.xlu0 %v164, 43
        %v1378 = vpop.permute.xlu0 %1377
        %1381 = vrot.lane.b32.xlu0 %v163, 59
        %v1382 = vpop.permute.xlu0 %1381
        %1383 = vrot.lane.b32.xlu0 %v164, 59
        %v1384 = vpop.permute.xlu0 %1383
        %1387 = vrot.lane.b32.xlu0 %v163, 75
        %v1388 = vpop.permute.xlu0 %1387
        %1389 = vrot.lane.b32.xlu0 %v164, 75
        %v1390 = vpop.permute.xlu0 %1389
        %1393 = vrot.lane.b32.xlu0 %v163, 91
        %v1394 = vpop.permute.xlu0 %1393
        %1395 = vrot.lane.b32.xlu0 %v164, 91
        %v1396 = vpop.permute.xlu0 %1395
        %1399 = vrot.lane.b32.xlu0 %v163, 107
        %v1400 = vpop.permute.xlu0 %1399
        %1401 = vrot.lane.b32.xlu0 %v164, 107
        %v1402 = vpop.permute.xlu0 %1401
        %v1405 = vsel %vm215, %v1358, %v1364
        %v1406 = vsel %vm215, %v1360, %v1366
        %v1407 = vsel %vm218, %v1405, %v1370
        %v1408 = vsel %vm218, %v1406, %v1372
        %v1409 = vsel %vm221, %v1407, %v1376
        %v1410 = vsel %vm221, %v1408, %v1378
        %v1411 = vsel %vm224, %v1409, %v1382
        %v1412 = vsel %vm224, %v1410, %v1384
        %v1413 = vsel %vm227, %v1411, %v1388
        %v1414 = vsel %vm227, %v1412, %v1390
        %v1415 = vsel %vm230, %v1413, %v1394
        %v1416 = vsel %vm230, %v1414, %v1396
        %v1417 = vsel %vm233, %v1415, %v1400
        %v1418 = vsel %vm233, %v1416, %v1402
        %v1419 = vld [vmem:[%s1 + $0x24] sm:$0x1]
        %v1420 = vlaneseq
        %v1421 = vshrl.u32 %v1420, 7
        %v1422 = vsub.s32 0, %v1421
        %v1423 = vrot.slane %v1419, %v1422
        %v1424 = vmul.f32 %v1423, %v1355
        %v1425 = vmul.f32 %v1423, %v1356
        %v1426 = vadd.f32 %v1424, 0.0
        %v1427 = vadd.f32 %v1425, 0.0
        %v1428 = vld [vmem:[%s1 + $0x28] sm:$0x1]
        %v1429 = vlaneseq
        %v1430 = vshrl.u32 %v1429, 7
        %v1431 = vsub.s32 0, %v1430
        %v1432 = vrot.slane %v1428, %v1431
        %v1433 = vmul.f32 %v1432, %v296
        %v1434 = vmul.f32 %v1432, %v297
        %v1435 = vadd.f32 %v1426, %v1433
        %v1436 = vadd.f32 %v1427, %v1434
        %v1437 = vld [vmem:[%s1 + $0x2c] sm:$0x1]
        %v1438 = vlaneseq
        %v1439 = vshrl.u32 %v1438, 7
        %v1440 = vsub.s32 0, %v1439
        %v1441 = vrot.slane %v1437, %v1440
        %v1442 = vmul.f32 %v1441, %v1417
        %v1443 = vmul.f32 %v1441, %v1418
        %v1444 = vadd.f32 %v1435, %v1442
        %v1445 = vadd.f32 %v1436, %v1443
        %v1446 = vld [vmem:[%s1 + $0x30] sm:$0x1]
        %v1447 = vlaneseq
        %v1448 = vshrl.u32 %v1447, 7
        %v1449 = vsub.s32 0, %v1448
        %v1450 = vrot.slane %v1446, %v1449
        %v1451 = vmul.f32 %v1450, %v1355
        %v1452 = vmul.f32 %v1450, %v1356
        %v1453 = vadd.f32 %v1451, 0.0
        %v1454 = vadd.f32 %v1452, 0.0
        %v1455 = vld [vmem:[%s1 + $0x34] sm:$0x1]
        %v1456 = vlaneseq
        %v1457 = vshrl.u32 %v1456, 7
        %v1458 = vsub.s32 0, %v1457
        %v1459 = vrot.slane %v1455, %v1458
        %v1460 = vmul.f32 %v1459, %v296
        %v1461 = vmul.f32 %v1459, %v297
        %v1462 = vadd.f32 %v1453, %v1460
        %v1463 = vadd.f32 %v1454, %v1461
        %v1464 = vld [vmem:[%s1 + $0x38] sm:$0x1]
        %v1465 = vlaneseq
        %v1466 = vshrl.u32 %v1465, 7
        %v1467 = vsub.s32 0, %v1466
        %v1468 = vrot.slane %v1464, %v1467
        %v1469 = vmul.f32 %v1468, %v1417
        %v1470 = vmul.f32 %v1468, %v1418
        %v1471 = vadd.f32 %v1462, %v1469
        %v1472 = vadd.f32 %v1463, %v1470
        %v1473 = vld [vmem:[%s1 + $0x3c] sm:$0x1]
        %v1474 = vlaneseq
        %v1475 = vshrl.u32 %v1474, 7
        %v1476 = vsub.s32 0, %v1475
        %v1477 = vrot.slane %v1473, %v1476
        %v1478 = vmul.f32 %v1477, %v1355
        %v1479 = vmul.f32 %v1477, %v1356
        %v1480 = vadd.f32 %v1478, 0.0
        %v1481 = vadd.f32 %v1479, 0.0
        %v1482 = vld [vmem:[%s1 + $0x40] sm:$0x1]
        %v1483 = vlaneseq
        %v1484 = vshrl.u32 %v1483, 7
        %v1485 = vsub.s32 0, %v1484
        %v1486 = vrot.slane %v1482, %v1485
        %v1487 = vmul.f32 %v1486, %v296
        %v1488 = vmul.f32 %v1486, %v297
        %v1489 = vadd.f32 %v1480, %v1487
        %v1490 = vadd.f32 %v1481, %v1488
        %v1491 = vld [vmem:[%s1 + $0x44] sm:$0x1]
        %v1492 = vlaneseq
        %v1493 = vshrl.u32 %v1492, 7
        %v1494 = vsub.s32 0, %v1493
        %v1495 = vrot.slane %v1491, %v1494
        %v1496 = vmul.f32 %v1495, %v1417
        %v1497 = vmul.f32 %v1495, %v1418
        %v1498 = vadd.f32 %v1489, %v1496
        %v1499 = vadd.f32 %v1490, %v1497
        %1500 = vrot.lane.b32.xlu0 %v446, 127
        %v1501 = vpop.permute.xlu0 %1500
        %1502 = vrot.lane.b32.xlu0 %v447, 127
        %v1503 = vpop.permute.xlu0 %1502
        %1506 = vrot.lane.b32.xlu0 %v446, 15
        %v1507 = vpop.permute.xlu0 %1506
        %1508 = vrot.lane.b32.xlu0 %v447, 15
        %v1509 = vpop.permute.xlu0 %1508
        %1512 = vrot.lane.b32.xlu0 %v446, 31
        %v1513 = vpop.permute.xlu0 %1512
        %1514 = vrot.lane.b32.xlu0 %v447, 31
        %v1515 = vpop.permute.xlu0 %1514
        %1518 = vrot.lane.b32.xlu0 %v446, 47
        %v1519 = vpop.permute.xlu0 %1518
        %1520 = vrot.lane.b32.xlu0 %v447, 47
        %v1521 = vpop.permute.xlu0 %1520
        %1524 = vrot.lane.b32.xlu0 %v446, 63
        %v1525 = vpop.permute.xlu0 %1524
        %1526 = vrot.lane.b32.xlu0 %v447, 63
        %v1527 = vpop.permute.xlu0 %1526
        %1530 = vrot.lane.b32.xlu0 %v446, 79
        %v1531 = vpop.permute.xlu0 %1530
        %1532 = vrot.lane.b32.xlu0 %v447, 79
        %v1533 = vpop.permute.xlu0 %1532
        %1536 = vrot.lane.b32.xlu0 %v446, 95
        %v1537 = vpop.permute.xlu0 %1536
        %1538 = vrot.lane.b32.xlu0 %v447, 95
        %v1539 = vpop.permute.xlu0 %1538
        %1542 = vrot.lane.b32.xlu0 %v446, 111
        %v1543 = vpop.permute.xlu0 %1542
        %1544 = vrot.lane.b32.xlu0 %v447, 111
        %v1545 = vpop.permute.xlu0 %1544
        %v1548 = vsel %vm215, %v1501, %v1507
        %v1549 = vsel %vm215, %v1503, %v1509
        %v1550 = vsel %vm218, %v1548, %v1513
        %v1551 = vsel %vm218, %v1549, %v1515
        %v1552 = vsel %vm221, %v1550, %v1519
        %v1553 = vsel %vm221, %v1551, %v1521
        %v1554 = vsel %vm224, %v1552, %v1525
        %v1555 = vsel %vm224, %v1553, %v1527
        %v1556 = vsel %vm227, %v1554, %v1531
        %v1557 = vsel %vm227, %v1555, %v1533
        %v1558 = vsel %vm230, %v1556, %v1537
        %v1559 = vsel %vm230, %v1557, %v1539
        %v1560 = vsel %vm233, %v1558, %v1543
        %v1561 = vsel %vm233, %v1559, %v1545
        %1562 = vrot.lane.b32.xlu0 %v446, 123
        %v1563 = vpop.permute.xlu0 %1562
        %1564 = vrot.lane.b32.xlu0 %v447, 123
        %v1565 = vpop.permute.xlu0 %1564
        %1568 = vrot.lane.b32.xlu0 %v446, 11
        %v1569 = vpop.permute.xlu0 %1568
        %1570 = vrot.lane.b32.xlu0 %v447, 11
        %v1571 = vpop.permute.xlu0 %1570
        %1574 = vrot.lane.b32.xlu0 %v446, 27
        %v1575 = vpop.permute.xlu0 %1574
        %1576 = vrot.lane.b32.xlu0 %v447, 27
        %v1577 = vpop.permute.xlu0 %1576
        %1580 = vrot.lane.b32.xlu0 %v446, 43
        %v1581 = vpop.permute.xlu0 %1580
        %1582 = vrot.lane.b32.xlu0 %v447, 43
        %v1583 = vpop.permute.xlu0 %1582
        %1586 = vrot.lane.b32.xlu0 %v446, 59
        %v1587 = vpop.permute.xlu0 %1586
        %1588 = vrot.lane.b32.xlu0 %v447, 59
        %v1589 = vpop.permute.xlu0 %1588
        %1592 = vrot.lane.b32.xlu0 %v446, 75
        %v1593 = vpop.permute.xlu0 %1592
        %1594 = vrot.lane.b32.xlu0 %v447, 75
        %v1595 = vpop.permute.xlu0 %1594
        %1598 = vrot.lane.b32.xlu0 %v446, 91
        %v1599 = vpop.permute.xlu0 %1598
        %1600 = vrot.lane.b32.xlu0 %v447, 91
        %v1601 = vpop.permute.xlu0 %1600
        %1604 = vrot.lane.b32.xlu0 %v446, 107
        %v1605 = vpop.permute.xlu0 %1604
        %1606 = vrot.lane.b32.xlu0 %v447, 107
        %v1607 = vpop.permute.xlu0 %1606
        %v1610 = vsel %vm215, %v1563, %v1569
        %v1611 = vsel %vm215, %v1565, %v1571
        %v1612 = vsel %vm218, %v1610, %v1575
        %v1613 = vsel %vm218, %v1611, %v1577
        %v1614 = vsel %vm221, %v1612, %v1581
        %v1615 = vsel %vm221, %v1613, %v1583
        %v1616 = vsel %vm224, %v1614, %v1587
        %v1617 = vsel %vm224, %v1615, %v1589
        %v1618 = vsel %vm227, %v1616, %v1593
        %v1619 = vsel %vm227, %v1617, %v1595
        %v1620 = vsel %vm230, %v1618, %v1599
        %v1621 = vsel %vm230, %v1619, %v1601
        %v1622 = vsel %vm233, %v1620, %v1605
        %v1623 = vsel %vm233, %v1621, %v1607
        %v1624 = vld [vmem:[%s1 + $0x25] sm:$0x1]
        %v1625 = vlaneseq
        %v1626 = vshrl.u32 %v1625, 7
        %v1627 = vsub.s32 0, %v1626
        %v1628 = vrot.slane %v1624, %v1627
        %v1629 = vmul.f32 %v1628, %v1560
        %v1630 = vmul.f32 %v1628, %v1561
        %v1631 = vadd.f32 %v1444, %v1629
        %v1632 = vadd.f32 %v1445, %v1630
        %v1633 = vld [vmem:[%s1 + $0x29] sm:$0x1]
        %v1634 = vlaneseq
        %v1635 = vshrl.u32 %v1634, 7
        %v1636 = vsub.s32 0, %v1635
        %v1637 = vrot.slane %v1633, %v1636
        %v1638 = vmul.f32 %v1637, %v572
        %v1639 = vmul.f32 %v1637, %v573
        %v1640 = vadd.f32 %v1631, %v1638
        %v1641 = vadd.f32 %v1632, %v1639
        %v1642 = vld [vmem:[%s1 + $0x2d] sm:$0x1]
        %v1643 = vlaneseq
        %v1644 = vshrl.u32 %v1643, 7
        %v1645 = vsub.s32 0, %v1644
        %v1646 = vrot.slane %v1642, %v1645
        %v1647 = vmul.f32 %v1646, %v1622
        %v1648 = vmul.f32 %v1646, %v1623
        %v1649 = vadd.f32 %v1640, %v1647
        %v1650 = vadd.f32 %v1641, %v1648
        %v1651 = vld [vmem:[%s1 + $0x31] sm:$0x1]
        %v1652 = vlaneseq
        %v1653 = vshrl.u32 %v1652, 7
        %v1654 = vsub.s32 0, %v1653
        %v1655 = vrot.slane %v1651, %v1654
        %v1656 = vmul.f32 %v1655, %v1560
        %v1657 = vmul.f32 %v1655, %v1561
        %v1658 = vadd.f32 %v1471, %v1656
        %v1659 = vadd.f32 %v1472, %v1657
        %v1660 = vld [vmem:[%s1 + $0x35] sm:$0x1]
        %v1661 = vlaneseq
        %v1662 = vshrl.u32 %v1661, 7
        %v1663 = vsub.s32 0, %v1662
        %v1664 = vrot.slane %v1660, %v1663
        %v1665 = vmul.f32 %v1664, %v572
        %v1666 = vmul.f32 %v1664, %v573
        %v1667 = vadd.f32 %v1658, %v1665
        %v1668 = vadd.f32 %v1659, %v1666
        %v1669 = vld [vmem:[%s1 + $0x39] sm:$0x1]
        %v1670 = vlaneseq
        %v1671 = vshrl.u32 %v1670, 7
        %v1672 = vsub.s32 0, %v1671
        %v1673 = vrot.slane %v1669, %v1672
        %v1674 = vmul.f32 %v1673, %v1622
        %v1675 = vmul.f32 %v1673, %v1623
        %v1676 = vadd.f32 %v1667, %v1674
        %v1677 = vadd.f32 %v1668, %v1675
        %v1678 = vld [vmem:[%s1 + $0x3d] sm:$0x1]
        %v1679 = vlaneseq
        %v1680 = vshrl.u32 %v1679, 7
        %v1681 = vsub.s32 0, %v1680
        %v1682 = vrot.slane %v1678, %v1681
        %v1683 = vmul.f32 %v1682, %v1560
        %v1684 = vmul.f32 %v1682, %v1561
        %v1685 = vadd.f32 %v1498, %v1683
        %v1686 = vadd.f32 %v1499, %v1684
        %v1687 = vld [vmem:[%s1 + $0x41] sm:$0x1]
        %v1688 = vlaneseq
        %v1689 = vshrl.u32 %v1688, 7
        %v1690 = vsub.s32 0, %v1689
        %v1691 = vrot.slane %v1687, %v1690
        %v1692 = vmul.f32 %v1691, %v572
        %v1693 = vmul.f32 %v1691, %v573
        %v1694 = vadd.f32 %v1685, %v1692
        %v1695 = vadd.f32 %v1686, %v1693
        %v1696 = vld [vmem:[%s1 + $0x45] sm:$0x1]
        %v1697 = vlaneseq
        %v1698 = vshrl.u32 %v1697, 7
        %v1699 = vsub.s32 0, %v1698
        %v1700 = vrot.slane %v1696, %v1699
        %v1701 = vmul.f32 %v1700, %v1622
        %v1702 = vmul.f32 %v1700, %v1623
        %v1703 = vadd.f32 %v1694, %v1701
        %v1704 = vadd.f32 %v1695, %v1702
        %1705 = vrot.lane.b32.xlu0 %v722, 127
        %v1706 = vpop.permute.xlu0 %1705
        %1707 = vrot.lane.b32.xlu0 %v723, 127
        %v1708 = vpop.permute.xlu0 %1707
        %1711 = vrot.lane.b32.xlu0 %v722, 15
        %v1712 = vpop.permute.xlu0 %1711
        %1713 = vrot.lane.b32.xlu0 %v723, 15
        %v1714 = vpop.permute.xlu0 %1713
        %1717 = vrot.lane.b32.xlu0 %v722, 31
        %v1718 = vpop.permute.xlu0 %1717
        %1719 = vrot.lane.b32.xlu0 %v723, 31
        %v1720 = vpop.permute.xlu0 %1719
        %1723 = vrot.lane.b32.xlu0 %v722, 47
        %v1724 = vpop.permute.xlu0 %1723
        %1725 = vrot.lane.b32.xlu0 %v723, 47
        %v1726 = vpop.permute.xlu0 %1725
        %1729 = vrot.lane.b32.xlu0 %v722, 63
        %v1730 = vpop.permute.xlu0 %1729
        %1731 = vrot.lane.b32.xlu0 %v723, 63
        %v1732 = vpop.permute.xlu0 %1731
        %1735 = vrot.lane.b32.xlu0 %v722, 79
        %v1736 = vpop.permute.xlu0 %1735
        %1737 = vrot.lane.b32.xlu0 %v723, 79
        %v1738 = vpop.permute.xlu0 %1737
        %1741 = vrot.lane.b32.xlu0 %v722, 95
        %v1742 = vpop.permute.xlu0 %1741
        %1743 = vrot.lane.b32.xlu0 %v723, 95
        %v1744 = vpop.permute.xlu0 %1743
        %1747 = vrot.lane.b32.xlu0 %v722, 111
        %v1748 = vpop.permute.xlu0 %1747
        %1749 = vrot.lane.b32.xlu0 %v723, 111
        %v1750 = vpop.permute.xlu0 %1749
        %v1753 = vsel %vm215, %v1706, %v1712
        %v1754 = vsel %vm215, %v1708, %v1714
        %v1755 = vsel %vm218, %v1753, %v1718
        %v1756 = vsel %vm218, %v1754, %v1720
        %v1757 = vsel %vm221, %v1755, %v1724
        %v1758 = vsel %vm221, %v1756, %v1726
        %v1759 = vsel %vm224, %v1757, %v1730
        %v1760 = vsel %vm224, %v1758, %v1732
        %v1761 = vsel %vm227, %v1759, %v1736
        %v1762 = vsel %vm227, %v1760, %v1738
        %v1763 = vsel %vm230, %v1761, %v1742
        %v1764 = vsel %vm230, %v1762, %v1744
        %v1765 = vsel %vm233, %v1763, %v1748
        %v1766 = vsel %vm233, %v1764, %v1750
        %1767 = vrot.lane.b32.xlu0 %v722, 123
        %v1768 = vpop.permute.xlu0 %1767
        %1769 = vrot.lane.b32.xlu0 %v723, 123
        %v1770 = vpop.permute.xlu0 %1769
        %1773 = vrot.lane.b32.xlu0 %v722, 11
        %v1774 = vpop.permute.xlu0 %1773
        %1775 = vrot.lane.b32.xlu0 %v723, 11
        %v1776 = vpop.permute.xlu0 %1775
        %1779 = vrot.lane.b32.xlu0 %v722, 27
        %v1780 = vpop.permute.xlu0 %1779
        %1781 = vrot.lane.b32.xlu0 %v723, 27
        %v1782 = vpop.permute.xlu0 %1781
        %1785 = vrot.lane.b32.xlu0 %v722, 43
        %v1786 = vpop.permute.xlu0 %1785
        %1787 = vrot.lane.b32.xlu0 %v723, 43
        %v1788 = vpop.permute.xlu0 %1787
        %1791 = vrot.lane.b32.xlu0 %v722, 59
        %v1792 = vpop.permute.xlu0 %1791
        %1793 = vrot.lane.b32.xlu0 %v723, 59
        %v1794 = vpop.permute.xlu0 %1793
        %1797 = vrot.lane.b32.xlu0 %v722, 75
        %v1798 = vpop.permute.xlu0 %1797
        %1799 = vrot.lane.b32.xlu0 %v723, 75
        %v1800 = vpop.permute.xlu0 %1799
        %1803 = vrot.lane.b32.xlu0 %v722, 91
        %v1804 = vpop.permute.xlu0 %1803
        %1805 = vrot.lane.b32.xlu0 %v723, 91
        %v1806 = vpop.permute.xlu0 %1805
        %1809 = vrot.lane.b32.xlu0 %v722, 107
        %v1810 = vpop.permute.xlu0 %1809
        %1811 = vrot.lane.b32.xlu0 %v723, 107
        %v1812 = vpop.permute.xlu0 %1811
        %v1815 = vsel %vm215, %v1768, %v1774
        %v1816 = vsel %vm215, %v1770, %v1776
        %v1817 = vsel %vm218, %v1815, %v1780
        %v1818 = vsel %vm218, %v1816, %v1782
        %v1819 = vsel %vm221, %v1817, %v1786
        %v1820 = vsel %vm221, %v1818, %v1788
        %v1821 = vsel %vm224, %v1819, %v1792
        %v1822 = vsel %vm224, %v1820, %v1794
        %v1823 = vsel %vm227, %v1821, %v1798
        %v1824 = vsel %vm227, %v1822, %v1800
        %v1825 = vsel %vm230, %v1823, %v1804
        %v1826 = vsel %vm230, %v1824, %v1806
        %v1827 = vsel %vm233, %v1825, %v1810
        %v1828 = vsel %vm233, %v1826, %v1812
        %v1829 = vld [vmem:[%s1 + $0x26] sm:$0x1]
        %v1830 = vlaneseq
        %v1831 = vshrl.u32 %v1830, 7
        %v1832 = vsub.s32 0, %v1831
        %v1833 = vrot.slane %v1829, %v1832
        %v1834 = vmul.f32 %v1833, %v1765
        %v1835 = vmul.f32 %v1833, %v1766
        %v1836 = vadd.f32 %v1649, %v1834
        %v1837 = vadd.f32 %v1650, %v1835
        %v1838 = vld [vmem:[%s1 + $0x2a] sm:$0x1]
        %v1839 = vlaneseq
        %v1840 = vshrl.u32 %v1839, 7
        %v1841 = vsub.s32 0, %v1840
        %v1842 = vrot.slane %v1838, %v1841
        %v1843 = vmul.f32 %v1842, %v848
        %v1844 = vmul.f32 %v1842, %v849
        %v1845 = vadd.f32 %v1836, %v1843
        %v1846 = vadd.f32 %v1837, %v1844
        %v1847 = vld [vmem:[%s1 + $0x2e] sm:$0x1]
        %v1848 = vlaneseq
        %v1849 = vshrl.u32 %v1848, 7
        %v1850 = vsub.s32 0, %v1849
        %v1851 = vrot.slane %v1847, %v1850
        %v1852 = vmul.f32 %v1851, %v1827
        %v1853 = vmul.f32 %v1851, %v1828
        %v1854 = vadd.f32 %v1845, %v1852
        %v1855 = vadd.f32 %v1846, %v1853
        %v1856 = vld [vmem:[%s1 + $0x32] sm:$0x1]
        %v1857 = vlaneseq
        %v1858 = vshrl.u32 %v1857, 7
        %v1859 = vsub.s32 0, %v1858
        %v1860 = vrot.slane %v1856, %v1859
        %v1861 = vmul.f32 %v1860, %v1765
        %v1862 = vmul.f32 %v1860, %v1766
        %v1863 = vadd.f32 %v1676, %v1861
        %v1864 = vadd.f32 %v1677, %v1862
        %v1865 = vld [vmem:[%s1 + $0x36] sm:$0x1]
        %v1866 = vlaneseq
        %v1867 = vshrl.u32 %v1866, 7
        %v1868 = vsub.s32 0, %v1867
        %v1869 = vrot.slane %v1865, %v1868
        %v1870 = vmul.f32 %v1869, %v848
        %v1871 = vmul.f32 %v1869, %v849
        %v1872 = vadd.f32 %v1863, %v1870
        %v1873 = vadd.f32 %v1864, %v1871
        %v1874 = vld [vmem:[%s1 + $0x3a] sm:$0x1]
        %v1875 = vlaneseq
        %v1876 = vshrl.u32 %v1875, 7
        %v1877 = vsub.s32 0, %v1876
        %v1878 = vrot.slane %v1874, %v1877
        %v1879 = vmul.f32 %v1878, %v1827
        %v1880 = vmul.f32 %v1878, %v1828
        %v1881 = vadd.f32 %v1872, %v1879
        %v1882 = vadd.f32 %v1873, %v1880
        %v1883 = vld [vmem:[%s1 + $0x3e] sm:$0x1]
        %v1884 = vlaneseq
        %v1885 = vshrl.u32 %v1884, 7
        %v1886 = vsub.s32 0, %v1885
        %v1887 = vrot.slane %v1883, %v1886
        %v1888 = vmul.f32 %v1887, %v1765
        %v1889 = vmul.f32 %v1887, %v1766
        %v1890 = vadd.f32 %v1703, %v1888
        %v1891 = vadd.f32 %v1704, %v1889
        %v1892 = vld [vmem:[%s1 + $0x42] sm:$0x1]
        %v1893 = vlaneseq
        %v1894 = vshrl.u32 %v1893, 7
        %v1895 = vsub.s32 0, %v1894
        %v1896 = vrot.slane %v1892, %v1895
        %v1897 = vmul.f32 %v1896, %v848
        %v1898 = vmul.f32 %v1896, %v849
        %v1899 = vadd.f32 %v1890, %v1897
        %v1900 = vadd.f32 %v1891, %v1898
        %v1901 = vld [vmem:[%s1 + $0x46] sm:$0x1]
        %v1902 = vlaneseq
        %v1903 = vshrl.u32 %v1902, 7
        %v1904 = vsub.s32 0, %v1903
        %v1905 = vrot.slane %v1901, %v1904
        %v1906 = vmul.f32 %v1905, %v1827
        %v1907 = vmul.f32 %v1905, %v1828
        %v1908 = vadd.f32 %v1899, %v1906
        %v1909 = vadd.f32 %v1900, %v1907
        %1910 = vrot.lane.b32.xlu0 %v998, 127
        %v1911 = vpop.permute.xlu0 %1910
        %1912 = vrot.lane.b32.xlu0 %v999, 127
        %v1913 = vpop.permute.xlu0 %1912
        %1916 = vrot.lane.b32.xlu0 %v998, 15
        %v1917 = vpop.permute.xlu0 %1916
        %1918 = vrot.lane.b32.xlu0 %v999, 15
        %v1919 = vpop.permute.xlu0 %1918
        %1922 = vrot.lane.b32.xlu0 %v998, 31
        %v1923 = vpop.permute.xlu0 %1922
        %1924 = vrot.lane.b32.xlu0 %v999, 31
        %v1925 = vpop.permute.xlu0 %1924
        %1928 = vrot.lane.b32.xlu0 %v998, 47
        %v1929 = vpop.permute.xlu0 %1928
        %1930 = vrot.lane.b32.xlu0 %v999, 47
        %v1931 = vpop.permute.xlu0 %1930
        %1934 = vrot.lane.b32.xlu0 %v998, 63
        %v1935 = vpop.permute.xlu0 %1934
        %1936 = vrot.lane.b32.xlu0 %v999, 63
        %v1937 = vpop.permute.xlu0 %1936
        %1940 = vrot.lane.b32.xlu0 %v998, 79
        %v1941 = vpop.permute.xlu0 %1940
        %1942 = vrot.lane.b32.xlu0 %v999, 79
        %v1943 = vpop.permute.xlu0 %1942
        %1946 = vrot.lane.b32.xlu0 %v998, 95
        %v1947 = vpop.permute.xlu0 %1946
        %1948 = vrot.lane.b32.xlu0 %v999, 95
        %v1949 = vpop.permute.xlu0 %1948
        %1952 = vrot.lane.b32.xlu0 %v998, 111
        %v1953 = vpop.permute.xlu0 %1952
        %1954 = vrot.lane.b32.xlu0 %v999, 111
        %v1955 = vpop.permute.xlu0 %1954
        %v1958 = vsel %vm215, %v1911, %v1917
        %v1959 = vsel %vm215, %v1913, %v1919
        %v1960 = vsel %vm218, %v1958, %v1923
        %v1961 = vsel %vm218, %v1959, %v1925
        %v1962 = vsel %vm221, %v1960, %v1929
        %v1963 = vsel %vm221, %v1961, %v1931
        %v1964 = vsel %vm224, %v1962, %v1935
        %v1965 = vsel %vm224, %v1963, %v1937
        %v1966 = vsel %vm227, %v1964, %v1941
        %v1967 = vsel %vm227, %v1965, %v1943
        %v1968 = vsel %vm230, %v1966, %v1947
        %v1969 = vsel %vm230, %v1967, %v1949
        %v1970 = vsel %vm233, %v1968, %v1953
        %v1971 = vsel %vm233, %v1969, %v1955
        %1972 = vrot.lane.b32.xlu0 %v998, 123
        %v1973 = vpop.permute.xlu0 %1972
        %1974 = vrot.lane.b32.xlu0 %v999, 123
        %v1975 = vpop.permute.xlu0 %1974
        %1978 = vrot.lane.b32.xlu0 %v998, 11
        %v1979 = vpop.permute.xlu0 %1978
        %1980 = vrot.lane.b32.xlu0 %v999, 11
        %v1981 = vpop.permute.xlu0 %1980
        %1984 = vrot.lane.b32.xlu0 %v998, 27
        %v1985 = vpop.permute.xlu0 %1984
        %1986 = vrot.lane.b32.xlu0 %v999, 27
        %v1987 = vpop.permute.xlu0 %1986
        %1990 = vrot.lane.b32.xlu0 %v998, 43
        %v1991 = vpop.permute.xlu0 %1990
        %1992 = vrot.lane.b32.xlu0 %v999, 43
        %v1993 = vpop.permute.xlu0 %1992
        %1996 = vrot.lane.b32.xlu0 %v998, 59
        %v1997 = vpop.permute.xlu0 %1996
        %1998 = vrot.lane.b32.xlu0 %v999, 59
        %v1999 = vpop.permute.xlu0 %1998
        %2002 = vrot.lane.b32.xlu0 %v998, 75
        %v2003 = vpop.permute.xlu0 %2002
        %2004 = vrot.lane.b32.xlu0 %v999, 75
        %v2005 = vpop.permute.xlu0 %2004
        %2008 = vrot.lane.b32.xlu0 %v998, 91
        %v2009 = vpop.permute.xlu0 %2008
        %2010 = vrot.lane.b32.xlu0 %v999, 91
        %v2011 = vpop.permute.xlu0 %2010
        %2014 = vrot.lane.b32.xlu0 %v998, 107
        %v2015 = vpop.permute.xlu0 %2014
        %2016 = vrot.lane.b32.xlu0 %v999, 107
        %v2017 = vpop.permute.xlu0 %2016
        %v2020 = vsel %vm215, %v1973, %v1979
        %v2021 = vsel %vm215, %v1975, %v1981
        %v2022 = vsel %vm218, %v2020, %v1985
        %v2023 = vsel %vm218, %v2021, %v1987
        %v2024 = vsel %vm221, %v2022, %v1991
        %v2025 = vsel %vm221, %v2023, %v1993
        %v2026 = vsel %vm224, %v2024, %v1997
        %v2027 = vsel %vm224, %v2025, %v1999
        %v2028 = vsel %vm227, %v2026, %v2003
        %v2029 = vsel %vm227, %v2027, %v2005
        %v2030 = vsel %vm230, %v2028, %v2009
        %v2031 = vsel %vm230, %v2029, %v2011
        %v2032 = vsel %vm233, %v2030, %v2015
        %v2033 = vsel %vm233, %v2031, %v2017
        %v2034 = vld [vmem:[%s1 + $0x27] sm:$0x1]
        %v2035 = vlaneseq
        %v2036 = vshrl.u32 %v2035, 7
        %v2037 = vsub.s32 0, %v2036
        %v2038 = vrot.slane %v2034, %v2037
        %v2039 = vmul.f32 %v2038, %v1970
        %v2040 = vmul.f32 %v2038, %v1971
        %v2041 = vadd.f32 %v1854, %v2039
        %v2042 = vadd.f32 %v1855, %v2040
        %v2043 = vld [vmem:[%s1 + $0x2b] sm:$0x1]
        %v2044 = vlaneseq
        %v2045 = vshrl.u32 %v2044, 7
        %v2046 = vsub.s32 0, %v2045
        %v2047 = vrot.slane %v2043, %v2046
        %v2048 = vmul.f32 %v2047, %v1124
        %v2049 = vmul.f32 %v2047, %v1125
        %v2050 = vadd.f32 %v2041, %v2048
        %v2051 = vadd.f32 %v2042, %v2049
        %v2052 = vld [vmem:[%s1 + $0x2f] sm:$0x1]
        %v2053 = vlaneseq
        %v2054 = vshrl.u32 %v2053, 7
        %v2055 = vsub.s32 0, %v2054
        %v2056 = vrot.slane %v2052, %v2055
        %v2057 = vmul.f32 %v2056, %v2032
        %v2058 = vmul.f32 %v2056, %v2033
        %v2059 = vadd.f32 %v2050, %v2057
        %v2060 = vadd.f32 %v2051, %v2058
        %v2061 = vld [vmem:[%s1 + $0x33] sm:$0x1]
        %v2062 = vlaneseq
        %v2063 = vshrl.u32 %v2062, 7
        %v2064 = vsub.s32 0, %v2063
        %v2065 = vrot.slane %v2061, %v2064
        %v2066 = vmul.f32 %v2065, %v1970
        %v2067 = vmul.f32 %v2065, %v1971
        %v2068 = vadd.f32 %v1881, %v2066
        %v2069 = vadd.f32 %v1882, %v2067
        %v2070 = vld [vmem:[%s1 + $0x37] sm:$0x1]
        %v2071 = vlaneseq
        %v2072 = vshrl.u32 %v2071, 7
        %v2073 = vsub.s32 0, %v2072
        %v2074 = vrot.slane %v2070, %v2073
        %v2075 = vmul.f32 %v2074, %v1124
        %v2076 = vmul.f32 %v2074, %v1125
        %v2077 = vadd.f32 %v2068, %v2075
        %v2078 = vadd.f32 %v2069, %v2076
        %v2079 = vld [vmem:[%s1 + $0x3b] sm:$0x1]
        %v2080 = vlaneseq
        %v2081 = vshrl.u32 %v2080, 7
        %v2082 = vsub.s32 0, %v2081
        %v2083 = vrot.slane %v2079, %v2082
        %v2084 = vmul.f32 %v2083, %v2032
        %v2085 = vmul.f32 %v2083, %v2033
        %v2086 = vadd.f32 %v2077, %v2084
        %v2087 = vadd.f32 %v2078, %v2085
        %v2088 = vld [vmem:[%s1 + $0x3f] sm:$0x1]
        %v2089 = vlaneseq
        %v2090 = vshrl.u32 %v2089, 7
        %v2091 = vsub.s32 0, %v2090
        %v2092 = vrot.slane %v2088, %v2091
        %v2093 = vmul.f32 %v2092, %v1970
        %v2094 = vmul.f32 %v2092, %v1971
        %v2095 = vadd.f32 %v1908, %v2093
        %v2096 = vadd.f32 %v1909, %v2094
        %v2097 = vld [vmem:[%s1 + $0x43] sm:$0x1]
        %v2098 = vlaneseq
        %v2099 = vshrl.u32 %v2098, 7
        %v2100 = vsub.s32 0, %v2099
        %v2101 = vrot.slane %v2097, %v2100
        %v2102 = vmul.f32 %v2101, %v1124
        %v2103 = vmul.f32 %v2101, %v1125
        %v2104 = vadd.f32 %v2095, %v2102
        %v2105 = vadd.f32 %v2096, %v2103
        %v2106 = vld [vmem:[%s1 + $0x47] sm:$0x1]
        %v2107 = vlaneseq
        %v2108 = vshrl.u32 %v2107, 7
        %v2109 = vsub.s32 0, %v2108
        %v2110 = vrot.slane %v2106, %v2109
        %v2111 = vmul.f32 %v2110, %v2032
        %v2112 = vmul.f32 %v2110, %v2033
        %v2113 = vadd.f32 %v2104, %v2111
        %v2114 = vadd.f32 %v2105, %v2112
        %v2115 = vadd.f32 %v2059, 0.0
        %v2116 = vadd.f32 %v2060, 0.0
        %v2119 = vrot.slane %v2086, 2
        %v2120 = vrot.slane %v2087, 2
        %v2121 = vsel %vm1283, %v2119, %v2120
        %v2124 = vadd.f32 %v2115, %v2121
        %v2125 = vadd.f32 %v2116, %v2120
        %vm2128 = vcmask 1043456
        %v2129 = vrot.slane %v2113, 4
        %v2130 = vrot.slane %v2114, 4
        %v2131 = vsel %vm2128, %v2129, %v2130
        %v2134 = vadd.f32 %v2124, %v2131
        %v2135 = vadd.f32 %v2125, %v2130
        %v2136 = vmax.f32 %v2134, 0.0
        %v2137 = vmax.f32 %v2135, 0.0
        %vm2140 = vcmask 1040384
        %v2141 = vrot.slane %v2136, 7
        %v2142 = vrot.slane %v2137, 7
        %v2143 = vsel %vm2140, %v2141, %v2142
        %v2146 = vadd.f32 %v1293, %v2141
        %v2147 = vadd.f32 %v1294, %v2143
        %2148 = vrot.lane.b32.xlu0 %v163, 16
        %v2149 = vpop.permute.xlu0 %2148
        %2150 = vrot.lane.b32.xlu0 %v164, 16
        %v2151 = vpop.permute.xlu0 %2150
        %2154 = vrot.lane.b32.xlu0 %v163, 32
        %v2155 = vpop.permute.xlu0 %2154
        %2156 = vrot.lane.b32.xlu0 %v164, 32
        %v2157 = vpop.permute.xlu0 %2156
        %2160 = vrot.lane.b32.xlu0 %v163, 48
        %v2161 = vpop.permute.xlu0 %2160
        %2162 = vrot.lane.b32.xlu0 %v164, 48
        %v2163 = vpop.permute.xlu0 %2162
        %2166 = vrot.lane.b32.xlu0 %v163, 64
        %v2167 = vpop.permute.xlu0 %2166
        %2168 = vrot.lane.b32.xlu0 %v164, 64
        %v2169 = vpop.permute.xlu0 %2168
        %2172 = vrot.lane.b32.xlu0 %v163, 80
        %v2173 = vpop.permute.xlu0 %2172
        %2174 = vrot.lane.b32.xlu0 %v164, 80
        %v2175 = vpop.permute.xlu0 %2174
        %2178 = vrot.lane.b32.xlu0 %v163, 96
        %v2179 = vpop.permute.xlu0 %2178
        %2180 = vrot.lane.b32.xlu0 %v164, 96
        %v2181 = vpop.permute.xlu0 %2180
        %2184 = vrot.lane.b32.xlu0 %v163, 112
        %v2185 = vpop.permute.xlu0 %2184
        %2186 = vrot.lane.b32.xlu0 %v164, 112
        %v2187 = vpop.permute.xlu0 %2186
        %v2190 = vsel %vm215, %v163, %v2149
        %v2191 = vsel %vm215, %v164, %v2151
        %v2192 = vsel %vm218, %v2190, %v2155
        %v2193 = vsel %vm218, %v2191, %v2157
        %v2194 = vsel %vm221, %v2192, %v2161
        %v2195 = vsel %vm221, %v2193, %v2163
        %v2196 = vsel %vm224, %v2194, %v2167
        %v2197 = vsel %vm224, %v2195, %v2169
        %v2198 = vsel %vm227, %v2196, %v2173
        %v2199 = vsel %vm227, %v2197, %v2175
        %v2200 = vsel %vm230, %v2198, %v2179
        %v2201 = vsel %vm230, %v2199, %v2181
        %v2202 = vsel %vm233, %v2200, %v2185
        %v2203 = vsel %vm233, %v2201, %v2187
        %2204 = vrot.lane.b32.xlu0 %v163, 122
        %v2205 = vpop.permute.xlu0 %2204
        %2206 = vrot.lane.b32.xlu0 %v164, 122
        %v2207 = vpop.permute.xlu0 %2206
        %2210 = vrot.lane.b32.xlu0 %v163, 10
        %v2211 = vpop.permute.xlu0 %2210
        %2212 = vrot.lane.b32.xlu0 %v164, 10
        %v2213 = vpop.permute.xlu0 %2212
        %2216 = vrot.lane.b32.xlu0 %v163, 26
        %v2217 = vpop.permute.xlu0 %2216
        %2218 = vrot.lane.b32.xlu0 %v164, 26
        %v2219 = vpop.permute.xlu0 %2218
        %2222 = vrot.lane.b32.xlu0 %v163, 42
        %v2223 = vpop.permute.xlu0 %2222
        %2224 = vrot.lane.b32.xlu0 %v164, 42
        %v2225 = vpop.permute.xlu0 %2224
        %2228 = vrot.lane.b32.xlu0 %v163, 58
        %v2229 = vpop.permute.xlu0 %2228
        %2230 = vrot.lane.b32.xlu0 %v164, 58
        %v2231 = vpop.permute.xlu0 %2230
        %2234 = vrot.lane.b32.xlu0 %v163, 74
        %v2235 = vpop.permute.xlu0 %2234
        %2236 = vrot.lane.b32.xlu0 %v164, 74
        %v2237 = vpop.permute.xlu0 %2236
        %2240 = vrot.lane.b32.xlu0 %v163, 90
        %v2241 = vpop.permute.xlu0 %2240
        %2242 = vrot.lane.b32.xlu0 %v164, 90
        %v2243 = vpop.permute.xlu0 %2242
        %2246 = vrot.lane.b32.xlu0 %v163, 106
        %v2247 = vpop.permute.xlu0 %2246
        %2248 = vrot.lane.b32.xlu0 %v164, 106
        %v2249 = vpop.permute.xlu0 %2248
        %v2252 = vsel %vm215, %v2205, %v2211
        %v2253 = vsel %vm215, %v2207, %v2213
        %v2254 = vsel %vm218, %v2252, %v2217
        %v2255 = vsel %vm218, %v2253, %v2219
        %v2256 = vsel %vm221, %v2254, %v2223
        %v2257 = vsel %vm221, %v2255, %v2225
        %v2258 = vsel %vm224, %v2256, %v2229
        %v2259 = vsel %vm224, %v2257, %v2231
        %v2260 = vsel %vm227, %v2258, %v2235
        %v2261 = vsel %vm227, %v2259, %v2237
        %v2262 = vsel %vm230, %v2260, %v2241
        %v2263 = vsel %vm230, %v2261, %v2243
        %v2264 = vsel %vm233, %v2262, %v2247
        %v2265 = vsel %vm233, %v2263, %v2249
        %v2266 = vld [vmem:[%s1 + $0x48] sm:$0x1]
        %v2267 = vlaneseq
        %v2268 = vshrl.u32 %v2267, 7
        %v2269 = vsub.s32 0, %v2268
        %v2270 = vrot.slane %v2266, %v2269
        %v2271 = vmul.f32 %v2270, %v2202
        %v2272 = vadd.f32 %v2271, 0.0
        %v2273 = vld [vmem:[%s1 + $0x4c] sm:$0x1]
        %v2274 = vlaneseq
        %v2275 = vshrl.u32 %v2274, 7
        %v2276 = vsub.s32 0, %v2275
        %v2277 = vrot.slane %v2273, %v2276
        %v2278 = vmul.f32 %v2277, %v296
        %v2279 = vadd.f32 %v2272, %v2278
        %v2280 = vld [vmem:[%s1 + $0x50] sm:$0x1]
        %v2281 = vlaneseq
        %v2282 = vshrl.u32 %v2281, 7
        %v2283 = vsub.s32 0, %v2282
        %v2284 = vrot.slane %v2280, %v2283
        %v2285 = vmul.f32 %v2284, %v2264
        %v2286 = vadd.f32 %v2279, %v2285
        %v2287 = vld [vmem:[%s1 + $0x54] sm:$0x1]
        %v2288 = vlaneseq
        %v2289 = vshrl.u32 %v2288, 7
        %v2290 = vsub.s32 0, %v2289
        %v2291 = vrot.slane %v2287, %v2290
        %v2292 = vmul.f32 %v2291, %v2202
        %v2293 = vmul.f32 %v2291, %v2203
        %v2294 = vadd.f32 %v2292, 0.0
        %v2295 = vadd.f32 %v2293, 0.0
        %v2296 = vld [vmem:[%s1 + $0x58] sm:$0x1]
        %v2297 = vlaneseq
        %v2298 = vshrl.u32 %v2297, 7
        %v2299 = vsub.s32 0, %v2298
        %v2300 = vrot.slane %v2296, %v2299
        %v2301 = vmul.f32 %v2300, %v296
        %v2302 = vmul.f32 %v2300, %v297
        %v2303 = vadd.f32 %v2294, %v2301
        %v2304 = vadd.f32 %v2295, %v2302
        %v2305 = vld [vmem:[%s1 + $0x5c] sm:$0x1]
        %v2306 = vlaneseq
        %v2307 = vshrl.u32 %v2306, 7
        %v2308 = vsub.s32 0, %v2307
        %v2309 = vrot.slane %v2305, %v2308
        %v2310 = vmul.f32 %v2309, %v2264
        %v2311 = vmul.f32 %v2309, %v2265
        %v2312 = vadd.f32 %v2303, %v2310
        %v2313 = vadd.f32 %v2304, %v2311
        %v2314 = vld [vmem:[%s1 + $0x60] sm:$0x1]
        %v2315 = vlaneseq
        %v2316 = vshrl.u32 %v2315, 7
        %v2317 = vsub.s32 0, %v2316
        %v2318 = vrot.slane %v2314, %v2317
        %v2319 = vmul.f32 %v2318, %v2202
        %v2320 = vmul.f32 %v2318, %v2203
        %v2321 = vadd.f32 %v2319, 0.0
        %v2322 = vadd.f32 %v2320, 0.0
        %v2323 = vld [vmem:[%s1 + $0x64] sm:$0x1]
        %v2324 = vlaneseq
        %v2325 = vshrl.u32 %v2324, 7
        %v2326 = vsub.s32 0, %v2325
        %v2327 = vrot.slane %v2323, %v2326
        %v2328 = vmul.f32 %v2327, %v296
        %v2329 = vmul.f32 %v2327, %v297
        %v2330 = vadd.f32 %v2321, %v2328
        %v2331 = vadd.f32 %v2322, %v2329
        %v2332 = vld [vmem:[%s1 + $0x68] sm:$0x1]
        %v2333 = vlaneseq
        %v2334 = vshrl.u32 %v2333, 7
        %v2335 = vsub.s32 0, %v2334
        %v2336 = vrot.slane %v2332, %v2335
        %v2337 = vmul.f32 %v2336, %v2264
        %v2338 = vmul.f32 %v2336, %v2265
        %v2339 = vadd.f32 %v2330, %v2337
        %v2340 = vadd.f32 %v2331, %v2338
        %2341 = vrot.lane.b32.xlu0 %v446, 16
        %v2342 = vpop.permute.xlu0 %2341
        %2343 = vrot.lane.b32.xlu0 %v447, 16
        %v2344 = vpop.permute.xlu0 %2343
        %2347 = vrot.lane.b32.xlu0 %v446, 32
        %v2348 = vpop.permute.xlu0 %2347
        %2349 = vrot.lane.b32.xlu0 %v447, 32
        %v2350 = vpop.permute.xlu0 %2349
        %2353 = vrot.lane.b32.xlu0 %v446, 48
        %v2354 = vpop.permute.xlu0 %2353
        %2355 = vrot.lane.b32.xlu0 %v447, 48
        %v2356 = vpop.permute.xlu0 %2355
        %2359 = vrot.lane.b32.xlu0 %v446, 64
        %v2360 = vpop.permute.xlu0 %2359
        %2361 = vrot.lane.b32.xlu0 %v447, 64
        %v2362 = vpop.permute.xlu0 %2361
        %2365 = vrot.lane.b32.xlu0 %v446, 80
        %v2366 = vpop.permute.xlu0 %2365
        %2367 = vrot.lane.b32.xlu0 %v447, 80
        %v2368 = vpop.permute.xlu0 %2367
        %2371 = vrot.lane.b32.xlu0 %v446, 96
        %v2372 = vpop.permute.xlu0 %2371
        %2373 = vrot.lane.b32.xlu0 %v447, 96
        %v2374 = vpop.permute.xlu0 %2373
        %2377 = vrot.lane.b32.xlu0 %v446, 112
        %v2378 = vpop.permute.xlu0 %2377
        %2379 = vrot.lane.b32.xlu0 %v447, 112
        %v2380 = vpop.permute.xlu0 %2379
        %v2383 = vsel %vm215, %v446, %v2342
        %v2384 = vsel %vm215, %v447, %v2344
        %v2385 = vsel %vm218, %v2383, %v2348
        %v2386 = vsel %vm218, %v2384, %v2350
        %v2387 = vsel %vm221, %v2385, %v2354
        %v2388 = vsel %vm221, %v2386, %v2356
        %v2389 = vsel %vm224, %v2387, %v2360
        %v2390 = vsel %vm224, %v2388, %v2362
        %v2391 = vsel %vm227, %v2389, %v2366
        %v2392 = vsel %vm227, %v2390, %v2368
        %v2393 = vsel %vm230, %v2391, %v2372
        %v2394 = vsel %vm230, %v2392, %v2374
        %v2395 = vsel %vm233, %v2393, %v2378
        %v2396 = vsel %vm233, %v2394, %v2380
        %2397 = vrot.lane.b32.xlu0 %v446, 122
        %v2398 = vpop.permute.xlu0 %2397
        %2399 = vrot.lane.b32.xlu0 %v447, 122
        %v2400 = vpop.permute.xlu0 %2399
        %2403 = vrot.lane.b32.xlu0 %v446, 10
        %v2404 = vpop.permute.xlu0 %2403
        %2405 = vrot.lane.b32.xlu0 %v447, 10
        %v2406 = vpop.permute.xlu0 %2405
        %2409 = vrot.lane.b32.xlu0 %v446, 26
        %v2410 = vpop.permute.xlu0 %2409
        %2411 = vrot.lane.b32.xlu0 %v447, 26
        %v2412 = vpop.permute.xlu0 %2411
        %2415 = vrot.lane.b32.xlu0 %v446, 42
        %v2416 = vpop.permute.xlu0 %2415
        %2417 = vrot.lane.b32.xlu0 %v447, 42
        %v2418 = vpop.permute.xlu0 %2417
        %2421 = vrot.lane.b32.xlu0 %v446, 58
        %v2422 = vpop.permute.xlu0 %2421
        %2423 = vrot.lane.b32.xlu0 %v447, 58
        %v2424 = vpop.permute.xlu0 %2423
        %2427 = vrot.lane.b32.xlu0 %v446, 74
        %v2428 = vpop.permute.xlu0 %2427
        %2429 = vrot.lane.b32.xlu0 %v447, 74
        %v2430 = vpop.permute.xlu0 %2429
        %2433 = vrot.lane.b32.xlu0 %v446, 90
        %v2434 = vpop.permute.xlu0 %2433
        %2435 = vrot.lane.b32.xlu0 %v447, 90
        %v2436 = vpop.permute.xlu0 %2435
        %2439 = vrot.lane.b32.xlu0 %v446, 106
        %v2440 = vpop.permute.xlu0 %2439
        %2441 = vrot.lane.b32.xlu0 %v447, 106
        %v2442 = vpop.permute.xlu0 %2441
        %v2445 = vsel %vm215, %v2398, %v2404
        %v2446 = vsel %vm215, %v2400, %v2406
        %v2447 = vsel %vm218, %v2445, %v2410
        %v2448 = vsel %vm218, %v2446, %v2412
        %v2449 = vsel %vm221, %v2447, %v2416
        %v2450 = vsel %vm221, %v2448, %v2418
        %v2451 = vsel %vm224, %v2449, %v2422
        %v2452 = vsel %vm224, %v2450, %v2424
        %v2453 = vsel %vm227, %v2451, %v2428
        %v2454 = vsel %vm227, %v2452, %v2430
        %v2455 = vsel %vm230, %v2453, %v2434
        %v2456 = vsel %vm230, %v2454, %v2436
        %v2457 = vsel %vm233, %v2455, %v2440
        %v2458 = vsel %vm233, %v2456, %v2442
        %v2459 = vld [vmem:[%s1 + $0x49] sm:$0x1]
        %v2460 = vlaneseq
        %v2461 = vshrl.u32 %v2460, 7
        %v2462 = vsub.s32 0, %v2461
        %v2463 = vrot.slane %v2459, %v2462
        %v2464 = vmul.f32 %v2463, %v2395
        %v2465 = vadd.f32 %v2286, %v2464
        %v2466 = vld [vmem:[%s1 + $0x4d] sm:$0x1]
        %v2467 = vlaneseq
        %v2468 = vshrl.u32 %v2467, 7
        %v2469 = vsub.s32 0, %v2468
        %v2470 = vrot.slane %v2466, %v2469
        %v2471 = vmul.f32 %v2470, %v572
        %v2472 = vadd.f32 %v2465, %v2471
        %v2473 = vld [vmem:[%s1 + $0x51] sm:$0x1]
        %v2474 = vlaneseq
        %v2475 = vshrl.u32 %v2474, 7
        %v2476 = vsub.s32 0, %v2475
        %v2477 = vrot.slane %v2473, %v2476
        %v2478 = vmul.f32 %v2477, %v2457
        %v2479 = vadd.f32 %v2472, %v2478
        %v2480 = vld [vmem:[%s1 + $0x55] sm:$0x1]
        %v2481 = vlaneseq
        %v2482 = vshrl.u32 %v2481, 7
        %v2483 = vsub.s32 0, %v2482
        %v2484 = vrot.slane %v2480, %v2483
        %v2485 = vmul.f32 %v2484, %v2395
        %v2486 = vmul.f32 %v2484, %v2396
        %v2487 = vadd.f32 %v2312, %v2485
        %v2488 = vadd.f32 %v2313, %v2486
        %v2489 = vld [vmem:[%s1 + $0x59] sm:$0x1]
        %v2490 = vlaneseq
        %v2491 = vshrl.u32 %v2490, 7
        %v2492 = vsub.s32 0, %v2491
        %v2493 = vrot.slane %v2489, %v2492
        %v2494 = vmul.f32 %v2493, %v572
        %v2495 = vmul.f32 %v2493, %v573
        %v2496 = vadd.f32 %v2487, %v2494
        %v2497 = vadd.f32 %v2488, %v2495
        %v2498 = vld [vmem:[%s1 + $0x5d] sm:$0x1]
        %v2499 = vlaneseq
        %v2500 = vshrl.u32 %v2499, 7
        %v2501 = vsub.s32 0, %v2500
        %v2502 = vrot.slane %v2498, %v2501
        %v2503 = vmul.f32 %v2502, %v2457
        %v2504 = vmul.f32 %v2502, %v2458
        %v2505 = vadd.f32 %v2496, %v2503
        %v2506 = vadd.f32 %v2497, %v2504
        %v2507 = vld [vmem:[%s1 + $0x61] sm:$0x1]
        %v2508 = vlaneseq
        %v2509 = vshrl.u32 %v2508, 7
        %v2510 = vsub.s32 0, %v2509
        %v2511 = vrot.slane %v2507, %v2510
        %v2512 = vmul.f32 %v2511, %v2395
        %v2513 = vmul.f32 %v2511, %v2396
        %v2514 = vadd.f32 %v2339, %v2512
        %v2515 = vadd.f32 %v2340, %v2513
        %v2516 = vld [vmem:[%s1 + $0x65] sm:$0x1]
        %v2517 = vlaneseq
        %v2518 = vshrl.u32 %v2517, 7
        %v2519 = vsub.s32 0, %v2518
        %v2520 = vrot.slane %v2516, %v2519
        %v2521 = vmul.f32 %v2520, %v572
        %v2522 = vmul.f32 %v2520, %v573
        %v2523 = vadd.f32 %v2514, %v2521
        %v2524 = vadd.f32 %v2515, %v2522
        %v2525 = vld [vmem:[%s1 + $0x69] sm:$0x1]
        %v2526 = vlaneseq
        %v2527 = vshrl.u32 %v2526, 7
        %v2528 = vsub.s32 0, %v2527
        %v2529 = vrot.slane %v2525, %v2528
        %v2530 = vmul.f32 %v2529, %v2457
        %v2531 = vmul.f32 %v2529, %v2458
        %v2532 = vadd.f32 %v2523, %v2530
        %v2533 = vadd.f32 %v2524, %v2531
        %2534 = vrot.lane.b32.xlu0 %v722, 16
        %v2535 = vpop.permute.xlu0 %2534
        %2536 = vrot.lane.b32.xlu0 %v723, 16
        %v2537 = vpop.permute.xlu0 %2536
        %2540 = vrot.lane.b32.xlu0 %v722, 32
        %v2541 = vpop.permute.xlu0 %2540
        %2542 = vrot.lane.b32.xlu0 %v723, 32
        %v2543 = vpop.permute.xlu0 %2542
        %2546 = vrot.lane.b32.xlu0 %v722, 48
        %v2547 = vpop.permute.xlu0 %2546
        %2548 = vrot.lane.b32.xlu0 %v723, 48
        %v2549 = vpop.permute.xlu0 %2548
        %2552 = vrot.lane.b32.xlu0 %v722, 64
        %v2553 = vpop.permute.xlu0 %2552
        %2554 = vrot.lane.b32.xlu0 %v723, 64
        %v2555 = vpop.permute.xlu0 %2554
        %2558 = vrot.lane.b32.xlu0 %v722, 80
        %v2559 = vpop.permute.xlu0 %2558
        %2560 = vrot.lane.b32.xlu0 %v723, 80
        %v2561 = vpop.permute.xlu0 %2560
        %2564 = vrot.lane.b32.xlu0 %v722, 96
        %v2565 = vpop.permute.xlu0 %2564
        %2566 = vrot.lane.b32.xlu0 %v723, 96
        %v2567 = vpop.permute.xlu0 %2566
        %2570 = vrot.lane.b32.xlu0 %v722, 112
        %v2571 = vpop.permute.xlu0 %2570
        %2572 = vrot.lane.b32.xlu0 %v723, 112
        %v2573 = vpop.permute.xlu0 %2572
        %v2576 = vsel %vm215, %v722, %v2535
        %v2577 = vsel %vm215, %v723, %v2537
        %v2578 = vsel %vm218, %v2576, %v2541
        %v2579 = vsel %vm218, %v2577, %v2543
        %v2580 = vsel %vm221, %v2578, %v2547
        %v2581 = vsel %vm221, %v2579, %v2549
        %v2582 = vsel %vm224, %v2580, %v2553
        %v2583 = vsel %vm224, %v2581, %v2555
        %v2584 = vsel %vm227, %v2582, %v2559
        %v2585 = vsel %vm227, %v2583, %v2561
        %v2586 = vsel %vm230, %v2584, %v2565
        %v2587 = vsel %vm230, %v2585, %v2567
        %v2588 = vsel %vm233, %v2586, %v2571
        %v2589 = vsel %vm233, %v2587, %v2573
        %2590 = vrot.lane.b32.xlu0 %v722, 122
        %v2591 = vpop.permute.xlu0 %2590
        %2592 = vrot.lane.b32.xlu0 %v723, 122
        %v2593 = vpop.permute.xlu0 %2592
        %2596 = vrot.lane.b32.xlu0 %v722, 10
        %v2597 = vpop.permute.xlu0 %2596
        %2598 = vrot.lane.b32.xlu0 %v723, 10
        %v2599 = vpop.permute.xlu0 %2598
        %2602 = vrot.lane.b32.xlu0 %v722, 26
        %v2603 = vpop.permute.xlu0 %2602
        %2604 = vrot.lane.b32.xlu0 %v723, 26
        %v2605 = vpop.permute.xlu0 %2604
        %2608 = vrot.lane.b32.xlu0 %v722, 42
        %v2609 = vpop.permute.xlu0 %2608
        %2610 = vrot.lane.b32.xlu0 %v723, 42
        %v2611 = vpop.permute.xlu0 %2610
        %2614 = vrot.lane.b32.xlu0 %v722, 58
        %v2615 = vpop.permute.xlu0 %2614
        %2616 = vrot.lane.b32.xlu0 %v723, 58
        %v2617 = vpop.permute.xlu0 %2616
        %2620 = vrot.lane.b32.xlu0 %v722, 74
        %v2621 = vpop.permute.xlu0 %2620
        %2622 = vrot.lane.b32.xlu0 %v723, 74
        %v2623 = vpop.permute.xlu0 %2622
        %2626 = vrot.lane.b32.xlu0 %v722, 90
        %v2627 = vpop.permute.xlu0 %2626
        %2628 = vrot.lane.b32.xlu0 %v723, 90
        %v2629 = vpop.permute.xlu0 %2628
        %2632 = vrot.lane.b32.xlu0 %v722, 106
        %v2633 = vpop.permute.xlu0 %2632
        %2634 = vrot.lane.b32.xlu0 %v723, 106
        %v2635 = vpop.permute.xlu0 %2634
        %v2638 = vsel %vm215, %v2591, %v2597
        %v2639 = vsel %vm215, %v2593, %v2599
        %v2640 = vsel %vm218, %v2638, %v2603
        %v2641 = vsel %vm218, %v2639, %v2605
        %v2642 = vsel %vm221, %v2640, %v2609
        %v2643 = vsel %vm221, %v2641, %v2611
        %v2644 = vsel %vm224, %v2642, %v2615
        %v2645 = vsel %vm224, %v2643, %v2617
        %v2646 = vsel %vm227, %v2644, %v2621
        %v2647 = vsel %vm227, %v2645, %v2623
        %v2648 = vsel %vm230, %v2646, %v2627
        %v2649 = vsel %vm230, %v2647, %v2629
        %v2650 = vsel %vm233, %v2648, %v2633
        %v2651 = vsel %vm233, %v2649, %v2635
        %v2652 = vld [vmem:[%s1 + $0x4a] sm:$0x1]
        %v2653 = vlaneseq
        %v2654 = vshrl.u32 %v2653, 7
        %v2655 = vsub.s32 0, %v2654
        %v2656 = vrot.slane %v2652, %v2655
        %v2657 = vmul.f32 %v2656, %v2588
        %v2658 = vadd.f32 %v2479, %v2657
        %v2659 = vld [vmem:[%s1 + $0x4e] sm:$0x1]
        %v2660 = vlaneseq
        %v2661 = vshrl.u32 %v2660, 7
        %v2662 = vsub.s32 0, %v2661
        %v2663 = vrot.slane %v2659, %v2662
        %v2664 = vmul.f32 %v2663, %v848
        %v2665 = vadd.f32 %v2658, %v2664
        %v2666 = vld [vmem:[%s1 + $0x52] sm:$0x1]
        %v2667 = vlaneseq
        %v2668 = vshrl.u32 %v2667, 7
        %v2669 = vsub.s32 0, %v2668
        %v2670 = vrot.slane %v2666, %v2669
        %v2671 = vmul.f32 %v2670, %v2650
        %v2672 = vadd.f32 %v2665, %v2671
        %v2673 = vld [vmem:[%s1 + $0x56] sm:$0x1]
        %v2674 = vlaneseq
        %v2675 = vshrl.u32 %v2674, 7
        %v2676 = vsub.s32 0, %v2675
        %v2677 = vrot.slane %v2673, %v2676
        %v2678 = vmul.f32 %v2677, %v2588
        %v2679 = vmul.f32 %v2677, %v2589
        %v2680 = vadd.f32 %v2505, %v2678
        %v2681 = vadd.f32 %v2506, %v2679
        %v2682 = vld [vmem:[%s1 + $0x5a] sm:$0x1]
        %v2683 = vlaneseq
        %v2684 = vshrl.u32 %v2683, 7
        %v2685 = vsub.s32 0, %v2684
        %v2686 = vrot.slane %v2682, %v2685
        %v2687 = vmul.f32 %v2686, %v848
        %v2688 = vmul.f32 %v2686, %v849
        %v2689 = vadd.f32 %v2680, %v2687
        %v2690 = vadd.f32 %v2681, %v2688
        %v2691 = vld [vmem:[%s1 + $0x5e] sm:$0x1]
        %v2692 = vlaneseq
        %v2693 = vshrl.u32 %v2692, 7
        %v2694 = vsub.s32 0, %v2693
        %v2695 = vrot.slane %v2691, %v2694
        %v2696 = vmul.f32 %v2695, %v2650
        %v2697 = vmul.f32 %v2695, %v2651
        %v2698 = vadd.f32 %v2689, %v2696
        %v2699 = vadd.f32 %v2690, %v2697
        %v2700 = vld [vmem:[%s1 + $0x62] sm:$0x1]
        %v2701 = vlaneseq
        %v2702 = vshrl.u32 %v2701, 7
        %v2703 = vsub.s32 0, %v2702
        %v2704 = vrot.slane %v2700, %v2703
        %v2705 = vmul.f32 %v2704, %v2588
        %v2706 = vmul.f32 %v2704, %v2589
        %v2707 = vadd.f32 %v2532, %v2705
        %v2708 = vadd.f32 %v2533, %v2706
        %v2709 = vld [vmem:[%s1 + $0x66] sm:$0x1]
        %v2710 = vlaneseq
        %v2711 = vshrl.u32 %v2710, 7
        %v2712 = vsub.s32 0, %v2711
        %v2713 = vrot.slane %v2709, %v2712
        %v2714 = vmul.f32 %v2713, %v848
        %v2715 = vmul.f32 %v2713, %v849
        %v2716 = vadd.f32 %v2707, %v2714
        %v2717 = vadd.f32 %v2708, %v2715
        %v2718 = vld [vmem:[%s1 + $0x6a] sm:$0x1]
        %v2719 = vlaneseq
        %v2720 = vshrl.u32 %v2719, 7
        %v2721 = vsub.s32 0, %v2720
        %v2722 = vrot.slane %v2718, %v2721
        %v2723 = vmul.f32 %v2722, %v2650
        %v2724 = vmul.f32 %v2722, %v2651
        %v2725 = vadd.f32 %v2716, %v2723
        %v2726 = vadd.f32 %v2717, %v2724
        %2727 = vrot.lane.b32.xlu0 %v998, 16
        %v2728 = vpop.permute.xlu0 %2727
        %2729 = vrot.lane.b32.xlu0 %v999, 16
        %v2730 = vpop.permute.xlu0 %2729
        %2733 = vrot.lane.b32.xlu0 %v998, 32
        %v2734 = vpop.permute.xlu0 %2733
        %2735 = vrot.lane.b32.xlu0 %v999, 32
        %v2736 = vpop.permute.xlu0 %2735
        %2739 = vrot.lane.b32.xlu0 %v998, 48
        %v2740 = vpop.permute.xlu0 %2739
        %2741 = vrot.lane.b32.xlu0 %v999, 48
        %v2742 = vpop.permute.xlu0 %2741
        %2745 = vrot.lane.b32.xlu0 %v998, 64
        %v2746 = vpop.permute.xlu0 %2745
        %2747 = vrot.lane.b32.xlu0 %v999, 64
        %v2748 = vpop.permute.xlu0 %2747
        %2751 = vrot.lane.b32.xlu0 %v998, 80
        %v2752 = vpop.permute.xlu0 %2751
        %2753 = vrot.lane.b32.xlu0 %v999, 80
        %v2754 = vpop.permute.xlu0 %2753
        %2757 = vrot.lane.b32.xlu0 %v998, 96
        %v2758 = vpop.permute.xlu0 %2757
        %2759 = vrot.lane.b32.xlu0 %v999, 96
        %v2760 = vpop.permute.xlu0 %2759
        %2763 = vrot.lane.b32.xlu0 %v998, 112
        %v2764 = vpop.permute.xlu0 %2763
        %2765 = vrot.lane.b32.xlu0 %v999, 112
        %v2766 = vpop.permute.xlu0 %2765
        %v2769 = vsel %vm215, %v998, %v2728
        %v2770 = vsel %vm215, %v999, %v2730
        %v2771 = vsel %vm218, %v2769, %v2734
        %v2772 = vsel %vm218, %v2770, %v2736
        %v2773 = vsel %vm221, %v2771, %v2740
        %v2774 = vsel %vm221, %v2772, %v2742
        %v2775 = vsel %vm224, %v2773, %v2746
        %v2776 = vsel %vm224, %v2774, %v2748
        %v2777 = vsel %vm227, %v2775, %v2752
        %v2778 = vsel %vm227, %v2776, %v2754
        %v2779 = vsel %vm230, %v2777, %v2758
        %v2780 = vsel %vm230, %v2778, %v2760
        %v2781 = vsel %vm233, %v2779, %v2764
        %v2782 = vsel %vm233, %v2780, %v2766
        %2783 = vrot.lane.b32.xlu0 %v998, 122
        %v2784 = vpop.permute.xlu0 %2783
        %2785 = vrot.lane.b32.xlu0 %v999, 122
        %v2786 = vpop.permute.xlu0 %2785
        %2789 = vrot.lane.b32.xlu0 %v998, 10
        %v2790 = vpop.permute.xlu0 %2789
        %2791 = vrot.lane.b32.xlu0 %v999, 10
        %v2792 = vpop.permute.xlu0 %2791
        %2795 = vrot.lane.b32.xlu0 %v998, 26
        %v2796 = vpop.permute.xlu0 %2795
        %2797 = vrot.lane.b32.xlu0 %v999, 26
        %v2798 = vpop.permute.xlu0 %2797
        %2801 = vrot.lane.b32.xlu0 %v998, 42
        %v2802 = vpop.permute.xlu0 %2801
        %2803 = vrot.lane.b32.xlu0 %v999, 42
        %v2804 = vpop.permute.xlu0 %2803
        %2807 = vrot.lane.b32.xlu0 %v998, 58
        %v2808 = vpop.permute.xlu0 %2807
        %2809 = vrot.lane.b32.xlu0 %v999, 58
        %v2810 = vpop.permute.xlu0 %2809
        %2813 = vrot.lane.b32.xlu0 %v998, 74
        %v2814 = vpop.permute.xlu0 %2813
        %2815 = vrot.lane.b32.xlu0 %v999, 74
        %v2816 = vpop.permute.xlu0 %2815
        %2819 = vrot.lane.b32.xlu0 %v998, 90
        %v2820 = vpop.permute.xlu0 %2819
        %2821 = vrot.lane.b32.xlu0 %v999, 90
        %v2822 = vpop.permute.xlu0 %2821
        %2825 = vrot.lane.b32.xlu0 %v998, 106
        %v2826 = vpop.permute.xlu0 %2825
        %2827 = vrot.lane.b32.xlu0 %v999, 106
        %v2828 = vpop.permute.xlu0 %2827
        %v2831 = vsel %vm215, %v2784, %v2790
        %v2832 = vsel %vm215, %v2786, %v2792
        %v2833 = vsel %vm218, %v2831, %v2796
        %v2834 = vsel %vm218, %v2832, %v2798
        %v2835 = vsel %vm221, %v2833, %v2802
        %v2836 = vsel %vm221, %v2834, %v2804
        %v2837 = vsel %vm224, %v2835, %v2808
        %v2838 = vsel %vm224, %v2836, %v2810
        %v2839 = vsel %vm227, %v2837, %v2814
        %v2840 = vsel %vm227, %v2838, %v2816
        %v2841 = vsel %vm230, %v2839, %v2820
        %v2842 = vsel %vm230, %v2840, %v2822
        %v2843 = vsel %vm233, %v2841, %v2826
        %v2844 = vsel %vm233, %v2842, %v2828
        %v2845 = vld [vmem:[%s1 + $0x4b] sm:$0x1]
        %v2846 = vlaneseq
        %v2847 = vshrl.u32 %v2846, 7
        %v2848 = vsub.s32 0, %v2847
        %v2849 = vrot.slane %v2845, %v2848
        %v2850 = vmul.f32 %v2849, %v2781
        %v2851 = vadd.f32 %v2672, %v2850
        %v2852 = vld [vmem:[%s1 + $0x4f] sm:$0x1]
        %v2853 = vlaneseq
        %v2854 = vshrl.u32 %v2853, 7
        %v2855 = vsub.s32 0, %v2854
        %v2856 = vrot.slane %v2852, %v2855
        %v2857 = vmul.f32 %v2856, %v1124
        %v2858 = vadd.f32 %v2851, %v2857
        %v2859 = vld [vmem:[%s1 + $0x53] sm:$0x1]
        %v2860 = vlaneseq
        %v2861 = vshrl.u32 %v2860, 7
        %v2862 = vsub.s32 0, %v2861
        %v2863 = vrot.slane %v2859, %v2862
        %v2864 = vmul.f32 %v2863, %v2843
        %v2865 = vadd.f32 %v2858, %v2864
        %v2866 = vld [vmem:[%s1 + $0x57] sm:$0x1]
        %v2867 = vlaneseq
        %v2868 = vshrl.u32 %v2867, 7
        %v2869 = vsub.s32 0, %v2868
        %v2870 = vrot.slane %v2866, %v2869
        %v2871 = vmul.f32 %v2870, %v2781
        %v2872 = vmul.f32 %v2870, %v2782
        %v2873 = vadd.f32 %v2698, %v2871
        %v2874 = vadd.f32 %v2699, %v2872
        %v2875 = vld [vmem:[%s1 + $0x5b] sm:$0x1]
        %v2876 = vlaneseq
        %v2877 = vshrl.u32 %v2876, 7
        %v2878 = vsub.s32 0, %v2877
        %v2879 = vrot.slane %v2875, %v2878
        %v2880 = vmul.f32 %v2879, %v1124
        %v2881 = vmul.f32 %v2879, %v1125
        %v2882 = vadd.f32 %v2873, %v2880
        %v2883 = vadd.f32 %v2874, %v2881
        %v2884 = vld [vmem:[%s1 + $0x5f] sm:$0x1]
        %v2885 = vlaneseq
        %v2886 = vshrl.u32 %v2885, 7
        %v2887 = vsub.s32 0, %v2886
        %v2888 = vrot.slane %v2884, %v2887
        %v2889 = vmul.f32 %v2888, %v2843
        %v2890 = vmul.f32 %v2888, %v2844
        %v2891 = vadd.f32 %v2882, %v2889
        %v2892 = vadd.f32 %v2883, %v2890
        %v2893 = vld [vmem:[%s1 + $0x63] sm:$0x1]
        %v2894 = vlaneseq
        %v2895 = vshrl.u32 %v2894, 7
        %v2896 = vsub.s32 0, %v2895
        %v2897 = vrot.slane %v2893, %v2896
        %v2898 = vmul.f32 %v2897, %v2781
        %v2899 = vmul.f32 %v2897, %v2782
        %v2900 = vadd.f32 %v2725, %v2898
        %v2901 = vadd.f32 %v2726, %v2899
        %v2902 = vld [vmem:[%s1 + $0x67] sm:$0x1]
        %v2903 = vlaneseq
        %v2904 = vshrl.u32 %v2903, 7
        %v2905 = vsub.s32 0, %v2904
        %v2906 = vrot.slane %v2902, %v2905
        %v2907 = vmul.f32 %v2906, %v1124
        %v2908 = vmul.f32 %v2906, %v1125
        %v2909 = vadd.f32 %v2900, %v2907
        %v2910 = vadd.f32 %v2901, %v2908
        %v2911 = vld [vmem:[%s1 + $0x6b] sm:$0x1]
        %v2912 = vlaneseq
        %v2913 = vshrl.u32 %v2912, 7
        %v2914 = vsub.s32 0, %v2913
        %v2915 = vrot.slane %v2911, %v2914
        %v2916 = vmul.f32 %v2915, %v2843
        %v2917 = vmul.f32 %v2915, %v2844
        %v2918 = vadd.f32 %v2909, %v2916
        %v2919 = vadd.f32 %v2910, %v2917
        %v2920 = vadd.f32 %v2865, 0.0
        %vm2923 = vcmask 1044480
        %v2924 = vrot.slane %v2891, 3
        %v2925 = vrot.slane %v2892, 3
        %v2926 = vsel %vm2923, %v2924, %v2925
        %v2928 = vadd.f32 %v2920, %v2926
        %vm2931 = vcmask 1041408
        %v2932 = vrot.slane %v2918, 6
        %v2933 = vrot.slane %v2919, 6
        %v2934 = vsel %vm2931, %v2932, %v2933
        %v2936 = vadd.f32 %v2928, %v2934
        %v2937 = vmax.f32 %v2936, 0.0
        %v2939 = vrot.slane %v2937, 6
        %v2941 = vadd.f32 %v2146, %v2939
        %v2942 = vadd.f32 %v2147, %v2939
        %2943 = vst [vmem:[%s150 - $0x2] sm:$0xfc] %v2941
        %2944 = vst [vmem:[%s150 + $0x6] sm:$0x3] %v2942
        %s2945 = sand.u32 %s85, 1
        %s2946 = scalar_lea.sflag [#allocation3], %s2945
        %s2947 = sand.u32 %s85, 1
        %s2948 = smul.addr %s2947, 8
        %s2949 = scalar_lea.vmem [#allocation2], %s2948
        // Predicated region
        $region29: #{tpu_custom_call.1} parent=27 // pred_check
          %p2950 = pneg %p95
        $region30: #{tpu_custom_call.1} parent=27 // pred_check_branch
          %2952 = sbr.rel (%p2950) target = $region32
        $region31: #{tpu_custom_call.1} parent=27 // pred_region
          %s2954 = ssub.s32 128, 128
          %2955 = vsyncadd %s2946, %s2954
          %s2956 = smul.addr %s20, 2
          %s2957 = sadd.s32 %s21, %s2956
          %s2958 = smul.addr %s2957, 128
          %s2959 = scalar_lea.hbm %s2, %s2958
          %s2961 = sshll.u32 %s2949, 4
          %s2962 = int_to_ptr.vmem [resolvable:$true] %s2961
          %2964 = dma.vmem_to_hbm [thread:$0]  %s2962, 128, %s2959, %s2946
        $region32: #{tpu_custom_call.1} parent=27 // pred_fallthru
          _
      $region28: #{tpu_custom_call.1} parent=5 // pred_fallthru
        _
      %p2965 = scmp.le.s32.totalorder 2, %s11
      // Predicated region
      $region33: #{tpu_custom_call.1} parent=5 // pred_check
        %p2966 = pneg %p2965
      $region34: #{tpu_custom_call.1} parent=5 // pred_check_branch
        %2968 = sbr.rel (%p2966) target = $region36
      $region35: #{tpu_custom_call.1} parent=5 // pred_region
        %s2969 = ssub.s32 %s11, 2
        // Predicated region
        $region37: #{tpu_custom_call.1} parent=35 // pred_check
          %p2970 = pneg %p101
        $region38: #{tpu_custom_call.1} parent=35 // pred_check_branch
          %2972 = sbr.rel (%p2970) target = $region40
        $region39: #{tpu_custom_call.1} parent=35 // pred_region
          %s2973 = sand.u32 %s86, 1
          %s2974 = scalar_lea.sflag [#allocation3], %s2973
          %s2975 = sand.u32 %s86, 1
          %s2976 = smul.addr %s2975, 8
          %s2977 = scalar_lea.vmem [#allocation2], %s2976
          %2978 = dma.done %s2974, 128
        $region40: #{tpu_custom_call.1} parent=35 // pred_fallthru
          _
      $region36: #{tpu_custom_call.1} parent=5 // pred_fallthru
        _
    $region6: #{tpu_custom_call.1} parent=1 // loop_footer
      %s15 = sadd.s32 1, %s11
    $region7: #{tpu_custom_call.1} parent=1 // loop_footer_branch
      %10 = sbr.rel target = $region3
    $region8: #{tpu_custom_call.1} parent=1 // loop_exit
      _
    %2979 = vsyncpa [#allocation3], 1
    %s2980 = scalar_lea.sflag [#allocation3], 1
    %2981 = vsyncpa %s2980, 1

</llo_original>
